<compile_context>
chip_gen: v6e
topology: v6e:2x2x1
jax: 0.10.0
libtpu: 0.0.40
codegen_flags: <defaults>
</compile_context>

<pallas_src>
import math
from functools import partial

import jax
import jax.numpy as jnp
from jax.experimental import pallas as pl
from jax.experimental.pallas import tpu as pltpu

_INV_SQRT2 = 0.7071067811865476
_BF16 = jnp.bfloat16


# ----------------------------------------------------------------------------
# Small helpers
# ----------------------------------------------------------------------------
def _pick_tile(dim, target, align):
    """Largest tile <= target that divides `dim` and is a multiple of `align`.
    Falls back to the full dim (always a legal block shape).
    TODO(synk): replace the full-dim fallback with padding / masked remainder
    tiles so non-divisible shapes never produce a huge single block."""
    if dim <= target:
        return dim
    t = (target // align) * align
    while t >= align:
        if dim % t == 0:
            return t
        t -= align
    return dim


def _gelu_erf(x):
    # erf-based GELU (matches torch.nn.GELU(approximate='none')) using the
    # Abramowitz & Stegun 7.1.26 approximation (|err| < 1.5e-7); the divide
    # goes to the EUP via pl.reciprocal(approx=True).
    a1, a2, a3, a4, a5 = 0.254829592, -0.284496736, 1.421413741, -1.453152027, 1.061405429
    p = 0.3275911
    u = x * _INV_SQRT2
    sgn = jnp.where(u >= 0.0, 1.0, -1.0)
    au = jnp.abs(u)
    t = pl.reciprocal(1.0 + p * au, approx=True)
    poly = ((((a5 * t + a4) * t + a3) * t + a2) * t + a1) * t
    erf = sgn * (1.0 - poly * jnp.exp(-au * au))
    return 0.5 * x * (1.0 + erf)


def _roll_neg_last(x, move):
    # jnp.roll(x, -move, axis=-1), written as an explicit slice+concat.
    return jnp.concatenate([x[..., move:], x[..., :move]], axis=-1)


# ----------------------------------------------------------------------------
# Kernel 1: fused LayerNorm + kv / q projections (norm1 front-end, no bias)
# ----------------------------------------------------------------------------
def _ln_kv_q_kernel(x_ref, g_ref, b_ref, wkv_ref, wq_ref, kv_ref, q_ref, *, eps):
    x = x_ref[...].astype(jnp.float32)                        # (tm, K)
    mean = jnp.mean(x, axis=-1, keepdims=True)
    xc = x - mean
    var = jnp.mean(xc * xc, axis=-1, keepdims=True)
    xn = (xc * jax.lax.rsqrt(var + eps) * g_ref[...] + b_ref[...]).astype(_BF16)
    kv_ref[...] = jnp.dot(xn, wkv_ref[...],
                          preferred_element_type=jnp.float32).astype(kv_ref.dtype)
    q_ref[...] = jnp.dot(xn, wq_ref[...],
                         preferred_element_type=jnp.float32).astype(q_ref.dtype)


def ln_matmul_kv_q(x2d, gamma, beta, w_kv_bf16, w_q_bf16, eps=1e-5):
    """norm1(x) @ kv_w (2C cols, v half pre-scaled) and norm1(x) @ q_w (C cols)
    in one pass; outputs are bf16 (glue tensors only).  Tiled over rows only:
    both weights stay resident and LN is computed exactly once per row tile."""
    M, K = x2d.shape
    n_kv = w_kv_bf16.shape[1]
    n_q = w_q_bf16.shape[1]
    tm = _pick_tile(M, 512, 8)
    grid = (M // tm,)
    return pl.pallas_call(
        partial(_ln_kv_q_kernel, eps=eps),
        out_shape=(jax.ShapeDtypeStruct((M, n_kv), _BF16),
                   jax.ShapeDtypeStruct((M, n_q), _BF16)),
        grid=grid,
        in_specs=[
            pl.BlockSpec((tm, K), lambda i: (i, 0)),
            pl.BlockSpec((1, K), lambda i: (0, 0)),
            pl.BlockSpec((1, K), lambda i: (0, 0)),
            pl.BlockSpec((K, n_kv), lambda i: (0, 0)),
            pl.BlockSpec((K, n_q), lambda i: (0, 0)),
        ],
        out_specs=(pl.BlockSpec((tm, n_kv), lambda i: (i, 0)),
                   pl.BlockSpec((tm, n_q), lambda i: (i, 0))),
        compiler_params=pltpu.CompilerParams(dimension_semantics=("parallel",)),
    )(x2d, gamma.reshape(1, K), beta.reshape(1, K), w_kv_bf16, w_q_bf16)


# ----------------------------------------------------------------------------
# Kernel 2: fused LayerNorm + matmul + bias + GELU       [used for norm2->fc1]
#   LN result is cached in a VMEM scratch under pl.when(j == 0) and reused
#   across output-column tiles.
# ----------------------------------------------------------------------------
def _ln_matmul_kernel(x_ref, g_ref, b_ref, w_ref, bias_ref, o_ref, xn_ref,
                      *, eps, activation):
    @pl.when(pl.program_id(1) == 0)
    def _():
        x = x_ref[...].astype(jnp.float32)                    # (tm, K)
        mean = jnp.mean(x, axis=-1, keepdims=True)
        xc = x - mean
        var = jnp.mean(xc * xc, axis=-1, keepdims=True)
        xn_ref[...] = (xc * jax.lax.rsqrt(var + eps) * g_ref[...]
                       + b_ref[...]).astype(xn_ref.dtype)

    acc = jnp.dot(xn_ref[...], w_ref[...], preferred_element_type=jnp.float32)
    acc = acc + bias_ref[...]
    if activation == "gelu":
        acc = _gelu_erf(acc)
    o_ref[...] = acc.astype(o_ref.dtype)


def ln_matmul(x2d, gamma, beta, w_bf16, bias, activation=None,
              out_dtype=jnp.float32, eps=1e-5):
    M, K = x2d.shape
    Nout = w_bf16.shape[1]
    tm = _pick_tile(M, 512, 8)
    tn = _pick_tile(Nout, 512, 128)
    grid = (M // tm, Nout // tn)
    return pl.pallas_call(
        partial(_ln_matmul_kernel, eps=eps, activation=activation),
        out_shape=jax.ShapeDtypeStruct((M, Nout), out_dtype),
        grid=grid,
        in_specs=[
            pl.BlockSpec((tm, K), lambda i, j: (i, 0)),
            pl.BlockSpec((1, K), lambda i, j: (0, 0)),
            pl.BlockSpec((1, K), lambda i, j: (0, 0)),
            pl.BlockSpec((K, tn), lambda i, j: (0, j)),
            pl.BlockSpec((1, tn), lambda i, j: (0, j)),
        ],
        out_specs=pl.BlockSpec((tm, tn), lambda i, j: (i, j)),
        scratch_shapes=[pltpu.VMEM((tm, K), _BF16)],
        compiler_params=pltpu.CompilerParams(
            dimension_semantics=("parallel", "arbitrary")),
    )(x2d, gamma.reshape(1, K), beta.reshape(1, K), w_bf16, bias.reshape(1, Nout))


# ----------------------------------------------------------------------------
# Kernel 3: K-tiled matmul + bias + residual (fc2 epilogue)
# ----------------------------------------------------------------------------
def _matmul_bias_res_kernel(x_ref, w_ref, b_ref, res_ref, o_ref, acc_ref):
    @pl.when(pl.program_id(2) == 0)
    def _():
        acc_ref[...] = jnp.zeros_like(acc_ref)

    acc_ref[...] += jnp.dot(x_ref[...], w_ref[...],
                            preferred_element_type=jnp.float32)

    @pl.when(pl.program_id(2) == pl.num_programs(2) - 1)
    def _():
        o_ref[...] = (acc_ref[...] + b_ref[...] + res_ref[...]).astype(o_ref.dtype)


def matmul_bias_residual(x2d, w_bf16, bias, residual, out_dtype=jnp.float32):
    M, K = x2d.shape
    Nout = w_bf16.shape[1]
    tm = _pick_tile(M, 512, 8)
    tn = _pick_tile(Nout, 512, 128)
    tk = _pick_tile(K, 512, 128)
    grid = (M // tm, Nout // tn, K // tk)
    return pl.pallas_call(
        _matmul_bias_res_kernel,
        out_shape=jax.ShapeDtypeStruct((M, Nout), out_dtype),
        grid=grid,
        in_specs=[
            pl.BlockSpec((tm, tk), lambda i, j, k: (i, k)),
            pl.BlockSpec((tk, tn), lambda i, j, k: (k, j)),
            pl.BlockSpec((1, tn), lambda i, j, k: (0, j)),
            pl.BlockSpec((tm, tn), lambda i, j, k: (i, j)),
        ],
        out_specs=pl.BlockSpec((tm, tn), lambda i, j, k: (i, j)),
        scratch_shapes=[pltpu.VMEM((tm, tn), jnp.float32)],
        compiler_params=pltpu.CompilerParams(
            dimension_semantics=("parallel", "parallel", "arbitrary")),
    )(x2d, w_bf16, bias.reshape(1, Nout), residual)


# ----------------------------------------------------------------------------
# Kernel 4: depthwise 3x3 conv, NHWC.  The zero-padded input is written ONCE
# into a VMEM scratch; the 9 taps are shifted window reads (no concat-with-
# zeros materialization per tap).  Optionally fuses the expand_heads channel
# roll (LEPE) or the residual add (CPE).
# ----------------------------------------------------------------------------
def _dwconv3x3_kernel(x_ref, w_ref, b_ref, o_ref, pad_ref, *, add_residual,
                      expand_move):
    _, H, W, Cout = o_ref.shape
    x = x_ref[0].astype(jnp.float32)                           # (H, W, Cin)
    if expand_move:
        # expand_heads: channels become [x | roll(x, -move)]  -> (H, W, 2*Cin)
        x = jnp.concatenate(
            [x, x[:, :, expand_move:], x[:, :, :expand_move]], axis=-1)

    pad_ref[...] = jnp.zeros_like(pad_ref)                     # zero halo
    pad_ref[pl.ds(1, H), pl.ds(1, W), :] = x

    w = w_ref[...].astype(jnp.float32)                         # (3, 3, Cout)
    acc = jnp.zeros((H, W, Cout), jnp.float32)
    for ky in range(3):
        for kx in range(3):
            win = pad_ref[pl.ds(ky, H), pl.ds(kx, W), :]       # shifted window
            acc = acc + win * w[ky:ky + 1, kx:kx + 1, :]
    acc = acc + b_ref[...].reshape(1, 1, Cout)
    if add_residual:
        acc = acc + x
    o_ref[0] = acc.astype(o_ref.dtype)


def dwconv3x3(x_nhwc, w, b, *, add_residual=False, expand_move=None,
              out_dtype=jnp.float32):
    """Depthwise 3x3 (stride 1, pad 1), channels-last; matches PyTorch grouped
    NCHW Conv2d with the same (3,3,C) weights.  If expand_move is set, the
    input channels are expanded in-kernel to [x | roll(x, -move)] and the
    weight must have 2*Cin channels (LEPE)."""
    B, H, W, Cin = x_nhwc.shape
    Cout = w.shape[-1]
    # TODO(synk): for large feature maps (v7x VMEM), tile rows over H with a
    # 2-row halo instead of one full (H, W, C) block per batch element.
    return pl.pallas_call(
        partial(_dwconv3x3_kernel, add_residual=add_residual,
                expand_move=expand_move),
        out_shape=jax.ShapeDtypeStruct((B, H, W, Cout), out_dtype),
        grid=(B,),
        in_specs=[
            pl.BlockSpec((1, H, W, Cin), lambda i: (i, 0, 0, 0)),
            pl.BlockSpec((3, 3, Cout), lambda i: (0, 0, 0)),
            pl.BlockSpec((1, Cout), lambda i: (0, 0)),
        ],
        out_specs=pl.BlockSpec((1, H, W, Cout), lambda i: (i, 0, 0, 0)),
        scratch_shapes=[pltpu.VMEM((H + 2, W + 2, Cout), jnp.float32)],
        compiler_params=pltpu.CompilerParams(dimension_semantics=("parallel",)),
    )(x_nhwc, w, b.reshape(1, Cout))


# ----------------------------------------------------------------------------
# Kernel 5: fused attention core (per batch element)
#   per-head softmax(k), ONE full-width k^T@v MXU op + diagonal-block extract,
#   in-kernel expand_heads of q and kTv, lane-dense block-diagonal attention
#   matmul (static bf16 mask), + lepe, output projection + bias, residual add.
#   Attention scale is pre-folded into the v columns of kv_w.
# ----------------------------------------------------------------------------
def _attn_core_kernel(kv_ref, q_ref, lepe_ref, x_ref, mask_ref, wp_ref, bp_ref,
                      feat_ref, x1_ref, *, num_heads, dim):
    C = dim
    hd = C // num_heads
    nh2 = 2 * num_heads
    move = hd // 2                                             # expansion_ratio = 2

    kvf = kv_ref[0].astype(jnp.float32)                        # (N, 2C)
    k = kvf[:, :C]
    vb = kvf[:, C:].astype(_BF16)                              # scale pre-folded

    # per-head softmax over head_dim
    ksm_cols = []
    for h in range(num_heads):
        kh = k[:, h * hd:(h + 1) * hd]
        m = jnp.max(kh, axis=-1, keepdims=True)
        e = jnp.exp(kh - m)
        ksm_cols.append(
            e * pl.reciprocal(jnp.sum(e, axis=-1, keepdims=True), approx=True))
    ksm = jnp.concatenate(ksm_cols, axis=-1).astype(_BF16)     # (N, C)

    # One full-width MXU op for all heads (contract over tokens); the per-head
    # (hd, hd) results are the diagonal blocks of the (C, C) product.
    # TODO(synk): on v5e prefer per-head (N,hd)@(N,hd) matmuls (128-wide MXU).
    full = jax.lax.dot_general(ksm, vb, (((0,), (0,)), ((), ())),
                               preferred_element_type=jnp.float32)     # (C, C)
    kTv_flat = jnp.concatenate(
        [full[h * hd:(h + 1) * hd, h * hd:(h + 1) * hd] for h in range(num_heads)],
        axis=-1)                                               # (hd, C)

    # expand_heads on kTv: [kTv | roll(kTv, -hd//2)] along channels -> (hd, 2C)
    ekTv = jnp.concatenate(
        [kTv_flat, kTv_flat[:, move:], kTv_flat[:, :move]], axis=-1)

    # Block-diagonal (2C, 2C) operand: tile the (hd, 2C) rows and apply the
    # precomputed static 0/1 bf16 mask (constant index_map -> VMEM resident).
    bd = jnp.concatenate([ekTv] * nh2, axis=0).astype(_BF16) * mask_ref[...]

    # expanded q built in-kernel from the (N, C) projection (no 2x q matmul).
    qf = q_ref[0].astype(jnp.float32)
    eq = jnp.concatenate([qf, qf[:, move:], qf[:, :move]], axis=-1).astype(_BF16)

    attn = jnp.dot(eq, bd, preferred_element_type=jnp.float32)          # (N, 2C)

    # epilogue: (+ lepe) @ proj_w + proj_b, plus first residual
    y = (attn + lepe_ref[0].astype(jnp.float32)).astype(_BF16)
    feat = jnp.dot(y, wp_ref[...], preferred_element_type=jnp.float32) + bp_ref[...]
    feat_ref[0] = feat.astype(feat_ref.dtype)
    x1_ref[0] = (x_ref[0] + feat).astype(x1_ref.dtype)


def attn_core(kv, q, lepe, x, bd_mask, proj_w_bf16, proj_b, *, num_heads):
    B, N, ed = kv.shape
    C = ed // 2
    spec_2c = pl.BlockSpec((1, N, ed), lambda i: (i, 0, 0))
    spec_c = pl.BlockSpec((1, N, C), lambda i: (i, 0, 0))
    # TODO(synk): for large N (v7x VMEM), tile over tokens with the kTv
    # contraction accumulated across an 'arbitrary' grid axis.
    return pl.pallas_call(
        partial(_attn_core_kernel, num_heads=num_heads, dim=C),
        out_shape=(jax.ShapeDtypeStruct((B, N, C), jnp.float32),
                   jax.ShapeDtypeStruct((B, N, C), jnp.float32)),
        grid=(B,),
        in_specs=[spec_2c, spec_c, spec_2c, spec_c,
                  pl.BlockSpec((ed, ed), lambda i: (0, 0)),
                  pl.BlockSpec((ed, C), lambda i: (0, 0)),
                  pl.BlockSpec((1, C), lambda i: (0, 0))],
        out_specs=(spec_c, spec_c),
        compiler_params=pltpu.CompilerParams(dimension_semantics=("parallel",)),
    )(kv, q, lepe, x, bd_mask, proj_w_bf16, proj_b.reshape(1, C))


# ----------------------------------------------------------------------------
# One-time weight preparation (executed OUTSIDE the jitted forward)
# ----------------------------------------------------------------------------
def prepare_params(p, *, num_heads):
    C = p["q_w"].shape[0]
    hd = C // num_heads
    ed = 2 * C
    scale = hd ** -0.5
    # fold the attention scale into the v columns of kv_w (v only feeds kTv)
    col_scale = jnp.concatenate([jnp.ones((C,), jnp.float32),
                                 jnp.full((C,), scale, jnp.float32)])
    r = jnp.arange(ed)
    bd_mask = (r[:, None] // hd == r[None, :] // hd).astype(_BF16)
    return {
        "n1_g": p["n1_g"], "n1_b": p["n1_b"],
        "n2_g": p["n2_g"], "n2_b": p["n2_b"],
        "kv_w": (p["kv_w"] * col_scale[None, :]).astype(_BF16),
        "q_w": p["q_w"].astype(_BF16),
        "proj_w": p["proj_w"].astype(_BF16),
        "proj_b": p["proj_b"],
        "lepe_w": p["lepe_w"], "lepe_b": p["lepe_b"],
        "cpe_w": p["cpe_w"], "cpe_b": p["cpe_b"],
        "fc1_w": p["fc1_w"].astype(_BF16), "fc1_b": p["fc1_b"],
        "fc2_w": p["fc2_w"].astype(_BF16), "fc2_b": p["fc2_b"],
        "bd_mask": bd_mask,
    }


# ----------------------------------------------------------------------------
# Block forward (glue only does metadata reshapes)
# ----------------------------------------------------------------------------
def block_forward(x, p, *, num_heads, block_num=0):
    B, N, C = x.shape
    H = int(math.isqrt(N))
    assert H * H == N
    ed = 2 * C
    hd = C // num_heads
    move = hd // 2

    if 0 < block_num < 6:                                      # ConvPosEnc (+ residual)
        x = dwconv3x3(x.reshape(B, H, H, C), p["cpe_w"], p["cpe_b"],
                      add_residual=True).reshape(B, N, C)

    # norm1 fused into the kv / q projections (bf16 glue outputs).
    x2d = x.reshape(B * N, C)
    kv2d, q2d = ln_matmul_kv_q(x2d, p["n1_g"], p["n1_b"], p["kv_w"], p["q_w"])
    kv = kv2d.reshape(B, N, ed)
    q = q2d.reshape(B, N, C)

    # LEPE depthwise conv; expand_heads of q is fused into the conv kernel.
    lepe = dwconv3x3(q.reshape(B, H, H, C), p["lepe_w"], p["lepe_b"],
                     expand_move=move, out_dtype=_BF16).reshape(B, N, ed)

    # fused attention core (incl. output projection and first residual)
    feat, x1 = attn_core(kv, q, lepe, x, p["bd_mask"], p["proj_w"], p["proj_b"],
                         num_heads=num_heads)

    # MLP: norm2 fused into fc1 (+ GELU, bf16 out); fc2 fused with bias + residual
    h = ln_matmul(x1.reshape(B * N, C), p["n2_g"], p["n2_b"],
                  p["fc1_w"], p["fc1_b"], activation="gelu", out_dtype=_BF16)
    out = matmul_bias_residual(h, p["fc2_w"], p["fc2_b"],
                               x1.reshape(B * N, C)).reshape(B, N, C)
    return out, feat


# ----------------------------------------------------------------------------
# Pure-JAX reference (mirrors the PyTorch module) for validation
# ----------------------------------------------------------------------------
def _ref_expand_heads(t, num_heads, r=2):
    B, L, C = t.shape
    hd = C // num_heads
    parts = [t]
    for i in range(1, r):
        move_dim = (hd * (r - i)) // r
        parts.append(jnp.roll(t, -move_dim, axis=2))
    ef = jnp.concatenate(parts, axis=-1)[:, :, : C * r]
    ef = ef.reshape(B, L, num_heads * r, hd)
    return jnp.transpose(ef, (0, 2, 1, 3))


def _ref_dwconv_nchw(x, w33c, b):
    C = x.shape[1]
    w = jnp.transpose(w33c, (2, 0, 1))[:, None, :, :]
    y = jax.lax.conv_general_dilated(
        x, w, window_strides=(1, 1), padding=((1, 1), (1, 1)),
        dimension_numbers=("NCHW", "OIHW", "NCHW"), feature_group_count=C)
    return y + b[None, :, None, None]


def _ref_layernorm(x, g, b, eps=1e-5):
    m = jnp.mean(x, axis=-1, keepdims=True)
    v = jnp.mean((x - m) ** 2, axis=-1, keepdims=True)
    return (x - m) * jax.lax.rsqrt(v + eps) * g + b


def _ref_attention(x, p, num_heads):
    B, N, C = x.shape
    H = int(math.isqrt(N))
    hd = C // num_heads
    ed = 2 * C
    scale = hd ** -0.5
    kv = jnp.transpose((x @ p["kv_w"]).reshape(B, N, 2, num_heads, hd), (2, 0, 3, 1, 4))
    k, v = kv[0], kv[1]
    q = x @ p["q_w"]
    eq = _ref_expand_heads(q, num_heads)
    lepe_in = jnp.transpose(eq, (0, 1, 3, 2)).reshape(B, ed, H, H)
    lepe = jnp.transpose(
        _ref_dwconv_nchw(lepe_in, p["lepe_w"], p["lepe_b"]).reshape(B, ed, N), (0, 2, 1))
    ksm = jax.nn.softmax(k, axis=3)
    kTv = jnp.einsum("bhnd,bhne->bhde", ksm, v)
    kTv_flat = jnp.transpose(kTv, (0, 2, 1, 3)).reshape(B, hd, C)
    ekTv = _ref_expand_heads(kTv_flat, num_heads)
    attn = jnp.einsum("bhnd,bhde->bhne", eq, ekTv)
    xo = jnp.transpose(scale * attn, (0, 2, 1, 3)).reshape(B, N, ed)
    return (xo + lepe) @ p["proj_w"] + p["proj_b"]


def _ref_mlp(x, p):
    h = x @ p["fc1_w"] + p["fc1_b"]
    h = 0.5 * h * (1.0 + jax.lax.erf(h * _INV_SQRT2))
    return h @ p["fc2_w"] + p["fc2_b"]


def _ref_cpe(x, p):
    B, N, C = x.shape
    H = int(math.isqrt(N))
    feat = jnp.transpose(x, (0, 2, 1)).reshape(B, C, H, H)
    y = _ref_dwconv_nchw(feat, p["cpe_w"], p["cpe_b"]) + feat
    return jnp.transpose(y.reshape(B, C, N), (0, 2, 1))


def _ref_block(x, p, num_heads, block_num):
    if 0 < block_num < 6:
        x = _ref_cpe(x, p)
    feat = _ref_attention(_ref_layernorm(x, p["n1_g"], p["n1_b"]), p, num_heads)
    x = x + feat
    x = x + _ref_mlp(_ref_layernorm(x, p["n2_g"], p["n2_b"]), p)
    return x, feat


# ----------------------------------------------------------------------------
# Deterministic parameter init
# ----------------------------------------------------------------------------
def init_params(key, dim, num_heads, mlp_ratio=4.0):
    ed = 2 * dim
    hidden = int(dim * mlp_ratio)
    ks = jax.random.split(key, 16)

    def dense(k, fan_in, shape):
        return jax.random.normal(k, shape, jnp.float32) / jnp.sqrt(float(fan_in))

    return {
        "cpe_w": dense(ks[0], 9, (3, 3, dim)),
        "cpe_b": 0.02 * jax.random.normal(ks[1], (dim,), jnp.float32),
        "n1_g": 1.0 + 0.1 * jax.random.normal(ks[2], (dim,), jnp.float32),
        "n1_b": 0.1 * jax.random.normal(ks[3], (dim,), jnp.float32),
        "kv_w": dense(ks[4], dim, (dim, ed)),
        "q_w": dense(ks[5], dim, (dim, dim)),
        "proj_w": dense(ks[6], ed, (ed, dim)),
        "proj_b": 0.02 * jax.random.normal(ks[7], (dim,), jnp.float32),
        "lepe_w": dense(ks[8], 9, (3, 3, ed)),
        "lepe_b": 0.02 * jax.random.normal(ks[9], (ed,), jnp.float32),
        "n2_g": 1.0 + 0.1 * jax.random.normal(ks[10], (dim,), jnp.float32),
        "n2_b": 0.1 * jax.random.normal(ks[11], (dim,), jnp.float32),
        "fc1_w": dense(ks[12], dim, (dim, hidden)),
        "fc1_b": 0.02 * jax.random.normal(ks[13], (hidden,), jnp.float32),
        "fc2_w": dense(ks[14], hidden, (hidden, dim)),
        "fc2_b": 0.02 * jax.random.normal(ks[15], (dim,), jnp.float32),
    }


if __name__ == "__main__":
    # Block(dim=32, num_heads=4, mlp_ratio=4.0, block_num=1)  -> use_cpe = True
    B, N, C, num_heads, block_num = 2, 16, 32, 4, 1            # H = W = 4
    key = jax.random.PRNGKey(0)
    kx, kp = jax.random.split(key)
    x = jax.random.normal(kx, (B, N, C), jnp.float32)
    params = init_params(kp, C, num_heads, mlp_ratio=4.0)

    prepared = prepare_params(params, num_heads=num_heads)      # one-time, outside jit
    fwd = jax.jit(partial(block_forward, num_heads=num_heads, block_num=block_num))
    out, feat = fwd(x, prepared)
    out = jax.block_until_ready(out)
    feat = jax.block_until_ready(feat)

    ref_out, ref_feat = _ref_block(x, params, num_heads, block_num)
    assert out.shape == (B, N, C) and feat.shape == (B, N, C)
    # bf16 MXU inputs / bf16 glue activations (f32 accumulation) -> loose tolerance.
    assert bool(jnp.allclose(out, ref_out, atol=3e-2, rtol=3e-2)), (
        "output mismatch, max abs err = %f" % float(jnp.max(jnp.abs(out - ref_out))))
    assert bool(jnp.allclose(feat, ref_feat, atol=3e-2, rtol=3e-2)), (
        "feat mismatch, max abs err = %f" % float(jnp.max(jnp.abs(feat - ref_feat))))
    print("KERNEL_OK")
</pallas_src>

<mosaic_0001>
module attributes {stable_mosaic.version = 11 : i64} {
  func.func @_ln_kv_q_kernel(%arg0: i32, %arg1: memref<32x32xf32, #tpu.memory_space<vmem>>, %arg2: memref<1x32xf32, #tpu.memory_space<vmem>>, %arg3: memref<1x32xf32, #tpu.memory_space<vmem>>, %arg4: memref<32x64xbf16, #tpu.memory_space<vmem>>, %arg5: memref<32x32xbf16, #tpu.memory_space<vmem>>, %arg6: memref<32x64xbf16, #tpu.memory_space<vmem>>, %arg7: memref<32x32xbf16, #tpu.memory_space<vmem>>) attributes {dimension_semantics = [#tpu.dimension_semantics<parallel>], iteration_bounds = array<i64: 1>, scalar_prefetch = 0 : i64, scratch_operands = 0 : i64, tpu.core_type = #tpu.core_type<tc>, window_params = [{transform_indices = @transform_0, window_bounds = array<i64: 32, 32>}, {pipeline_mode = #tpu.pipeline_mode<synchronous>, transform_indices = @transform_1, window_bounds = array<i64: 1, 32>}, {pipeline_mode = #tpu.pipeline_mode<synchronous>, transform_indices = @transform_2, window_bounds = array<i64: 1, 32>}, {pipeline_mode = #tpu.pipeline_mode<synchronous>, transform_indices = @transform_3, window_bounds = array<i64: 32, 64>}, {pipeline_mode = #tpu.pipeline_mode<synchronous>, transform_indices = @transform_4, window_bounds = array<i64: 32, 32>}, {transform_indices = @transform_5, window_bounds = array<i64: 32, 64>}, {transform_indices = @transform_6, window_bounds = array<i64: 32, 32>}]} {
    %c0 = arith.constant 0 : index
    %c0_0 = arith.constant 0 : index
    %0 = vector.load %arg1[%c0, %c0_0] : memref<32x32xf32, #tpu.memory_space<vmem>>, vector<32x32xf32>
    %cst = arith.constant dense<0.000000e+00> : vector<32xf32>
    %1 = vector.multi_reduction <add>, %0, %cst [1] : vector<32x32xf32> to vector<32xf32>
    %2 = vector.shape_cast %1 : vector<32xf32> to vector<32x1xf32>
    %cst_1 = arith.constant 3.200000e+01 : f32
    %3 = vector.broadcast %cst_1 : f32 to vector<32x1xf32>
    %4 = arith.divf %2, %3 : vector<32x1xf32>
    %5 = vector.broadcast %4 : vector<32x1xf32> to vector<32x32xf32>
    %6 = arith.subf %0, %5 : vector<32x32xf32>
    %7 = arith.mulf %6, %6 : vector<32x32xf32>
    %cst_2 = arith.constant dense<0.000000e+00> : vector<32xf32>
    %8 = vector.multi_reduction <add>, %7, %cst_2 [1] : vector<32x32xf32> to vector<32xf32>
    %9 = vector.shape_cast %8 : vector<32xf32> to vector<32x1xf32>
    %cst_3 = arith.constant 3.200000e+01 : f32
    %10 = vector.broadcast %cst_3 : f32 to vector<32x1xf32>
    %11 = arith.divf %9, %10 : vector<32x1xf32>
    %cst_4 = arith.constant 9.99999974E-6 : f32
    %12 = vector.broadcast %cst_4 : f32 to vector<32x1xf32>
    %13 = arith.addf %11, %12 : vector<32x1xf32>
    %14 = math.rsqrt %13 : vector<32x1xf32>
    %15 = vector.broadcast %14 : vector<32x1xf32> to vector<32x32xf32>
    %16 = arith.mulf %6, %15 : vector<32x32xf32>
    %c0_5 = arith.constant 0 : index
    %c0_6 = arith.constant 0 : index
    %17 = vector.load %arg2[%c0_5, %c0_6] : memref<1x32xf32, #tpu.memory_space<vmem>>, vector<1x32xf32>
    %18 = vector.broadcast %17 : vector<1x32xf32> to vector<32x32xf32>
    %19 = arith.mulf %16, %18 : vector<32x32xf32>
    %c0_7 = arith.constant 0 : index
    %c0_8 = arith.constant 0 : index
    %20 = vector.load %arg3[%c0_7, %c0_8] : memref<1x32xf32, #tpu.memory_space<vmem>>, vector<1x32xf32>
    %21 = vector.broadcast %20 : vector<1x32xf32> to vector<32x32xf32>
    %22 = arith.addf %19, %21 : vector<32x32xf32>
    %23 = arith.truncf %22 : vector<32x32xf32> to vector<32x32xbf16>
    %c0_9 = arith.constant 0 : index
    %c0_10 = arith.constant 0 : index
    %24 = vector.load %arg4[%c0_9, %c0_10] : memref<32x64xbf16, #tpu.memory_space<vmem>>, vector<32x64xbf16>
    %cst_11 = arith.constant dense<0.000000e+00> : vector<32x64xf32>
    %25 = tpu.matmul %23, %24, %cst_11 {dimension_numbers = #tpu.dot_dimension_numbers<[1], [0], [0], [1], [0, 0, 1, 1], [], []>} : vector<32x32xbf16>, vector<32x64xbf16>, vector<32x64xf32> -> vector<32x64xf32>
    %26 = arith.truncf %25 : vector<32x64xf32> to vector<32x64xbf16>
    %c0_12 = arith.constant 0 : index
    %c0_13 = arith.constant 0 : index
    %27 = vector.load %arg6[%c0_12, %c0_13] : memref<32x64xbf16, #tpu.memory_space<vmem>>, vector<32x64xbf16>
    tpu.vector_store %arg6[%c0_12, %c0_13], %26 {strides = array<i32>} : memref<32x64xbf16, #tpu.memory_space<vmem>>, vector<32x64xbf16>,
    %c0_14 = arith.constant 0 : index
    %c0_15 = arith.constant 0 : index
    %28 = vector.load %arg5[%c0_14, %c0_15] : memref<32x32xbf16, #tpu.memory_space<vmem>>, vector<32x32xbf16>
    %cst_16 = arith.constant dense<0.000000e+00> : vector<32x32xf32>
    %29 = tpu.matmul %23, %28, %cst_16 {dimension_numbers = #tpu.dot_dimension_numbers<[1], [0], [0], [1], [0, 0, 1, 1], [], []>} : vector<32x32xbf16>, vector<32x32xbf16>, vector<32x32xf32> -> vector<32x32xf32>
    %30 = arith.truncf %29 : vector<32x32xf32> to vector<32x32xbf16>
    %c0_17 = arith.constant 0 : index
    %c0_18 = arith.constant 0 : index
    %31 = vector.load %arg7[%c0_17, %c0_18] : memref<32x32xbf16, #tpu.memory_space<vmem>>, vector<32x32xbf16>
    tpu.vector_store %arg7[%c0_17, %c0_18], %30 {strides = array<i32>} : memref<32x32xbf16, #tpu.memory_space<vmem>>, vector<32x32xbf16>,
    return
  }
  func.func @transform_0(%arg0: i32) -> (i32, i32) {
    %c0_i32 = arith.constant 0 : i32
    %c0_i32_0 = arith.constant 0 : i32
    return %arg0, %c0_i32 : i32, i32
  }
  func.func @transform_1(%arg0: i32) -> (i32, i32) {
    %c0_i32 = arith.constant 0 : i32
    %c0_i32_0 = arith.constant 0 : i32
    %c0_i32_1 = arith.constant 0 : i32
    return %c0_i32, %c0_i32_0 : i32, i32
  }
  func.func @transform_2(%arg0: i32) -> (i32, i32) {
    %c0_i32 = arith.constant 0 : i32
    %c0_i32_0 = arith.constant 0 : i32
    %c0_i32_1 = arith.constant 0 : i32
    return %c0_i32, %c0_i32_0 : i32, i32
  }
  func.func @transform_3(%arg0: i32) -> (i32, i32) {
    %c0_i32 = arith.constant 0 : i32
    %c0_i32_0 = arith.constant 0 : i32
    %c0_i32_1 = arith.constant 0 : i32
    return %c0_i32, %c0_i32_0 : i32, i32
  }
  func.func @transform_4(%arg0: i32) -> (i32, i32) {
    %c0_i32 = arith.constant 0 : i32
    %c0_i32_0 = arith.constant 0 : i32
    %c0_i32_1 = arith.constant 0 : i32
    return %c0_i32, %c0_i32_0 : i32, i32
  }
  func.func @transform_5(%arg0: i32) -> (i32, i32) {
    %c0_i32 = arith.constant 0 : i32
    %c0_i32_0 = arith.constant 0 : i32
    return %arg0, %c0_i32 : i32, i32
  }
  func.func @transform_6(%arg0: i32) -> (i32, i32) {
    %c0_i32 = arith.constant 0 : i32
    %c0_i32_0 = arith.constant 0 : i32
    return %arg0, %c0_i32 : i32, i32
  }
}

module attributes {stable_mosaic.version = 11 : i64} {
  func.func @_dwconv3x3_kernel(%arg0: i32, %arg1: memref<1x4x4x32xbf16, #tpu.memory_space<vmem>>, %arg2: memref<3x3x64xf32, #tpu.memory_space<vmem>>, %arg3: memref<1x64xf32, #tpu.memory_space<vmem>>, %arg4: memref<1x4x4x64xbf16, #tpu.memory_space<vmem>>, %arg5: memref<6x6x64xf32, #tpu.memory_space<vmem>>) attributes {dimension_semantics = [#tpu.dimension_semantics<parallel>], iteration_bounds = array<i64: 2>, scalar_prefetch = 0 : i64, scratch_operands = 1 : i64, tpu.core_type = #tpu.core_type<tc>, window_params = [{transform_indices = @transform_0, window_bounds = array<i64: 1, 4, 4, 32>}, {pipeline_mode = #tpu.pipeline_mode<synchronous>, transform_indices = @transform_1, window_bounds = array<i64: 3, 3, 64>}, {pipeline_mode = #tpu.pipeline_mode<synchronous>, transform_indices = @transform_2, window_bounds = array<i64: 1, 64>}, {transform_indices = @transform_3, window_bounds = array<i64: 1, 4, 4, 64>}]} {
    %c0 = arith.constant 0 : index
    %c0_0 = arith.constant 0 : index
    %c0_1 = arith.constant 0 : index
    %c0_2 = arith.constant 0 : index
    %0 = vector.load %arg1[%c0, %c0_0, %c0_1, %c0_2] : memref<1x4x4x32xbf16, #tpu.memory_space<vmem>>, vector<1x4x4x32xbf16>
    %1 = vector.shape_cast %0 : vector<1x4x4x32xbf16> to vector<4x4x32xbf16>
    %2 = arith.extf %1 : vector<4x4x32xbf16> to vector<4x4x32xf32>
    %3 = vector.extract_strided_slice %2 {offsets = [0, 0, 4], sizes = [4, 4, 28], strides = [1, 1, 1]} : vector<4x4x32xf32> to vector<4x4x28xf32>
    %4 = vector.extract_strided_slice %2 {offsets = [0, 0, 0], sizes = [4, 4, 4], strides = [1, 1, 1]} : vector<4x4x32xf32> to vector<4x4x4xf32>
    %5 = tpu.concatenate %2, %3, %4 in 2 : vector<4x4x32xf32>, vector<4x4x28xf32>, vector<4x4x4xf32> -> vector<4x4x64xf32>
    %cst = arith.constant 0.000000e+00 : f32
    %6 = vector.broadcast %cst : f32 to vector<6x6x64xf32>
    %c0_3 = arith.constant 0 : index
    %c0_4 = arith.constant 0 : index
    %c0_5 = arith.constant 0 : index
    %7 = vector.load %arg5[%c0_3, %c0_4, %c0_5] : memref<6x6x64xf32, #tpu.memory_space<vmem>>, vector<6x6x64xf32>
    tpu.vector_store %arg5[%c0_3, %c0_4, %c0_5], %6 {strides = array<i32>} : memref<6x6x64xf32, #tpu.memory_space<vmem>>, vector<6x6x64xf32>,
    %c1 = arith.constant 1 : index
    %c1_6 = arith.constant 1 : index
    %c0_7 = arith.constant 0 : index
    %8 = vector.load %arg5[%c1, %c1_6, %c0_7] : memref<6x6x64xf32, #tpu.memory_space<vmem>>, vector<4x4x64xf32>
    tpu.vector_store %arg5[%c1, %c1_6, %c0_7], %5 {strides = array<i32>} : memref<6x6x64xf32, #tpu.memory_space<vmem>>, vector<4x4x64xf32>,
    %c0_8 = arith.constant 0 : index
    %c0_9 = arith.constant 0 : index
    %c0_10 = arith.constant 0 : index
    %9 = vector.load %arg2[%c0_8, %c0_9, %c0_10] : memref<3x3x64xf32, #tpu.memory_space<vmem>>, vector<3x3x64xf32>
    %cst_11 = arith.constant 0.000000e+00 : f32
    %10 = vector.broadcast %cst_11 : f32 to vector<4x4x64xf32>
    %c0_12 = arith.constant 0 : index
    %c0_13 = arith.constant 0 : index
    %c0_14 = arith.constant 0 : index
    %11 = vector.load %arg5[%c0_12, %c0_13, %c0_14] : memref<6x6x64xf32, #tpu.memory_space<vmem>>, vector<4x4x64xf32>
    %12 = vector.extract_strided_slice %9 {offsets = [0, 0, 0], sizes = [1, 1, 64], strides = [1, 1, 1]} : vector<3x3x64xf32> to vector<1x1x64xf32>
    %13 = vector.broadcast %12 : vector<1x1x64xf32> to vector<4x4x64xf32>
    %14 = arith.mulf %11, %13 : vector<4x4x64xf32>
    %15 = arith.addf %10, %14 : vector<4x4x64xf32>
    %c0_15 = arith.constant 0 : index
    %c1_16 = arith.constant 1 : index
    %c0_17 = arith.constant 0 : index
    %16 = vector.load %arg5[%c0_15, %c1_16, %c0_17] : memref<6x6x64xf32, #tpu.memory_space<vmem>>, vector<4x4x64xf32>
    %17 = vector.extract_strided_slice %9 {offsets = [0, 1, 0], sizes = [1, 1, 64], strides = [1, 1, 1]} : vector<3x3x64xf32> to vector<1x1x64xf32>
    %18 = vector.broadcast %17 : vector<1x1x64xf32> to vector<4x4x64xf32>
    %19 = arith.mulf %16, %18 : vector<4x4x64xf32>
    %20 = arith.addf %15, %19 : vector<4x4x64xf32>
    %c0_18 = arith.constant 0 : index
    %c2 = arith.constant 2 : index
    %c0_19 = arith.constant 0 : index
    %21 = vector.load %arg5[%c0_18, %c2, %c0_19] : memref<6x6x64xf32, #tpu.memory_space<vmem>>, vector<4x4x64xf32>
    %22 = vector.extract_strided_slice %9 {offsets = [0, 2, 0], sizes = [1, 1, 64], strides = [1, 1, 1]} : vector<3x3x64xf32> to vector<1x1x64xf32>
    %23 = vector.broadcast %22 : vector<1x1x64xf32> to vector<4x4x64xf32>
    %24 = arith.mulf %21, %23 : vector<4x4x64xf32>
    %25 = arith.addf %20, %24 : vector<4x4x64xf32>
    %c1_20 = arith.constant 1 : index
    %c0_21 = arith.constant 0 : index
    %c0_22 = arith.constant 0 : index
    %26 = vector.load %arg5[%c1_20, %c0_21, %c0_22] : memref<6x6x64xf32, #tpu.memory_space<vmem>>, vector<4x4x64xf32>
    %27 = vector.extract_strided_slice %9 {offsets = [1, 0, 0], sizes = [1, 1, 64], strides = [1, 1, 1]} : vector<3x3x64xf32> to vector<1x1x64xf32>
    %28 = vector.broadcast %27 : vector<1x1x64xf32> to vector<4x4x64xf32>
    %29 = arith.mulf %26, %28 : vector<4x4x64xf32>
    %30 = arith.addf %25, %29 : vector<4x4x64xf32>
    %c1_23 = arith.constant 1 : index
    %c1_24 = arith.constant 1 : index
    %c0_25 = arith.constant 0 : index
    %31 = vector.load %arg5[%c1_23, %c1_24, %c0_25] : memref<6x6x64xf32, #tpu.memory_space<vmem>>, vector<4x4x64xf32>
    %32 = vector.extract_strided_slice %9 {offsets = [1, 1, 0], sizes = [1, 1, 64], strides = [1, 1, 1]} : vector<3x3x64xf32> to vector<1x1x64xf32>
    %33 = vector.broadcast %32 : vector<1x1x64xf32> to vector<4x4x64xf32>
    %34 = arith.mulf %31, %33 : vector<4x4x64xf32>
    %35 = arith.addf %30, %34 : vector<4x4x64xf32>
    %c1_26 = arith.constant 1 : index
    %c2_27 = arith.constant 2 : index
    %c0_28 = arith.constant 0 : index
    %36 = vector.load %arg5[%c1_26, %c2_27, %c0_28] : memref<6x6x64xf32, #tpu.memory_space<vmem>>, vector<4x4x64xf32>
    %37 = vector.extract_strided_slice %9 {offsets = [1, 2, 0], sizes = [1, 1, 64], strides = [1, 1, 1]} : vector<3x3x64xf32> to vector<1x1x64xf32>
    %38 = vector.broadcast %37 : vector<1x1x64xf32> to vector<4x4x64xf32>
    %39 = arith.mulf %36, %38 : vector<4x4x64xf32>
    %40 = arith.addf %35, %39 : vector<4x4x64xf32>
    %c2_29 = arith.constant 2 : index
    %c0_30 = arith.constant 0 : index
    %c0_31 = arith.constant 0 : index
    %41 = vector.load %arg5[%c2_29, %c0_30, %c0_31] : memref<6x6x64xf32, #tpu.memory_space<vmem>>, vector<4x4x64xf32>
    %42 = vector.extract_strided_slice %9 {offsets = [2, 0, 0], sizes = [1, 1, 64], strides = [1, 1, 1]} : vector<3x3x64xf32> to vector<1x1x64xf32>
    %43 = vector.broadcast %42 : vector<1x1x64xf32> to vector<4x4x64xf32>
    %44 = arith.mulf %41, %43 : vector<4x4x64xf32>
    %45 = arith.addf %40, %44 : vector<4x4x64xf32>
    %c2_32 = arith.constant 2 : index
    %c1_33 = arith.constant 1 : index
    %c0_34 = arith.constant 0 : index
    %46 = vector.load %arg5[%c2_32, %c1_33, %c0_34] : memref<6x6x64xf32, #tpu.memory_space<vmem>>, vector<4x4x64xf32>
    %47 = vector.extract_strided_slice %9 {offsets = [2, 1, 0], sizes = [1, 1, 64], strides = [1, 1, 1]} : vector<3x3x64xf32> to vector<1x1x64xf32>
    %48 = vector.broadcast %47 : vector<1x1x64xf32> to vector<4x4x64xf32>
    %49 = arith.mulf %46, %48 : vector<4x4x64xf32>
    %50 = arith.addf %45, %49 : vector<4x4x64xf32>
    %c2_35 = arith.constant 2 : index
    %c2_36 = arith.constant 2 : index
    %c0_37 = arith.constant 0 : index
    %51 = vector.load %arg5[%c2_35, %c2_36, %c0_37] : memref<6x6x64xf32, #tpu.memory_space<vmem>>, vector<4x4x64xf32>
    %52 = vector.extract_strided_slice %9 {offsets = [2, 2, 0], sizes = [1, 1, 64], strides = [1, 1, 1]} : vector<3x3x64xf32> to vector<1x1x64xf32>
    %53 = vector.broadcast %52 : vector<1x1x64xf32> to vector<4x4x64xf32>
    %54 = arith.mulf %51, %53 : vector<4x4x64xf32>
    %55 = arith.addf %50, %54 : vector<4x4x64xf32>
    %c0_38 = arith.constant 0 : index
    %c0_39 = arith.constant 0 : index
    %56 = vector.load %arg3[%c0_38, %c0_39] : memref<1x64xf32, #tpu.memory_space<vmem>>, vector<1x64xf32>
    %57 = vector.shape_cast %56 : vector<1x64xf32> to vector<1x1x64xf32>
    %58 = vector.broadcast %57 : vector<1x1x64xf32> to vector<4x4x64xf32>
    %59 = arith.addf %55, %58 : vector<4x4x64xf32>
    %60 = arith.truncf %59 : vector<4x4x64xf32> to vector<4x4x64xbf16>
    %c0_40 = arith.constant 0 : index
    %c0_41 = arith.constant 0 : index
    %c0_42 = arith.constant 0 : index
    %c0_43 = arith.constant 0 : index
    %61 = vector.load %arg4[%c0_40, %c0_41, %c0_42, %c0_43] : memref<1x4x4x64xbf16, #tpu.memory_space<vmem>>, vector<1x4x4x64xbf16>
    %62 = vector.shape_cast %61 : vector<1x4x4x64xbf16> to vector<4x4x64xbf16>
    %63 = vector.shape_cast %60 : vector<4x4x64xbf16> to vector<1x4x4x64xbf16>
    tpu.vector_store %arg4[%c0_40, %c0_41, %c0_42, %c0_43], %63 {strides = array<i32>} : memref<1x4x4x64xbf16, #tpu.memory_space<vmem>>, vector<1x4x4x64xbf16>,
    return
  }
  func.func @transform_0(%arg0: i32) -> (i32, i32, i32, i32) {
    %c0_i32 = arith.constant 0 : i32
    %c0_i32_0 = arith.constant 0 : i32
    %c0_i32_1 = arith.constant 0 : i32
    %c0_i32_2 = arith.constant 0 : i32
    return %arg0, %c0_i32, %c0_i32_0, %c0_i32_1 : i32, i32, i32, i32
  }
  func.func @transform_1(%arg0: i32) -> (i32, i32, i32) {
    %c0_i32 = arith.constant 0 : i32
    %c0_i32_0 = arith.constant 0 : i32
    %c0_i32_1 = arith.constant 0 : i32
    %c0_i32_2 = arith.constant 0 : i32
    return %c0_i32, %c0_i32_0, %c0_i32_1 : i32, i32, i32
  }
  func.func @transform_2(%arg0: i32) -> (i32, i32) {
    %c0_i32 = arith.constant 0 : i32
    %c0_i32_0 = arith.constant 0 : i32
    %c0_i32_1 = arith.constant 0 : i32
    return %c0_i32, %c0_i32_0 : i32, i32
  }
  func.func @transform_3(%arg0: i32) -> (i32, i32, i32, i32) {
    %c0_i32 = arith.constant 0 : i32
    %c0_i32_0 = arith.constant 0 : i32
    %c0_i32_1 = arith.constant 0 : i32
    %c0_i32_2 = arith.constant 0 : i32
    return %arg0, %c0_i32, %c0_i32_0, %c0_i32_1 : i32, i32, i32, i32
  }
}

module attributes {stable_mosaic.version = 11 : i64} {
  func.func @_dwconv3x3_kernel(%arg0: i32, %arg1: memref<1x4x4x32xf32, #tpu.memory_space<vmem>>, %arg2: memref<3x3x32xf32, #tpu.memory_space<vmem>>, %arg3: memref<1x32xf32, #tpu.memory_space<vmem>>, %arg4: memref<1x4x4x32xf32, #tpu.memory_space<vmem>>, %arg5: memref<6x6x32xf32, #tpu.memory_space<vmem>>) attributes {dimension_semantics = [#tpu.dimension_semantics<parallel>], iteration_bounds = array<i64: 2>, scalar_prefetch = 0 : i64, scratch_operands = 1 : i64, tpu.core_type = #tpu.core_type<tc>, window_params = [{transform_indices = @transform_0, window_bounds = array<i64: 1, 4, 4, 32>}, {pipeline_mode = #tpu.pipeline_mode<synchronous>, transform_indices = @transform_1, window_bounds = array<i64: 3, 3, 32>}, {pipeline_mode = #tpu.pipeline_mode<synchronous>, transform_indices = @transform_2, window_bounds = array<i64: 1, 32>}, {transform_indices = @transform_3, window_bounds = array<i64: 1, 4, 4, 32>}]} {
    %c0 = arith.constant 0 : index
    %c0_0 = arith.constant 0 : index
    %c0_1 = arith.constant 0 : index
    %c0_2 = arith.constant 0 : index
    %0 = vector.load %arg1[%c0, %c0_0, %c0_1, %c0_2] : memref<1x4x4x32xf32, #tpu.memory_space<vmem>>, vector<1x4x4x32xf32>
    %1 = vector.shape_cast %0 : vector<1x4x4x32xf32> to vector<4x4x32xf32>
    %cst = arith.constant 0.000000e+00 : f32
    %2 = vector.broadcast %cst : f32 to vector<6x6x32xf32>
    %c0_3 = arith.constant 0 : index
    %c0_4 = arith.constant 0 : index
    %c0_5 = arith.constant 0 : index
    %3 = vector.load %arg5[%c0_3, %c0_4, %c0_5] : memref<6x6x32xf32, #tpu.memory_space<vmem>>, vector<6x6x32xf32>
    tpu.vector_store %arg5[%c0_3, %c0_4, %c0_5], %2 {strides = array<i32>} : memref<6x6x32xf32, #tpu.memory_space<vmem>>, vector<6x6x32xf32>,
    %c1 = arith.constant 1 : index
    %c1_6 = arith.constant 1 : index
    %c0_7 = arith.constant 0 : index
    %4 = vector.load %arg5[%c1, %c1_6, %c0_7] : memref<6x6x32xf32, #tpu.memory_space<vmem>>, vector<4x4x32xf32>
    tpu.vector_store %arg5[%c1, %c1_6, %c0_7], %1 {strides = array<i32>} : memref<6x6x32xf32, #tpu.memory_space<vmem>>, vector<4x4x32xf32>,
    %c0_8 = arith.constant 0 : index
    %c0_9 = arith.constant 0 : index
    %c0_10 = arith.constant 0 : index
    %5 = vector.load %arg2[%c0_8, %c0_9, %c0_10] : memref<3x3x32xf32, #tpu.memory_space<vmem>>, vector<3x3x32xf32>
    %cst_11 = arith.constant 0.000000e+00 : f32
    %6 = vector.broadcast %cst_11 : f32 to vector<4x4x32xf32>
    %c0_12 = arith.constant 0 : index
    %c0_13 = arith.constant 0 : index
    %c0_14 = arith.constant 0 : index
    %7 = vector.load %arg5[%c0_12, %c0_13, %c0_14] : memref<6x6x32xf32, #tpu.memory_space<vmem>>, vector<4x4x32xf32>
    %8 = vector.extract_strided_slice %5 {offsets = [0, 0, 0], sizes = [1, 1, 32], strides = [1, 1, 1]} : vector<3x3x32xf32> to vector<1x1x32xf32>
    %9 = vector.broadcast %8 : vector<1x1x32xf32> to vector<4x4x32xf32>
    %10 = arith.mulf %7, %9 : vector<4x4x32xf32>
    %11 = arith.addf %6, %10 : vector<4x4x32xf32>
    %c0_15 = arith.constant 0 : index
    %c1_16 = arith.constant 1 : index
    %c0_17 = arith.constant 0 : index
    %12 = vector.load %arg5[%c0_15, %c1_16, %c0_17] : memref<6x6x32xf32, #tpu.memory_space<vmem>>, vector<4x4x32xf32>
    %13 = vector.extract_strided_slice %5 {offsets = [0, 1, 0], sizes = [1, 1, 32], strides = [1, 1, 1]} : vector<3x3x32xf32> to vector<1x1x32xf32>
    %14 = vector.broadcast %13 : vector<1x1x32xf32> to vector<4x4x32xf32>
    %15 = arith.mulf %12, %14 : vector<4x4x32xf32>
    %16 = arith.addf %11, %15 : vector<4x4x32xf32>
    %c0_18 = arith.constant 0 : index
    %c2 = arith.constant 2 : index
    %c0_19 = arith.constant 0 : index
    %17 = vector.load %arg5[%c0_18, %c2, %c0_19] : memref<6x6x32xf32, #tpu.memory_space<vmem>>, vector<4x4x32xf32>
    %18 = vector.extract_strided_slice %5 {offsets = [0, 2, 0], sizes = [1, 1, 32], strides = [1, 1, 1]} : vector<3x3x32xf32> to vector<1x1x32xf32>
    %19 = vector.broadcast %18 : vector<1x1x32xf32> to vector<4x4x32xf32>
    %20 = arith.mulf %17, %19 : vector<4x4x32xf32>
    %21 = arith.addf %16, %20 : vector<4x4x32xf32>
    %c1_20 = arith.constant 1 : index
    %c0_21 = arith.constant 0 : index
    %c0_22 = arith.constant 0 : index
    %22 = vector.load %arg5[%c1_20, %c0_21, %c0_22] : memref<6x6x32xf32, #tpu.memory_space<vmem>>, vector<4x4x32xf32>
    %23 = vector.extract_strided_slice %5 {offsets = [1, 0, 0], sizes = [1, 1, 32], strides = [1, 1, 1]} : vector<3x3x32xf32> to vector<1x1x32xf32>
    %24 = vector.broadcast %23 : vector<1x1x32xf32> to vector<4x4x32xf32>
    %25 = arith.mulf %22, %24 : vector<4x4x32xf32>
    %26 = arith.addf %21, %25 : vector<4x4x32xf32>
    %c1_23 = arith.constant 1 : index
    %c1_24 = arith.constant 1 : index
    %c0_25 = arith.constant 0 : index
    %27 = vector.load %arg5[%c1_23, %c1_24, %c0_25] : memref<6x6x32xf32, #tpu.memory_space<vmem>>, vector<4x4x32xf32>
    %28 = vector.extract_strided_slice %5 {offsets = [1, 1, 0], sizes = [1, 1, 32], strides = [1, 1, 1]} : vector<3x3x32xf32> to vector<1x1x32xf32>
    %29 = vector.broadcast %28 : vector<1x1x32xf32> to vector<4x4x32xf32>
    %30 = arith.mulf %27, %29 : vector<4x4x32xf32>
    %31 = arith.addf %26, %30 : vector<4x4x32xf32>
    %c1_26 = arith.constant 1 : index
    %c2_27 = arith.constant 2 : index
    %c0_28 = arith.constant 0 : index
    %32 = vector.load %arg5[%c1_26, %c2_27, %c0_28] : memref<6x6x32xf32, #tpu.memory_space<vmem>>, vector<4x4x32xf32>
    %33 = vector.extract_strided_slice %5 {offsets = [1, 2, 0], sizes = [1, 1, 32], strides = [1, 1, 1]} : vector<3x3x32xf32> to vector<1x1x32xf32>
    %34 = vector.broadcast %33 : vector<1x1x32xf32> to vector<4x4x32xf32>
    %35 = arith.mulf %32, %34 : vector<4x4x32xf32>
    %36 = arith.addf %31, %35 : vector<4x4x32xf32>
    %c2_29 = arith.constant 2 : index
    %c0_30 = arith.constant 0 : index
    %c0_31 = arith.constant 0 : index
    %37 = vector.load %arg5[%c2_29, %c0_30, %c0_31] : memref<6x6x32xf32, #tpu.memory_space<vmem>>, vector<4x4x32xf32>
    %38 = vector.extract_strided_slice %5 {offsets = [2, 0, 0], sizes = [1, 1, 32], strides = [1, 1, 1]} : vector<3x3x32xf32> to vector<1x1x32xf32>
    %39 = vector.broadcast %38 : vector<1x1x32xf32> to vector<4x4x32xf32>
    %40 = arith.mulf %37, %39 : vector<4x4x32xf32>
    %41 = arith.addf %36, %40 : vector<4x4x32xf32>
    %c2_32 = arith.constant 2 : index
    %c1_33 = arith.constant 1 : index
    %c0_34 = arith.constant 0 : index
    %42 = vector.load %arg5[%c2_32, %c1_33, %c0_34] : memref<6x6x32xf32, #tpu.memory_space<vmem>>, vector<4x4x32xf32>
    %43 = vector.extract_strided_slice %5 {offsets = [2, 1, 0], sizes = [1, 1, 32], strides = [1, 1, 1]} : vector<3x3x32xf32> to vector<1x1x32xf32>
    %44 = vector.broadcast %43 : vector<1x1x32xf32> to vector<4x4x32xf32>
    %45 = arith.mulf %42, %44 : vector<4x4x32xf32>
    %46 = arith.addf %41, %45 : vector<4x4x32xf32>
    %c2_35 = arith.constant 2 : index
    %c2_36 = arith.constant 2 : index
    %c0_37 = arith.constant 0 : index
    %47 = vector.load %arg5[%c2_35, %c2_36, %c0_37] : memref<6x6x32xf32, #tpu.memory_space<vmem>>, vector<4x4x32xf32>
    %48 = vector.extract_strided_slice %5 {offsets = [2, 2, 0], sizes = [1, 1, 32], strides = [1, 1, 1]} : vector<3x3x32xf32> to vector<1x1x32xf32>
    %49 = vector.broadcast %48 : vector<1x1x32xf32> to vector<4x4x32xf32>
    %50 = arith.mulf %47, %49 : vector<4x4x32xf32>
    %51 = arith.addf %46, %50 : vector<4x4x32xf32>
    %c0_38 = arith.constant 0 : index
    %c0_39 = arith.constant 0 : index
    %52 = vector.load %arg3[%c0_38, %c0_39] : memref<1x32xf32, #tpu.memory_space<vmem>>, vector<1x32xf32>
    %53 = vector.shape_cast %52 : vector<1x32xf32> to vector<1x1x32xf32>
    %54 = vector.broadcast %53 : vector<1x1x32xf32> to vector<4x4x32xf32>
    %55 = arith.addf %51, %54 : vector<4x4x32xf32>
    %56 = arith.addf %55, %1 : vector<4x4x32xf32>
    %c0_40 = arith.constant 0 : index
    %c0_41 = arith.constant 0 : index
    %c0_42 = arith.constant 0 : index
    %c0_43 = arith.constant 0 : index
    %57 = vector.load %arg4[%c0_40, %c0_41, %c0_42, %c0_43] : memref<1x4x4x32xf32, #tpu.memory_space<vmem>>, vector<1x4x4x32xf32>
    %58 = vector.shape_cast %57 : vector<1x4x4x32xf32> to vector<4x4x32xf32>
    %59 = vector.shape_cast %56 : vector<4x4x32xf32> to vector<1x4x4x32xf32>
    tpu.vector_store %arg4[%c0_40, %c0_41, %c0_42, %c0_43], %59 {strides = array<i32>} : memref<1x4x4x32xf32, #tpu.memory_space<vmem>>, vector<1x4x4x32xf32>,
    return
  }
  func.func @transform_0(%arg0: i32) -> (i32, i32, i32, i32) {
    %c0_i32 = arith.constant 0 : i32
    %c0_i32_0 = arith.constant 0 : i32
    %c0_i32_1 = arith.constant 0 : i32
    %c0_i32_2 = arith.constant 0 : i32
    return %arg0, %c0_i32, %c0_i32_0, %c0_i32_1 : i32, i32, i32, i32
  }
  func.func @transform_1(%arg0: i32) -> (i32, i32, i32) {
    %c0_i32 = arith.constant 0 : i32
    %c0_i32_0 = arith.constant 0 : i32
    %c0_i32_1 = arith.constant 0 : i32
    %c0_i32_2 = arith.constant 0 : i32
    return %c0_i32, %c0_i32_0, %c0_i32_1 : i32, i32, i32
  }
  func.func @transform_2(%arg0: i32) -> (i32, i32) {
    %c0_i32 = arith.constant 0 : i32
    %c0_i32_0 = arith.constant 0 : i32
    %c0_i32_1 = arith.constant 0 : i32
    return %c0_i32, %c0_i32_0 : i32, i32
  }
  func.func @transform_3(%arg0: i32) -> (i32, i32, i32, i32) {
    %c0_i32 = arith.constant 0 : i32
    %c0_i32_0 = arith.constant 0 : i32
    %c0_i32_1 = arith.constant 0 : i32
    %c0_i32_2 = arith.constant 0 : i32
    return %arg0, %c0_i32, %c0_i32_0, %c0_i32_1 : i32, i32, i32, i32
  }
}

module attributes {stable_mosaic.version = 11 : i64} {
  func.func @_attn_core_kernel(%arg0: i32, %arg1: memref<1x16x64xbf16, #tpu.memory_space<vmem>>, %arg2: memref<1x16x32xbf16, #tpu.memory_space<vmem>>, %arg3: memref<1x16x64xbf16, #tpu.memory_space<vmem>>, %arg4: memref<1x16x32xf32, #tpu.memory_space<vmem>>, %arg5: memref<64x64xbf16, #tpu.memory_space<vmem>>, %arg6: memref<64x32xbf16, #tpu.memory_space<vmem>>, %arg7: memref<1x32xf32, #tpu.memory_space<vmem>>, %arg8: memref<1x16x32xf32, #tpu.memory_space<vmem>>, %arg9: memref<1x16x32xf32, #tpu.memory_space<vmem>>) attributes {dimension_semantics = [#tpu.dimension_semantics<parallel>], iteration_bounds = array<i64: 2>, scalar_prefetch = 0 : i64, scratch_operands = 0 : i64, tpu.core_type = #tpu.core_type<tc>, window_params = [{transform_indices = @transform_0, window_bounds = array<i64: 1, 16, 64>}, {transform_indices = @transform_1, window_bounds = array<i64: 1, 16, 32>}, {transform_indices = @transform_2, window_bounds = array<i64: 1, 16, 64>}, {transform_indices = @transform_3, window_bounds = array<i64: 1, 16, 32>}, {pipeline_mode = #tpu.pipeline_mode<synchronous>, transform_indices = @transform_4, window_bounds = array<i64: 64, 64>}, {pipeline_mode = #tpu.pipeline_mode<synchronous>, transform_indices = @transform_5, window_bounds = array<i64: 64, 32>}, {pipeline_mode = #tpu.pipeline_mode<synchronous>, transform_indices = @transform_6, window_bounds = array<i64: 1, 32>}, {transform_indices = @transform_7, window_bounds = array<i64: 1, 16, 32>}, {transform_indices = @transform_8, window_bounds = array<i64: 1, 16, 32>}]} {
    %c0 = arith.constant 0 : index
    %c0_0 = arith.constant 0 : index
    %c0_1 = arith.constant 0 : index
    %0 = vector.load %arg1[%c0, %c0_0, %c0_1] : memref<1x16x64xbf16, #tpu.memory_space<vmem>>, vector<1x16x64xbf16>
    %1 = vector.shape_cast %0 : vector<1x16x64xbf16> to vector<16x64xbf16>
    %2 = arith.extf %1 : vector<16x64xbf16> to vector<16x64xf32>
    %3 = vector.extract_strided_slice %2 {offsets = [0, 0], sizes = [16, 32], strides = [1, 1]} : vector<16x64xf32> to vector<16x32xf32>
    %4 = vector.extract_strided_slice %2 {offsets = [0, 32], sizes = [16, 32], strides = [1, 1]} : vector<16x64xf32> to vector<16x32xf32>
    %5 = arith.truncf %4 : vector<16x32xf32> to vector<16x32xbf16>
    %6 = vector.extract_strided_slice %3 {offsets = [0, 0], sizes = [16, 8], strides = [1, 1]} : vector<16x32xf32> to vector<16x8xf32>
    %cst = arith.constant dense<0xFF800000> : vector<16xf32>
    %7 = vector.multi_reduction <maximumf>, %6, %cst [1] : vector<16x8xf32> to vector<16xf32>
    %8 = vector.shape_cast %7 : vector<16xf32> to vector<16x1xf32>
    %9 = vector.broadcast %8 : vector<16x1xf32> to vector<16x8xf32>
    %10 = arith.subf %6, %9 : vector<16x8xf32>
    %11 = math.exp %10 : vector<16x8xf32>
    %cst_2 = arith.constant dense<0.000000e+00> : vector<16xf32>
    %12 = vector.multi_reduction <add>, %11, %cst_2 [1] : vector<16x8xf32> to vector<16xf32>
    %13 = vector.shape_cast %12 : vector<16xf32> to vector<16x1xf32>
    %14 = tpu.reciprocal %13 {approx = true} : vector<16x1xf32> -> vector<16x1xf32>
    %15 = vector.broadcast %14 : vector<16x1xf32> to vector<16x8xf32>
    %16 = arith.mulf %11, %15 : vector<16x8xf32>
    %17 = vector.extract_strided_slice %3 {offsets = [0, 8], sizes = [16, 8], strides = [1, 1]} : vector<16x32xf32> to vector<16x8xf32>
    %cst_3 = arith.constant dense<0xFF800000> : vector<16xf32>
    %18 = vector.multi_reduction <maximumf>, %17, %cst_3 [1] : vector<16x8xf32> to vector<16xf32>
    %19 = vector.shape_cast %18 : vector<16xf32> to vector<16x1xf32>
    %20 = vector.broadcast %19 : vector<16x1xf32> to vector<16x8xf32>
    %21 = arith.subf %17, %20 : vector<16x8xf32>
    %22 = math.exp %21 : vector<16x8xf32>
    %cst_4 = arith.constant dense<0.000000e+00> : vector<16xf32>
    %23 = vector.multi_reduction <add>, %22, %cst_4 [1] : vector<16x8xf32> to vector<16xf32>
    %24 = vector.shape_cast %23 : vector<16xf32> to vector<16x1xf32>
    %25 = tpu.reciprocal %24 {approx = true} : vector<16x1xf32> -> vector<16x1xf32>
    %26 = vector.broadcast %25 : vector<16x1xf32> to vector<16x8xf32>
    %27 = arith.mulf %22, %26 : vector<16x8xf32>
    %28 = vector.extract_strided_slice %3 {offsets = [0, 16], sizes = [16, 8], strides = [1, 1]} : vector<16x32xf32> to vector<16x8xf32>
    %cst_5 = arith.constant dense<0xFF800000> : vector<16xf32>
    %29 = vector.multi_reduction <maximumf>, %28, %cst_5 [1] : vector<16x8xf32> to vector<16xf32>
    %30 = vector.shape_cast %29 : vector<16xf32> to vector<16x1xf32>
    %31 = vector.broadcast %30 : vector<16x1xf32> to vector<16x8xf32>
    %32 = arith.subf %28, %31 : vector<16x8xf32>
    %33 = math.exp %32 : vector<16x8xf32>
    %cst_6 = arith.constant dense<0.000000e+00> : vector<16xf32>
    %34 = vector.multi_reduction <add>, %33, %cst_6 [1] : vector<16x8xf32> to vector<16xf32>
    %35 = vector.shape_cast %34 : vector<16xf32> to vector<16x1xf32>
    %36 = tpu.reciprocal %35 {approx = true} : vector<16x1xf32> -> vector<16x1xf32>
    %37 = vector.broadcast %36 : vector<16x1xf32> to vector<16x8xf32>
    %38 = arith.mulf %33, %37 : vector<16x8xf32>
    %39 = vector.extract_strided_slice %3 {offsets = [0, 24], sizes = [16, 8], strides = [1, 1]} : vector<16x32xf32> to vector<16x8xf32>
    %cst_7 = arith.constant dense<0xFF800000> : vector<16xf32>
    %40 = vector.multi_reduction <maximumf>, %39, %cst_7 [1] : vector<16x8xf32> to vector<16xf32>
    %41 = vector.shape_cast %40 : vector<16xf32> to vector<16x1xf32>
    %42 = vector.broadcast %41 : vector<16x1xf32> to vector<16x8xf32>
    %43 = arith.subf %39, %42 : vector<16x8xf32>
    %44 = math.exp %43 : vector<16x8xf32>
    %cst_8 = arith.constant dense<0.000000e+00> : vector<16xf32>
    %45 = vector.multi_reduction <add>, %44, %cst_8 [1] : vector<16x8xf32> to vector<16xf32>
    %46 = vector.shape_cast %45 : vector<16xf32> to vector<16x1xf32>
    %47 = tpu.reciprocal %46 {approx = true} : vector<16x1xf32> -> vector<16x1xf32>
    %48 = vector.broadcast %47 : vector<16x1xf32> to vector<16x8xf32>
    %49 = arith.mulf %44, %48 : vector<16x8xf32>
    %50 = tpu.concatenate %16, %27, %38, %49 in 1 : vector<16x8xf32>, vector<16x8xf32>, vector<16x8xf32>, vector<16x8xf32> -> vector<16x32xf32>
    %51 = arith.truncf %50 : vector<16x32xf32> to vector<16x32xbf16>
    %cst_9 = arith.constant dense<0.000000e+00> : vector<32x32xf32>
    %52 = tpu.matmul %51, %5, %cst_9 {dimension_numbers = #tpu.dot_dimension_numbers<[0], [0], [1], [1], [0, 1, 1, 1], [], []>} : vector<16x32xbf16>, vector<16x32xbf16>, vector<32x32xf32> -> vector<32x32xf32>
    %53 = vector.extract_strided_slice %52 {offsets = [0, 0], sizes = [8, 8], strides = [1, 1]} : vector<32x32xf32> to vector<8x8xf32>
    %54 = vector.extract_strided_slice %52 {offsets = [8, 8], sizes = [8, 8], strides = [1, 1]} : vector<32x32xf32> to vector<8x8xf32>
    %55 = vector.extract_strided_slice %52 {offsets = [16, 16], sizes = [8, 8], strides = [1, 1]} : vector<32x32xf32> to vector<8x8xf32>
    %56 = vector.extract_strided_slice %52 {offsets = [24, 24], sizes = [8, 8], strides = [1, 1]} : vector<32x32xf32> to vector<8x8xf32>
    %57 = tpu.concatenate %53, %54, %55, %56 in 1 : vector<8x8xf32>, vector<8x8xf32>, vector<8x8xf32>, vector<8x8xf32> -> vector<8x32xf32>
    %58 = vector.extract_strided_slice %57 {offsets = [0, 4], sizes = [8, 28], strides = [1, 1]} : vector<8x32xf32> to vector<8x28xf32>
    %59 = vector.extract_strided_slice %57 {offsets = [0, 0], sizes = [8, 4], strides = [1, 1]} : vector<8x32xf32> to vector<8x4xf32>
    %60 = tpu.concatenate %57, %58, %59 in 1 : vector<8x32xf32>, vector<8x28xf32>, vector<8x4xf32> -> vector<8x64xf32>
    %61 = tpu.concatenate %60, %60, %60, %60, %60, %60, %60, %60 in 0 : vector<8x64xf32>, vector<8x64xf32>, vector<8x64xf32>, vector<8x64xf32>, vector<8x64xf32>, vector<8x64xf32>, vector<8x64xf32>, vector<8x64xf32> -> vector<64x64xf32>
    %62 = arith.truncf %61 : vector<64x64xf32> to vector<64x64xbf16>
    %c0_10 = arith.constant 0 : index
    %c0_11 = arith.constant 0 : index
    %63 = vector.load %arg5[%c0_10, %c0_11] : memref<64x64xbf16, #tpu.memory_space<vmem>>, vector<64x64xbf16>
    %64 = arith.mulf %62, %63 : vector<64x64xbf16>
    %c0_12 = arith.constant 0 : index
    %c0_13 = arith.constant 0 : index
    %c0_14 = arith.constant 0 : index
    %65 = vector.load %arg2[%c0_12, %c0_13, %c0_14] : memref<1x16x32xbf16, #tpu.memory_space<vmem>>, vector<1x16x32xbf16>
    %66 = vector.shape_cast %65 : vector<1x16x32xbf16> to vector<16x32xbf16>
    %67 = arith.extf %66 : vector<16x32xbf16> to vector<16x32xf32>
    %68 = vector.extract_strided_slice %67 {offsets = [0, 4], sizes = [16, 28], strides = [1, 1]} : vector<16x32xf32> to vector<16x28xf32>
    %69 = vector.extract_strided_slice %67 {offsets = [0, 0], sizes = [16, 4], strides = [1, 1]} : vector<16x32xf32> to vector<16x4xf32>
    %70 = tpu.concatenate %67, %68, %69 in 1 : vector<16x32xf32>, vector<16x28xf32>, vector<16x4xf32> -> vector<16x64xf32>
    %71 = arith.truncf %70 : vector<16x64xf32> to vector<16x64xbf16>
    %cst_15 = arith.constant dense<0.000000e+00> : vector<16x64xf32>
    %72 = tpu.matmul %71, %64, %cst_15 {dimension_numbers = #tpu.dot_dimension_numbers<[1], [0], [0], [1], [0, 0, 1, 1], [], []>} : vector<16x64xbf16>, vector<64x64xbf16>, vector<16x64xf32> -> vector<16x64xf32>
    %c0_16 = arith.constant 0 : index
    %c0_17 = arith.constant 0 : index
    %c0_18 = arith.constant 0 : index
    %73 = vector.load %arg3[%c0_16, %c0_17, %c0_18] : memref<1x16x64xbf16, #tpu.memory_space<vmem>>, vector<1x16x64xbf16>
    %74 = vector.shape_cast %73 : vector<1x16x64xbf16> to vector<16x64xbf16>
    %75 = arith.extf %74 : vector<16x64xbf16> to vector<16x64xf32>
    %76 = arith.addf %72, %75 : vector<16x64xf32>
    %77 = arith.truncf %76 : vector<16x64xf32> to vector<16x64xbf16>
    %c0_19 = arith.constant 0 : index
    %c0_20 = arith.constant 0 : index
    %78 = vector.load %arg6[%c0_19, %c0_20] : memref<64x32xbf16, #tpu.memory_space<vmem>>, vector<64x32xbf16>
    %cst_21 = arith.constant dense<0.000000e+00> : vector<16x32xf32>
    %79 = tpu.matmul %77, %78, %cst_21 {dimension_numbers = #tpu.dot_dimension_numbers<[1], [0], [0], [1], [0, 0, 1, 1], [], []>} : vector<16x64xbf16>, vector<64x32xbf16>, vector<16x32xf32> -> vector<16x32xf32>
    %c0_22 = arith.constant 0 : index
    %c0_23 = arith.constant 0 : index
    %80 = vector.load %arg7[%c0_22, %c0_23] : memref<1x32xf32, #tpu.memory_space<vmem>>, vector<1x32xf32>
    %81 = vector.broadcast %80 : vector<1x32xf32> to vector<16x32xf32>
    %82 = arith.addf %79, %81 : vector<16x32xf32>
    %c0_24 = arith.constant 0 : index
    %c0_25 = arith.constant 0 : index
    %c0_26 = arith.constant 0 : index
    %83 = vector.load %arg8[%c0_24, %c0_25, %c0_26] : memref<1x16x32xf32, #tpu.memory_space<vmem>>, vector<1x16x32xf32>
    %84 = vector.shape_cast %83 : vector<1x16x32xf32> to vector<16x32xf32>
    %85 = vector.shape_cast %82 : vector<16x32xf32> to vector<1x16x32xf32>
    tpu.vector_store %arg8[%c0_24, %c0_25, %c0_26], %85 {strides = array<i32>} : memref<1x16x32xf32, #tpu.memory_space<vmem>>, vector<1x16x32xf32>,
    %c0_27 = arith.constant 0 : index
    %c0_28 = arith.constant 0 : index
    %c0_29 = arith.constant 0 : index
    %86 = vector.load %arg4[%c0_27, %c0_28, %c0_29] : memref<1x16x32xf32, #tpu.memory_space<vmem>>, vector<1x16x32xf32>
    %87 = vector.shape_cast %86 : vector<1x16x32xf32> to vector<16x32xf32>
    %88 = arith.addf %87, %82 : vector<16x32xf32>
    %c0_30 = arith.constant 0 : index
    %c0_31 = arith.constant 0 : index
    %c0_32 = arith.constant 0 : index
    %89 = vector.load %arg9[%c0_30, %c0_31, %c0_32] : memref<1x16x32xf32, #tpu.memory_space<vmem>>, vector<1x16x32xf32>
    %90 = vector.shape_cast %89 : vector<1x16x32xf32> to vector<16x32xf32>
    %91 = vector.shape_cast %88 : vector<16x32xf32> to vector<1x16x32xf32>
    tpu.vector_store %arg9[%c0_30, %c0_31, %c0_32], %91 {strides = array<i32>} : memref<1x16x32xf32, #tpu.memory_space<vmem>>, vector<1x16x32xf32>,
    return
  }
  func.func @transform_0(%arg0: i32) -> (i32, i32, i32) {
    %c0_i32 = arith.constant 0 : i32
    %c0_i32_0 = arith.constant 0 : i32
    %c0_i32_1 = arith.constant 0 : i32
    return %arg0, %c0_i32, %c0_i32_0 : i32, i32, i32
  }
  func.func @transform_1(%arg0: i32) -> (i32, i32, i32) {
    %c0_i32 = arith.constant 0 : i32
    %c0_i32_0 = arith.constant 0 : i32
    %c0_i32_1 = arith.constant 0 : i32
    return %arg0, %c0_i32, %c0_i32_0 : i32, i32, i32
  }
  func.func @transform_2(%arg0: i32) -> (i32, i32, i32) {
    %c0_i32 = arith.constant 0 : i32
    %c0_i32_0 = arith.constant 0 : i32
    %c0_i32_1 = arith.constant 0 : i32
    return %arg0, %c0_i32, %c0_i32_0 : i32, i32, i32
  }
  func.func @transform_3(%arg0: i32) -> (i32, i32, i32) {
    %c0_i32 = arith.constant 0 : i32
    %c0_i32_0 = arith.constant 0 : i32
    %c0_i32_1 = arith.constant 0 : i32
    return %arg0, %c0_i32, %c0_i32_0 : i32, i32, i32
  }
  func.func @transform_4(%arg0: i32) -> (i32, i32) {
    %c0_i32 = arith.constant 0 : i32
    %c0_i32_0 = arith.constant 0 : i32
    %c0_i32_1 = arith.constant 0 : i32
    return %c0_i32, %c0_i32_0 : i32, i32
  }
  func.func @transform_5(%arg0: i32) -> (i32, i32) {
    %c0_i32 = arith.constant 0 : i32
    %c0_i32_0 = arith.constant 0 : i32
    %c0_i32_1 = arith.constant 0 : i32
    return %c0_i32, %c0_i32_0 : i32, i32
  }
  func.func @transform_6(%arg0: i32) -> (i32, i32) {
    %c0_i32 = arith.constant 0 : i32
    %c0_i32_0 = arith.constant 0 : i32
    %c0_i32_1 = arith.constant 0 : i32
    return %c0_i32, %c0_i32_0 : i32, i32
  }
  func.func @transform_7(%arg0: i32) -> (i32, i32, i32) {
    %c0_i32 = arith.constant 0 : i32
    %c0_i32_0 = arith.constant 0 : i32
    %c0_i32_1 = arith.constant 0 : i32
    return %arg0, %c0_i32, %c0_i32_0 : i32, i32, i32
  }
  func.func @transform_8(%arg0: i32) -> (i32, i32, i32) {
    %c0_i32 = arith.constant 0 : i32
    %c0_i32_0 = arith.constant 0 : i32
    %c0_i32_1 = arith.constant 0 : i32
    return %arg0, %c0_i32, %c0_i32_0 : i32, i32, i32
  }
}

module attributes {stable_mosaic.version = 11 : i64} {
  func.func @_ln_matmul_kernel(%arg0: i32, %arg1: i32, %arg2: memref<32x32xf32, #tpu.memory_space<vmem>>, %arg3: memref<1x32xf32, #tpu.memory_space<vmem>>, %arg4: memref<1x32xf32, #tpu.memory_space<vmem>>, %arg5: memref<32x128xbf16, #tpu.memory_space<vmem>>, %arg6: memref<1x128xf32, #tpu.memory_space<vmem>>, %arg7: memref<32x128xbf16, #tpu.memory_space<vmem>>, %arg8: memref<32x32xbf16, #tpu.memory_space<vmem>>) attributes {dimension_semantics = [#tpu.dimension_semantics<parallel>, #tpu.dimension_semantics<arbitrary>], iteration_bounds = array<i64: 1, 1>, scalar_prefetch = 0 : i64, scratch_operands = 1 : i64, tpu.core_type = #tpu.core_type<tc>, window_params = [{transform_indices = @transform_0, window_bounds = array<i64: 32, 32>}, {pipeline_mode = #tpu.pipeline_mode<synchronous>, transform_indices = @transform_1, window_bounds = array<i64: 1, 32>}, {pipeline_mode = #tpu.pipeline_mode<synchronous>, transform_indices = @transform_2, window_bounds = array<i64: 1, 32>}, {transform_indices = @transform_3, window_bounds = array<i64: 32, 128>}, {transform_indices = @transform_4, window_bounds = array<i64: 1, 128>}, {transform_indices = @transform_5, window_bounds = array<i64: 32, 128>}]} {
    %c0_i32 = arith.constant 0 : i32
    %0 = arith.cmpi eq, %arg1, %c0_i32 : i32
    %1 = arith.extui %0 : i1 to i32
    %c0_i32_0 = arith.constant 0 : i32
    %2 = arith.cmpi ne, %1, %c0_i32_0 : i32
    scf.if %2 {
      %c0_23 = arith.constant 0 : index
      %c0_24 = arith.constant 0 : index
      %51 = vector.load %arg2[%c0_23, %c0_24] : memref<32x32xf32, #tpu.memory_space<vmem>>, vector<32x32xf32>
      %cst_25 = arith.constant dense<0.000000e+00> : vector<32xf32>
      %52 = vector.multi_reduction <add>, %51, %cst_25 [1] : vector<32x32xf32> to vector<32xf32>
      %53 = vector.shape_cast %52 : vector<32xf32> to vector<32x1xf32>
      %cst_26 = arith.constant 3.200000e+01 : f32
      %54 = vector.broadcast %cst_26 : f32 to vector<32x1xf32>
      %55 = arith.divf %53, %54 : vector<32x1xf32>
      %56 = vector.broadcast %55 : vector<32x1xf32> to vector<32x32xf32>
      %57 = arith.subf %51, %56 : vector<32x32xf32>
      %58 = arith.mulf %57, %57 : vector<32x32xf32>
      %cst_27 = arith.constant dense<0.000000e+00> : vector<32xf32>
      %59 = vector.multi_reduction <add>, %58, %cst_27 [1] : vector<32x32xf32> to vector<32xf32>
      %60 = vector.shape_cast %59 : vector<32xf32> to vector<32x1xf32>
      %cst_28 = arith.constant 3.200000e+01 : f32
      %61 = vector.broadcast %cst_28 : f32 to vector<32x1xf32>
      %62 = arith.divf %60, %61 : vector<32x1xf32>
      %cst_29 = arith.constant 9.99999974E-6 : f32
      %63 = vector.broadcast %cst_29 : f32 to vector<32x1xf32>
      %64 = arith.addf %62, %63 : vector<32x1xf32>
      %65 = math.rsqrt %64 : vector<32x1xf32>
      %66 = vector.broadcast %65 : vector<32x1xf32> to vector<32x32xf32>
      %67 = arith.mulf %57, %66 : vector<32x32xf32>
      %c0_30 = arith.constant 0 : index
      %c0_31 = arith.constant 0 : index
      %68 = vector.load %arg3[%c0_30, %c0_31] : memref<1x32xf32, #tpu.memory_space<vmem>>, vector<1x32xf32>
      %69 = vector.broadcast %68 : vector<1x32xf32> to vector<32x32xf32>
      %70 = arith.mulf %67, %69 : vector<32x32xf32>
      %c0_32 = arith.constant 0 : index
      %c0_33 = arith.constant 0 : index
      %71 = vector.load %arg4[%c0_32, %c0_33] : memref<1x32xf32, #tpu.memory_space<vmem>>, vector<1x32xf32>
      %72 = vector.broadcast %71 : vector<1x32xf32> to vector<32x32xf32>
      %73 = arith.addf %70, %72 : vector<32x32xf32>
      %74 = arith.truncf %73 : vector<32x32xf32> to vector<32x32xbf16>
      %c0_34 = arith.constant 0 : index
      %c0_35 = arith.constant 0 : index
      %75 = vector.load %arg8[%c0_34, %c0_35] : memref<32x32xbf16, #tpu.memory_space<vmem>>, vector<32x32xbf16>
      tpu.vector_store %arg8[%c0_34, %c0_35], %74 {strides = array<i32>} : memref<32x32xbf16, #tpu.memory_space<vmem>>, vector<32x32xbf16>,
    } else {
    }
    %c0 = arith.constant 0 : index
    %c0_1 = arith.constant 0 : index
    %3 = vector.load %arg8[%c0, %c0_1] : memref<32x32xbf16, #tpu.memory_space<vmem>>, vector<32x32xbf16>
    %c0_2 = arith.constant 0 : index
    %c0_3 = arith.constant 0 : index
    %4 = vector.load %arg5[%c0_2, %c0_3] : memref<32x128xbf16, #tpu.memory_space<vmem>>, vector<32x128xbf16>
    %cst = arith.constant dense<0.000000e+00> : vector<32x128xf32>
    %5 = tpu.matmul %3, %4, %cst {dimension_numbers = #tpu.dot_dimension_numbers<[1], [0], [0], [1], [0, 0, 1, 1], [], []>} : vector<32x32xbf16>, vector<32x128xbf16>, vector<32x128xf32> -> vector<32x128xf32>
    %c0_4 = arith.constant 0 : index
    %c0_5 = arith.constant 0 : index
    %6 = vector.load %arg6[%c0_4, %c0_5] : memref<1x128xf32, #tpu.memory_space<vmem>>, vector<1x128xf32>
    %7 = vector.broadcast %6 : vector<1x128xf32> to vector<32x128xf32>
    %8 = arith.addf %5, %7 : vector<32x128xf32>
    %cst_6 = arith.constant 0.707106769 : f32
    %9 = vector.broadcast %cst_6 : f32 to vector<32x128xf32>
    %10 = arith.mulf %8, %9 : vector<32x128xf32>
    %cst_7 = arith.constant 0.000000e+00 : f32
    %11 = vector.broadcast %cst_7 : f32 to vector<32x128xf32>
    %12 = arith.cmpf oge, %10, %11 : vector<32x128xf32>
    %cst_8 = arith.constant 1.000000e+00 : f32
    %cst_9 = arith.constant -1.000000e+00 : f32
    %13 = vector.broadcast %cst_8 : f32 to vector<32x128xf32>
    %14 = vector.broadcast %cst_9 : f32 to vector<32x128xf32>
    %15 = arith.select %12, %13, %14 : vector<32x128xi1>, vector<32x128xf32>
    %16 = math.absf %10 : vector<32x128xf32>
    %cst_10 = arith.constant 0.327591091 : f32
    %17 = vector.broadcast %cst_10 : f32 to vector<32x128xf32>
    %18 = arith.mulf %17, %16 : vector<32x128xf32>
    %cst_11 = arith.constant 1.000000e+00 : f32
    %19 = vector.broadcast %cst_11 : f32 to vector<32x128xf32>
    %20 = arith.addf %19, %18 : vector<32x128xf32>
    %21 = tpu.reciprocal %20 {approx = true} : vector<32x128xf32> -> vector<32x128xf32>
    %cst_12 = arith.constant 1.06140542 : f32
    %22 = vector.broadcast %cst_12 : f32 to vector<32x128xf32>
    %23 = arith.mulf %22, %21 : vector<32x128xf32>
    %cst_13 = arith.constant -1.45315206 : f32
    %24 = vector.broadcast %cst_13 : f32 to vector<32x128xf32>
    %25 = arith.addf %23, %24 : vector<32x128xf32>
    %26 = arith.mulf %25, %21 : vector<32x128xf32>
    %cst_14 = arith.constant 1.42141378 : f32
    %27 = vector.broadcast %cst_14 : f32 to vector<32x128xf32>
    %28 = arith.addf %26, %27 : vector<32x128xf32>
    %29 = arith.mulf %28, %21 : vector<32x128xf32>
    %cst_15 = arith.constant -0.284496725 : f32
    %30 = vector.broadcast %cst_15 : f32 to vector<32x128xf32>
    %31 = arith.addf %29, %30 : vector<32x128xf32>
    %32 = arith.mulf %31, %21 : vector<32x128xf32>
    %cst_16 = arith.constant 0.254829586 : f32
    %33 = vector.broadcast %cst_16 : f32 to vector<32x128xf32>
    %34 = arith.addf %32, %33 : vector<32x128xf32>
    %35 = arith.mulf %34, %21 : vector<32x128xf32>
    %cst_17 = arith.constant 0.000000e+00 : f32
    %36 = vector.broadcast %cst_17 : f32 to vector<32x128xf32>
    %37 = arith.subf %36, %16 : vector<32x128xf32>
    %38 = arith.mulf %37, %16 : vector<32x128xf32>
    %39 = math.exp %38 : vector<32x128xf32>
    %40 = arith.mulf %35, %39 : vector<32x128xf32>
    %cst_18 = arith.constant 1.000000e+00 : f32
    %41 = vector.broadcast %cst_18 : f32 to vector<32x128xf32>
    %42 = arith.subf %41, %40 : vector<32x128xf32>
    %43 = arith.mulf %15, %42 : vector<32x128xf32>
    %cst_19 = arith.constant 5.000000e-01 : f32
    %44 = vector.broadcast %cst_19 : f32 to vector<32x128xf32>
    %45 = arith.mulf %44, %8 : vector<32x128xf32>
    %cst_20 = arith.constant 1.000000e+00 : f32
    %46 = vector.broadcast %cst_20 : f32 to vector<32x128xf32>
    %47 = arith.addf %46, %43 : vector<32x128xf32>
    %48 = arith.mulf %45, %47 : vector<32x128xf32>
    %49 = arith.truncf %48 : vector<32x128xf32> to vector<32x128xbf16>
    %c0_21 = arith.constant 0 : index
    %c0_22 = arith.constant 0 : index
    %50 = vector.load %arg7[%c0_21, %c0_22] : memref<32x128xbf16, #tpu.memory_space<vmem>>, vector<32x128xbf16>
    tpu.vector_store %arg7[%c0_21, %c0_22], %49 {strides = array<i32>} : memref<32x128xbf16, #tpu.memory_space<vmem>>, vector<32x128xbf16>,
    return
  }
  func.func @transform_0(%arg0: i32, %arg1: i32) -> (i32, i32) {
    %c0_i32 = arith.constant 0 : i32
    %c0_i32_0 = arith.constant 0 : i32
    return %arg0, %c0_i32 : i32, i32
  }
  func.func @transform_1(%arg0: i32, %arg1: i32) -> (i32, i32) {
    %c0_i32 = arith.constant 0 : i32
    %c0_i32_0 = arith.constant 0 : i32
    %c0_i32_1 = arith.constant 0 : i32
    return %c0_i32, %c0_i32_0 : i32, i32
  }
  func.func @transform_2(%arg0: i32, %arg1: i32) -> (i32, i32) {
    %c0_i32 = arith.constant 0 : i32
    %c0_i32_0 = arith.constant 0 : i32
    %c0_i32_1 = arith.constant 0 : i32
    return %c0_i32, %c0_i32_0 : i32, i32
  }
  func.func @transform_3(%arg0: i32, %arg1: i32) -> (i32, i32) {
    %c0_i32 = arith.constant 0 : i32
    %c0_i32_0 = arith.constant 0 : i32
    return %c0_i32, %arg1 : i32, i32
  }
  func.func @transform_4(%arg0: i32, %arg1: i32) -> (i32, i32) {
    %c0_i32 = arith.constant 0 : i32
    %c0_i32_0 = arith.constant 0 : i32
    return %c0_i32, %arg1 : i32, i32
  }
  func.func @transform_5(%arg0: i32, %arg1: i32) -> (i32, i32) {
    %c0_i32 = arith.constant 0 : i32
    return %arg0, %arg1 : i32, i32
  }
}

module attributes {stable_mosaic.version = 11 : i64} {
  func.func @_matmul_bias_res_kernel(%arg0: i32, %arg1: i32, %arg2: i32, %arg3: memref<32x128xbf16, #tpu.memory_space<vmem>>, %arg4: memref<128x32xbf16, #tpu.memory_space<vmem>>, %arg5: memref<1x32xf32, #tpu.memory_space<vmem>>, %arg6: memref<32x32xf32, #tpu.memory_space<vmem>>, %arg7: memref<32x32xf32, #tpu.memory_space<vmem>>, %arg8: memref<32x32xf32, #tpu.memory_space<vmem>>) attributes {dimension_semantics = [#tpu.dimension_semantics<parallel>, #tpu.dimension_semantics<parallel>, #tpu.dimension_semantics<arbitrary>], iteration_bounds = array<i64: 1, 1, 1>, scalar_prefetch = 0 : i64, scratch_operands = 1 : i64, tpu.core_type = #tpu.core_type<tc>, window_params = [{transform_indices = @transform_0, window_bounds = array<i64: 32, 128>}, {transform_indices = @transform_1, window_bounds = array<i64: 128, 32>}, {transform_indices = @transform_2, window_bounds = array<i64: 1, 32>}, {transform_indices = @transform_3, window_bounds = array<i64: 32, 32>}, {transform_indices = @transform_4, window_bounds = array<i64: 32, 32>}]} {
    %c0_i32 = arith.constant 0 : i32
    %0 = arith.cmpi eq, %arg2, %c0_i32 : i32
    %1 = arith.extui %0 : i1 to i32
    %c0_i32_0 = arith.constant 0 : i32
    %2 = arith.cmpi ne, %1, %c0_i32_0 : i32
    scf.if %2 {
      %cst_10 = arith.constant 0.000000e+00 : f32
      %12 = vector.broadcast %cst_10 : f32 to vector<32x32xf32>
      %c0_11 = arith.constant 0 : index
      %c0_12 = arith.constant 0 : index
      %13 = vector.load %arg8[%c0_11, %c0_12] : memref<32x32xf32, #tpu.memory_space<vmem>>, vector<32x32xf32>
      tpu.vector_store %arg8[%c0_11, %c0_12], %12 {strides = array<i32>} : memref<32x32xf32, #tpu.memory_space<vmem>>, vector<32x32xf32>,
    } else {
    }
    %c0 = arith.constant 0 : index
    %c0_1 = arith.constant 0 : index
    %3 = vector.load %arg8[%c0, %c0_1] : memref<32x32xf32, #tpu.memory_space<vmem>>, vector<32x32xf32>
    %c0_2 = arith.constant 0 : index
    %c0_3 = arith.constant 0 : index
    %4 = vector.load %arg3[%c0_2, %c0_3] : memref<32x128xbf16, #tpu.memory_space<vmem>>, vector<32x128xbf16>
    %c0_4 = arith.constant 0 : index
    %c0_5 = arith.constant 0 : index
    %5 = vector.load %arg4[%c0_4, %c0_5] : memref<128x32xbf16, #tpu.memory_space<vmem>>, vector<128x32xbf16>
    %cst = arith.constant dense<0.000000e+00> : vector<32x32xf32>
    %6 = tpu.matmul %4, %5, %cst {dimension_numbers = #tpu.dot_dimension_numbers<[1], [0], [0], [1], [0, 0, 1, 1], [], []>} : vector<32x128xbf16>, vector<128x32xbf16>, vector<32x32xf32> -> vector<32x32xf32>
    %7 = arith.addf %3, %6 : vector<32x32xf32>
    %c0_6 = arith.constant 0 : index
    %c0_7 = arith.constant 0 : index
    %8 = vector.load %arg8[%c0_6, %c0_7] : memref<32x32xf32, #tpu.memory_space<vmem>>, vector<32x32xf32>
    tpu.vector_store %arg8[%c0_6, %c0_7], %7 {strides = array<i32>} : memref<32x32xf32, #tpu.memory_space<vmem>>, vector<32x32xf32>,
    %c0_i32_8 = arith.constant 0 : i32
    %9 = arith.cmpi eq, %arg2, %c0_i32_8 : i32
    %10 = arith.extui %9 : i1 to i32
    %c0_i32_9 = arith.constant 0 : i32
    %11 = arith.cmpi ne, %10, %c0_i32_9 : i32
    scf.if %11 {
      %c0_10 = arith.constant 0 : index
      %c0_11 = arith.constant 0 : index
      %12 = vector.load %arg8[%c0_10, %c0_11] : memref<32x32xf32, #tpu.memory_space<vmem>>, vector<32x32xf32>
      %c0_12 = arith.constant 0 : index
      %c0_13 = arith.constant 0 : index
      %13 = vector.load %arg5[%c0_12, %c0_13] : memref<1x32xf32, #tpu.memory_space<vmem>>, vector<1x32xf32>
      %14 = vector.broadcast %13 : vector<1x32xf32> to vector<32x32xf32>
      %15 = arith.addf %12, %14 : vector<32x32xf32>
      %c0_14 = arith.constant 0 : index
      %c0_15 = arith.constant 0 : index
      %16 = vector.load %arg6[%c0_14, %c0_15] : memref<32x32xf32, #tpu.memory_space<vmem>>, vector<32x32xf32>
      %17 = arith.addf %15, %16 : vector<32x32xf32>
      %c0_16 = arith.constant 0 : index
      %c0_17 = arith.constant 0 : index
      %18 = vector.load %arg7[%c0_16, %c0_17] : memref<32x32xf32, #tpu.memory_space<vmem>>, vector<32x32xf32>
      tpu.vector_store %arg7[%c0_16, %c0_17], %17 {strides = array<i32>} : memref<32x32xf32, #tpu.memory_space<vmem>>, vector<32x32xf32>,
    } else {
    }
    return
  }
  func.func @transform_0(%arg0: i32, %arg1: i32, %arg2: i32) -> (i32, i32) {
    %c0_i32 = arith.constant 0 : i32
    return %arg0, %arg2 : i32, i32
  }
  func.func @transform_1(%arg0: i32, %arg1: i32, %arg2: i32) -> (i32, i32) {
    %c0_i32 = arith.constant 0 : i32
    return %arg2, %arg1 : i32, i32
  }
  func.func @transform_2(%arg0: i32, %arg1: i32, %arg2: i32) -> (i32, i32) {
    %c0_i32 = arith.constant 0 : i32
    %c0_i32_0 = arith.constant 0 : i32
    return %c0_i32, %arg1 : i32, i32
  }
  func.func @transform_3(%arg0: i32, %arg1: i32, %arg2: i32) -> (i32, i32) {
    %c0_i32 = arith.constant 0 : i32
    return %arg0, %arg1 : i32, i32
  }
  func.func @transform_4(%arg0: i32, %arg1: i32, %arg2: i32) -> (i32, i32) {
    %c0_i32 = arith.constant 0 : i32
    return %arg0, %arg1 : i32, i32
  }
}

</mosaic_0001>

<llo_original>
// kernel: block_forward.8
$region0: #{block_forward.8}
  #allocation0 [shape = 'u32[]', space=smem, size = 0x4, offset = 0x4, fixed_abs, tag = 'smem constant byte address 0x4 - core index']
  #allocation1 [shape = 'u32[144,128]{1,0:T(1,128)}', space=vmem, size = 0x12000, scoped, tag = 'internal scratch']
  #allocation2 [shape = 'f32[6,6,64]{2,1,0:T(8,128)}', space=vmem, size = 0x6000, scoped, tag = 'scratch operand']
  %s0 = inlined_call_operand.vmem [shape: bf16[2,4,4,32], index: 0, kind: input, shape index: {}]
  %s1 = inlined_call_operand.vmem [shape: f32[3,3,64], index: 1, kind: input, shape index: {}]
  %s2 = inlined_call_operand.vmem [shape: f32[1,64], index: 2, kind: input, shape index: {}]
  %s3 = inlined_call_operand.vmem [shape: bf16[2,4,4,64], index: 3, kind: output, shape index: {}]
  %s4 = sld [smem:[#allocation0]]
  $region45: #{block_forward.8} parent=0
    _
  %s6 = ssub.s32 1, %s4
  %s7 = scalar_select 0, %s6, %s4
  loop: start=0, step=1, limit=4
  $region2: #{block_forward.8} parent=0 // loop_pre_header
    _
  $region3: #{block_forward.8} parent=0 // loop_header
    %s9 = sphi 0, %s13
    %p10 = scmp.ge.s32.totalorder %s9, 4
    %s19 = sphi 0, %s21
    %s22 = sphi 0, %s19
    %s23 = sphi 0, %s22
    %s39 = sphi 0, %s23
    %s43 = sphi 0, %s43
    %s45 = sphi 0, %s43
    %s46 = sphi 0, %s45
    %s60 = sphi 0, %s46
    %s64 = sphi 0, %s64
    %s66 = sphi 0, %s64
    %s67 = sphi 0, %s66
    %s81 = sphi 0, %s67
    %s87 = sphi 0, %s89
    %s90 = sphi 0, %s87
    %s91 = sphi 0, %s90
    %s107 = sphi 0, %s91
  $region4: #{block_forward.8} parent=0 // loop_header_branch
    %12 = sbr.rel (%p10) target = $region8
  $region5: #{block_forward.8} parent=0 // loop_body
    %s14 = ssub.s32 %s9, 1
    %s15 = ssub.s32 %s9, 2
    %s16 = sadd.s32 %s9, 1
    %s17 = ssub.s32 %s9, %s16
    %p18 = scmp.eq.s32.totalorder %s17, 0
    %s20 = sadd.s32 %s19, 1
    %s21 = scalar_select %p18, %s19, %s20
    %p24 = pneg %p18
    %p25 = scmp.eq.s32.totalorder %s9, 1
    %p26 = por %p24, %p25
    %p27 = scmp.ne.s32.totalorder %s19, %s22
    %p28 = scmp.eq.s32.totalorder %s9, 0
    %p29 = por %p27, %p28
    %p30 = scmp.ne.s32.totalorder %s19, %s22
    %p31 = scmp.eq.s32.totalorder %s14, 1
    %p32 = por %p30, %p31
    %p33 = scmp.ne.s32.totalorder %s22, %s23
    %p34 = scmp.eq.s32.totalorder %s14, 0
    %p35 = por %p33, %p34
    %p36 = scmp.ne.s32.totalorder %s22, %s23
    %p37 = scmp.eq.s32.totalorder %s15, 1
    %p38 = por %p36, %p37
    %p40 = scmp.ne.s32.totalorder %s23, %s39
    %p41 = scmp.eq.s32.totalorder %s15, 0
    %p42 = por %p40, %p41
    %s44 = sadd.s32 %s43, 1
    %p47 = scmp.eq.s32.totalorder %s9, 1
    %p48 = scmp.ne.s32.totalorder %s43, %s45
    %p49 = scmp.eq.s32.totalorder %s9, 0
    %p50 = por %p48, %p49
    %p51 = scmp.ne.s32.totalorder %s43, %s45
    %p52 = scmp.eq.s32.totalorder %s14, 1
    %p53 = por %p51, %p52
    %p54 = scmp.ne.s32.totalorder %s45, %s46
    %p55 = scmp.eq.s32.totalorder %s14, 0
    %p56 = por %p54, %p55
    %p57 = scmp.ne.s32.totalorder %s45, %s46
    %p58 = scmp.eq.s32.totalorder %s15, 1
    %p59 = por %p57, %p58
    %p61 = scmp.ne.s32.totalorder %s46, %s60
    %p62 = scmp.eq.s32.totalorder %s15, 0
    %p63 = por %p61, %p62
    %s65 = sadd.s32 %s64, 1
    %p68 = scmp.eq.s32.totalorder %s9, 1
    %p69 = scmp.ne.s32.totalorder %s64, %s66
    %p70 = scmp.eq.s32.totalorder %s9, 0
    %p71 = por %p69, %p70
    %p72 = scmp.ne.s32.totalorder %s64, %s66
    %p73 = scmp.eq.s32.totalorder %s14, 1
    %p74 = por %p72, %p73
    %p75 = scmp.ne.s32.totalorder %s66, %s67
    %p76 = scmp.eq.s32.totalorder %s14, 0
    %p77 = por %p75, %p76
    %p78 = scmp.ne.s32.totalorder %s66, %s67
    %p79 = scmp.eq.s32.totalorder %s15, 1
    %p80 = por %p78, %p79
    %p82 = scmp.ne.s32.totalorder %s67, %s81
    %p83 = scmp.eq.s32.totalorder %s15, 0
    %p84 = por %p82, %p83
    %s85 = ssub.s32 %s9, %s16
    %p86 = scmp.eq.s32.totalorder %s85, 0
    %s88 = sadd.s32 %s87, 1
    %s89 = scalar_select %p86, %s87, %s88
    %p92 = pneg %p86
    %p93 = scmp.eq.s32.totalorder %s9, 1
    %p94 = por %p92, %p93
    %p95 = scmp.ne.s32.totalorder %s87, %s90
    %p96 = scmp.eq.s32.totalorder %s9, 0
    %p97 = por %p95, %p96
    %p98 = scmp.ne.s32.totalorder %s87, %s90
    %p99 = scmp.eq.s32.totalorder %s14, 1
    %p100 = por %p98, %p99
    %p101 = scmp.ne.s32.totalorder %s90, %s91
    %p102 = scmp.eq.s32.totalorder %s14, 0
    %p103 = por %p101, %p102
    %p104 = scmp.ne.s32.totalorder %s90, %s91
    %p105 = scmp.eq.s32.totalorder %s15, 1
    %p106 = por %p104, %p105
    %p108 = scmp.ne.s32.totalorder %s91, %s107
    %p109 = scmp.eq.s32.totalorder %s15, 0
    %p110 = por %p108, %p109
    %p111 = scmp.le.s32.totalorder 1, %s9
    %p112 = scmp.lt.s32.totalorder %s9, 3
    %p113 = pnand %p111, %p112
    %p114 = pneg %p113
    // Predicated region
    $region9: #{block_forward.8} parent=5 // pred_check
      _
    $region10: #{block_forward.8} parent=5 // pred_check_branch
      %116 = sbr.rel (%p113) target = $region12
    $region11: #{block_forward.8} parent=5 // pred_region
      %s117 = ssub.s32 %s9, 1
      // Predicated region
      $region13: #{block_forward.8} parent=11 // pred_check
        %p118 = pneg %p56
      $region14: #{block_forward.8} parent=11 // pred_check_branch
        %120 = sbr.rel (%p118) target = $region16
      $region15: #{block_forward.8} parent=11 // pred_region
        _
      $region16: #{block_forward.8} parent=11 // pred_fallthru
        _
      // Predicated region
      $region17: #{block_forward.8} parent=11 // pred_check
        %p121 = pneg %p77
      $region18: #{block_forward.8} parent=11 // pred_check_branch
        %123 = sbr.rel (%p121) target = $region20
      $region19: #{block_forward.8} parent=11 // pred_region
        _
      $region20: #{block_forward.8} parent=11 // pred_fallthru
        _
    $region12: #{block_forward.8} parent=5 // pred_fallthru
      _
    %p124 = scmp.lt.s32.totalorder %s9, 2
    // Predicated region
    $region21: #{block_forward.8} parent=5 // pred_check
      %p125 = pneg %p124
    $region22: #{block_forward.8} parent=5 // pred_check_branch
      %127 = sbr.rel (%p125) target = $region24
    $region23: #{block_forward.8} parent=5 // pred_region
      // Predicated region
      $region25: #{block_forward.8} parent=23 // pred_check
        %p128 = pneg %p29
      $region26: #{block_forward.8} parent=23 // pred_check_branch
        %130 = sbr.rel (%p128) target = $region28
      $region27: #{block_forward.8} parent=23 // pred_region
        %p131 = scmp.lt.s32.totalorder %s9, 1
        %s132 = scalar_select %p131, %s9, 1
        %s133 = smul.addr %s132, 4
        %s134 = smul.addr %s133, 2
        %s135 = scalar_lea.vmem %s0, %s134
      $region28: #{block_forward.8} parent=23 // pred_fallthru
        _
    $region24: #{block_forward.8} parent=5 // pred_fallthru
      _
    %p136 = scmp.le.s32.totalorder 1, %s9
    %p137 = scmp.lt.s32.totalorder %s9, 3
    %p138 = pnand %p136, %p137
    %p139 = pneg %p138
    // Predicated region
    $region29: #{block_forward.8} parent=5 // pred_check
      _
    $region30: #{block_forward.8} parent=5 // pred_check_branch
      %141 = sbr.rel (%p138) target = $region32
    $region31: #{block_forward.8} parent=5 // pred_region
      %s142 = ssub.s32 %s9, 1
      %p143 = scmp.lt.s32.totalorder %s14, 1
      %s144 = scalar_select %p143, %s14, 1
      %s145 = smul.addr %s144, 4
      %s146 = smul.addr %s145, 2
      %s147 = scalar_lea.vmem %s0, %s146
      %p148 = pneg %p35
      %p149 = pneg %p32
      %p150 = pneg %p56
      %p151 = pneg %p53
      %p152 = pneg %p77
      %p153 = pneg %p74
      %p154 = pneg %p103
      %p155 = pneg %p100
      %p156 = scmp.lt.s32.totalorder %s14, 1
      %s157 = scalar_select %p156, %s14, 1
      %s158 = smul.addr %s157, 4
      %s159 = smul.addr %s158, 2
      %s160 = scalar_lea.vmem %s3, %s159
      %p161 = scmp.lt.s32.totalorder %s14, 1
      %s162 = scalar_select %p161, %s14, 1
      %s163 = smul.addr %s162, 4
      %s164 = smul.addr %s163, 2
      %s165 = scalar_lea.vmem %s0, %s164
      %p166 = scmp.lt.s32.totalorder %s14, 1
      %s167 = scalar_select %p166, %s14, 1
      %s168 = smul.addr %s167, 4
      %s169 = smul.addr %s168, 2
      %s170 = scalar_lea.vmem %s3, %s169
      %v171 = vld [vmem:[%s165] sm:$0x3]
      %v172 = vld [vmem:[%s165 + $0x2] sm:$0x3]
      %v173 = vld [vmem:[%s165 + $0x4] sm:$0x3]
      %v174 = vld [vmem:[%s165 + $0x6] sm:$0x3]
      %v175 = vunpack.c.l.bf16 %v171
      %v176 = vunpack.c.l.bf16 %v172
      %v177 = vunpack.c.l.bf16 %v173
      %v178 = vunpack.c.l.bf16 %v174
      %183 = vrot.lane.b32.xlu0 %v175, 28
      %v184 = vpop.permute.xlu0 %183
      %185 = vrot.lane.b32.xlu0 %v176, 28
      %v186 = vpop.permute.xlu0 %185
      %187 = vrot.lane.b32.xlu0 %v177, 28
      %v188 = vpop.permute.xlu0 %187
      %189 = vrot.lane.b32.xlu0 %v178, 28
      %v190 = vpop.permute.xlu0 %189
      %195 = vrot.lane.b32.xlu0 %v175, 60
      %v196 = vpop.permute.xlu0 %195
      %197 = vrot.lane.b32.xlu0 %v176, 60
      %v198 = vpop.permute.xlu0 %197
      %199 = vrot.lane.b32.xlu0 %v177, 60
      %v200 = vpop.permute.xlu0 %199
      %201 = vrot.lane.b32.xlu0 %v178, 60
      %v202 = vpop.permute.xlu0 %201
      %vm207 = vcmask 261120
      %v208 = vsel %vm207, %v175, %v184
      %v209 = vsel %vm207, %v176, %v186
      %v210 = vsel %vm207, %v177, %v188
      %v211 = vsel %vm207, %v178, %v190
      %vm212 = vcmask 490496
      %v213 = vsel %vm212, %v208, %v196
      %v214 = vsel %vm212, %v209, %v198
      %v215 = vsel %vm212, %v210, %v200
      %v216 = vsel %vm212, %v211, %v202
      %vm217 = vcmask 521216
      %218 = vst.msk [vmem:[#allocation2] sm:$0x3f] %vm217, 0.0
      %219 = vst.msk [vmem:[#allocation2 + $0x8] sm:$0x3f] %vm217, 0.0
      %220 = vst.msk [vmem:[#allocation2 + $0x10] sm:$0x3f] %vm217, 0.0
      %221 = vst.msk [vmem:[#allocation2 + $0x18] sm:$0x3f] %vm217, 0.0
      %222 = vst.msk [vmem:[#allocation2 + $0x20] sm:$0x3f] %vm217, 0.0
      %223 = vst.msk [vmem:[#allocation2 + $0x28] sm:$0x3f] %vm217, 0.0
      %s224 = scalar_lea.vmem [#allocation2], 8
      %vm225 = vcmask 519168
      %226 = vst.msk [vmem:[%s224 + $0x1] sm:$0xf] %vm225, %v213
      %227 = vst.msk [vmem:[%s224 + $0x9] sm:$0xf] %vm225, %v214
      %228 = vst.msk [vmem:[%s224 + $0x11] sm:$0xf] %vm225, %v215
      %229 = vst.msk [vmem:[%s224 + $0x19] sm:$0xf] %vm225, %v216
      %v230 = vld [vmem:[%s1] sm:$0x7]
      %v231 = vld [vmem:[%s1 + $0x4] sm:$0x7]
      %v232 = vld [vmem:[%s1 + $0x8] sm:$0x7]
      %v233 = vld [vmem:[#allocation2] sm:$0xf]
      %v234 = vld [vmem:[#allocation2 + $0x8] sm:$0xf]
      %v235 = vld [vmem:[#allocation2 + $0x10] sm:$0xf]
      %v236 = vld [vmem:[#allocation2 + $0x18] sm:$0xf]
      %v237 = vlaneseq
      %v238 = vshrl.u32 %v237, 7
      %v239 = vsub.s32 0, %v238
      %v240 = vrot.slane %v230, %v239
      %v241 = vmul.f32 %v233, %v240
      %v242 = vmul.f32 %v234, %v240
      %v243 = vmul.f32 %v235, %v240
      %v244 = vmul.f32 %v236, %v240
      %v245 = vadd.f32 %v241, 0.0
      %v246 = vadd.f32 %v242, 0.0
      %v247 = vadd.f32 %v243, 0.0
      %v248 = vadd.f32 %v244, 0.0
      %v249 = vld [vmem:[#allocation2 + $0x1] sm:$0xf]
      %v250 = vld [vmem:[#allocation2 + $0x9] sm:$0xf]
      %v251 = vld [vmem:[#allocation2 + $0x11] sm:$0xf]
      %v252 = vld [vmem:[#allocation2 + $0x19] sm:$0xf]
      %v253 = vlaneseq
      %v254 = vshrl.u32 %v253, 7
      %v255 = vsub.s32 1, %v254
      %v256 = vrot.slane %v230, %v255
      %v257 = vmul.f32 %v249, %v256
      %v258 = vmul.f32 %v250, %v256
      %v259 = vmul.f32 %v251, %v256
      %v260 = vmul.f32 %v252, %v256
      %v261 = vadd.f32 %v245, %v257
      %v262 = vadd.f32 %v246, %v258
      %v263 = vadd.f32 %v247, %v259
      %v264 = vadd.f32 %v248, %v260
      %v265 = vld [vmem:[#allocation2 + $0x2] sm:$0xf]
      %v266 = vld [vmem:[#allocation2 + $0xa] sm:$0xf]
      %v267 = vld [vmem:[#allocation2 + $0x12] sm:$0xf]
      %v268 = vld [vmem:[#allocation2 + $0x1a] sm:$0xf]
      %v269 = vlaneseq
      %v270 = vshrl.u32 %v269, 7
      %v271 = vsub.s32 2, %v270
      %v272 = vrot.slane %v230, %v271
      %v273 = vmul.f32 %v265, %v272
      %v274 = vmul.f32 %v266, %v272
      %v275 = vmul.f32 %v267, %v272
      %v276 = vmul.f32 %v268, %v272
      %v277 = vadd.f32 %v261, %v273
      %v278 = vadd.f32 %v262, %v274
      %v279 = vadd.f32 %v263, %v275
      %v280 = vadd.f32 %v264, %v276
      %v281 = vld [vmem:[%s224] sm:$0xf]
      %v282 = vld [vmem:[%s224 + $0x8] sm:$0xf]
      %v283 = vld [vmem:[%s224 + $0x10] sm:$0xf]
      %v284 = vld [vmem:[%s224 + $0x18] sm:$0xf]
      %v285 = vlaneseq
      %v286 = vshrl.u32 %v285, 7
      %v287 = vsub.s32 0, %v286
      %v288 = vrot.slane %v231, %v287
      %v289 = vmul.f32 %v281, %v288
      %v290 = vmul.f32 %v282, %v288
      %v291 = vmul.f32 %v283, %v288
      %v292 = vmul.f32 %v284, %v288
      %v293 = vadd.f32 %v277, %v289
      %v294 = vadd.f32 %v278, %v290
      %v295 = vadd.f32 %v279, %v291
      %v296 = vadd.f32 %v280, %v292
      %v297 = vld [vmem:[%s224 + $0x1] sm:$0xf]
      %v298 = vld [vmem:[%s224 + $0x9] sm:$0xf]
      %v299 = vld [vmem:[%s224 + $0x11] sm:$0xf]
      %v300 = vld [vmem:[%s224 + $0x19] sm:$0xf]
      %v301 = vlaneseq
      %v302 = vshrl.u32 %v301, 7
      %v303 = vsub.s32 1, %v302
      %v304 = vrot.slane %v231, %v303
      %v305 = vmul.f32 %v297, %v304
      %v306 = vmul.f32 %v298, %v304
      %v307 = vmul.f32 %v299, %v304
      %v308 = vmul.f32 %v300, %v304
      %v309 = vadd.f32 %v293, %v305
      %v310 = vadd.f32 %v294, %v306
      %v311 = vadd.f32 %v295, %v307
      %v312 = vadd.f32 %v296, %v308
      %v313 = vld [vmem:[%s224 + $0x2] sm:$0xf]
      %v314 = vld [vmem:[%s224 + $0xa] sm:$0xf]
      %v315 = vld [vmem:[%s224 + $0x12] sm:$0xf]
      %v316 = vld [vmem:[%s224 + $0x1a] sm:$0xf]
      %v317 = vlaneseq
      %v318 = vshrl.u32 %v317, 7
      %v319 = vsub.s32 2, %v318
      %v320 = vrot.slane %v231, %v319
      %v321 = vmul.f32 %v313, %v320
      %v322 = vmul.f32 %v314, %v320
      %v323 = vmul.f32 %v315, %v320
      %v324 = vmul.f32 %v316, %v320
      %v325 = vadd.f32 %v309, %v321
      %v326 = vadd.f32 %v310, %v322
      %v327 = vadd.f32 %v311, %v323
      %v328 = vadd.f32 %v312, %v324
      %s329 = scalar_lea.vmem [#allocation2], 16
      %v330 = vld [vmem:[%s329] sm:$0xf]
      %v331 = vld [vmem:[%s329 + $0x8] sm:$0xf]
      %v332 = vld [vmem:[%s329 + $0x10] sm:$0xf]
      %v333 = vld [vmem:[%s329 + $0x18] sm:$0xf]
      %v334 = vlaneseq
      %v335 = vshrl.u32 %v334, 7
      %v336 = vsub.s32 0, %v335
      %v337 = vrot.slane %v232, %v336
      %v338 = vmul.f32 %v330, %v337
      %v339 = vmul.f32 %v331, %v337
      %v340 = vmul.f32 %v332, %v337
      %v341 = vmul.f32 %v333, %v337
      %v342 = vadd.f32 %v325, %v338
      %v343 = vadd.f32 %v326, %v339
      %v344 = vadd.f32 %v327, %v340
      %v345 = vadd.f32 %v328, %v341
      %v346 = vld [vmem:[%s329 + $0x1] sm:$0xf]
      %v347 = vld [vmem:[%s329 + $0x9] sm:$0xf]
      %v348 = vld [vmem:[%s329 + $0x11] sm:$0xf]
      %v349 = vld [vmem:[%s329 + $0x19] sm:$0xf]
      %v350 = vlaneseq
      %v351 = vshrl.u32 %v350, 7
      %v352 = vsub.s32 1, %v351
      %v353 = vrot.slane %v232, %v352
      %v354 = vmul.f32 %v346, %v353
      %v355 = vmul.f32 %v347, %v353
      %v356 = vmul.f32 %v348, %v353
      %v357 = vmul.f32 %v349, %v353
      %v358 = vadd.f32 %v342, %v354
      %v359 = vadd.f32 %v343, %v355
      %v360 = vadd.f32 %v344, %v356
      %v361 = vadd.f32 %v345, %v357
      %v362 = vld [vmem:[%s329 + $0x2] sm:$0xf]
      %v363 = vld [vmem:[%s329 + $0xa] sm:$0xf]
      %v364 = vld [vmem:[%s329 + $0x12] sm:$0xf]
      %v365 = vld [vmem:[%s329 + $0x1a] sm:$0xf]
      %v366 = vlaneseq
      %v367 = vshrl.u32 %v366, 7
      %v368 = vsub.s32 2, %v367
      %v369 = vrot.slane %v232, %v368
      %v370 = vmul.f32 %v362, %v369
      %v371 = vmul.f32 %v363, %v369
      %v372 = vmul.f32 %v364, %v369
      %v373 = vmul.f32 %v365, %v369
      %v374 = vadd.f32 %v358, %v370
      %v375 = vadd.f32 %v359, %v371
      %v376 = vadd.f32 %v360, %v372
      %v377 = vadd.f32 %v361, %v373
      %v378 = vld [vmem:[%s2] sm:$0x1]
      %v380 = vlaneseq
      %v381 = vshrl.u32 %v380, 7
      %v382 = vsub.s32 0, %v381
      %v383 = vrot.slane %v378, %v382
      %v385 = vadd.f32 %v374, %v383
      %v386 = vadd.f32 %v375, %v383
      %v387 = vadd.f32 %v376, %v383
      %v388 = vadd.f32 %v377, %v383
      %v389 = vpack.c.bf16 %v385, %v385
      %v390 = vpack.c.bf16 %v386, %v386
      %v391 = vpack.c.bf16 %v387, %v387
      %v392 = vpack.c.bf16 %v388, %v388
      %vm393 = vcmask 517120
      %394 = vst.msk [vmem:[%s170] sm:$0x3] %vm393, %v389
      %395 = vst.msk [vmem:[%s170 + $0x2] sm:$0x3] %vm393, %v390
      %396 = vst.msk [vmem:[%s170 + $0x4] sm:$0x3] %vm393, %v391
      %397 = vst.msk [vmem:[%s170 + $0x6] sm:$0x3] %vm393, %v392
      %p398 = scmp.lt.s32.totalorder %s14, 1
      %s399 = scalar_select %p398, %s14, 1
      %s400 = smul.addr %s399, 4
      %s401 = smul.addr %s400, 2
      %s402 = scalar_lea.vmem %s3, %s401
      // Predicated region
      $region33: #{block_forward.8} parent=31 // pred_check
        %p403 = pneg %p100
      $region34: #{block_forward.8} parent=31 // pred_check_branch
        %405 = sbr.rel (%p403) target = $region36
      $region35: #{block_forward.8} parent=31 // pred_region
        _
      $region36: #{block_forward.8} parent=31 // pred_fallthru
        _
    $region32: #{block_forward.8} parent=5 // pred_fallthru
      _
    %p406 = scmp.le.s32.totalorder 2, %s9
    // Predicated region
    $region37: #{block_forward.8} parent=5 // pred_check
      %p407 = pneg %p406
    $region38: #{block_forward.8} parent=5 // pred_check_branch
      %409 = sbr.rel (%p407) target = $region40
    $region39: #{block_forward.8} parent=5 // pred_region
      %s410 = ssub.s32 %s9, 2
      // Predicated region
      $region41: #{block_forward.8} parent=39 // pred_check
        %p411 = pneg %p106
      $region42: #{block_forward.8} parent=39 // pred_check_branch
        %413 = sbr.rel (%p411) target = $region44
      $region43: #{block_forward.8} parent=39 // pred_region
        %p414 = scmp.lt.s32.totalorder %s15, 1
        %s415 = scalar_select %p414, %s15, 1
        %s416 = smul.addr %s415, 4
        %s417 = smul.addr %s416, 2
        %s418 = scalar_lea.vmem %s3, %s417
      $region44: #{block_forward.8} parent=39 // pred_fallthru
        _
    $region40: #{block_forward.8} parent=5 // pred_fallthru
      _
  $region6: #{block_forward.8} parent=0 // loop_footer
    %s13 = sadd.s32 1, %s9
  $region7: #{block_forward.8} parent=0 // loop_footer_branch
    %8 = sbr.rel target = $region3
  $region8: #{block_forward.8} parent=0 // loop_exit
    _

// kernel: block_forward.7
$region0: #{block_forward.7}
  #allocation0 [shape = 'u32[]', space=smem, size = 0x4, offset = 0x4, fixed_abs, tag = 'smem constant byte address 0x4 - core index']
  #allocation1 [shape = 'u32[144,128]{1,0:T(1,128)}', space=vmem, size = 0x12000, scoped, tag = 'internal scratch']
  %s0 = inlined_call_operand.vmem [shape: f32[32,32], index: 0, kind: input, shape index: {}]
  %s1 = inlined_call_operand.vmem [shape: f32[1,32], index: 1, kind: input, shape index: {}]
  %s2 = inlined_call_operand.vmem [shape: f32[1,32], index: 2, kind: input, shape index: {}]
  %s3 = inlined_call_operand.vmem [shape: bf16[32,64], index: 3, kind: input, shape index: {}]
  %s4 = inlined_call_operand.vmem [shape: bf16[32,32], index: 4, kind: input, shape index: {}]
  %s5 = inlined_call_operand.vmem [shape: bf16[32,64], index: 5, kind: output, shape index: {0}]
  %s6 = inlined_call_operand.vmem [shape: bf16[32,32], index: 6, kind: output, shape index: {1}]
  %7 = xla_tuple %s5, %s6
  %s8 = sld [smem:[#allocation0]]
  $region38: #{block_forward.7} parent=0
    _
  %s10 = ssub.s32 1, %s8
  %s11 = scalar_select 0, %s10, %s8
  // Predicated region
  $region2: #{block_forward.7} parent=0 // pred_check
    _
  $region3: #{block_forward.7} parent=0 // pred_check_branch
    %13 = sbr.rel (0) target = $region5
  $region4: #{block_forward.7} parent=0 // pred_region
    _
  $region5: #{block_forward.7} parent=0 // pred_fallthru
    _
  // Predicated region
  $region6: #{block_forward.7} parent=0 // pred_check
    _
  $region7: #{block_forward.7} parent=0 // pred_check_branch
    %15 = sbr.rel (0) target = $region9
  $region8: #{block_forward.7} parent=0 // pred_region
    _
  $region9: #{block_forward.7} parent=0 // pred_fallthru
    _
  // Predicated region
  $region10: #{block_forward.7} parent=0 // pred_check
    _
  $region11: #{block_forward.7} parent=0 // pred_check_branch
    %17 = sbr.rel (0) target = $region13
  $region12: #{block_forward.7} parent=0 // pred_region
    _
  $region13: #{block_forward.7} parent=0 // pred_fallthru
    _
  // Predicated region
  $region14: #{block_forward.7} parent=0 // pred_check
    _
  $region15: #{block_forward.7} parent=0 // pred_check_branch
    %19 = sbr.rel (0) target = $region17
  $region16: #{block_forward.7} parent=0 // pred_region
    _
  $region17: #{block_forward.7} parent=0 // pred_fallthru
    _
  // Predicated region
  $region18: #{block_forward.7} parent=0 // pred_check
    _
  $region19: #{block_forward.7} parent=0 // pred_check_branch
    %21 = sbr.rel (0) target = $region21
  $region20: #{block_forward.7} parent=0 // pred_region
    _
  $region21: #{block_forward.7} parent=0 // pred_fallthru
    _
  %v23 = vld [vmem:[%s0] sm:$0xff]
  %v24 = vld [vmem:[%s0 + $0x8] sm:$0xff]
  %v25 = vld [vmem:[%s0 + $0x10] sm:$0xff]
  %v26 = vld [vmem:[%s0 + $0x18] sm:$0xff]
  %vm27 = vcmask 261120
  %v28 = vsel %vm27, %v23, 0.0
  %29 = vadd.xlane.f32.xlu0 %v28
  %v30 = vpop.xlane.xlu0 %29
  %v31 = vsel %vm27, %v24, 0.0
  %32 = vadd.xlane.f32.xlu0 %v31
  %v33 = vpop.xlane.xlu0 %32
  %v34 = vsel %vm27, %v25, 0.0
  %35 = vadd.xlane.f32.xlu0 %v34
  %v36 = vpop.xlane.xlu0 %35
  %v37 = vsel %vm27, %v26, 0.0
  %38 = vadd.xlane.f32.xlu0 %v37
  %v39 = vpop.xlane.xlu0 %38
  %v40 = vrcp.pop 32.0
  %v41 = vmul.f32 %v30, %v40
  %v42 = vmul.f32 %v33, %v40
  %v43 = vmul.f32 %v36, %v40
  %v44 = vmul.f32 %v39, %v40
  %v45 = vsub.f32 %v23, %v41
  %v46 = vsub.f32 %v24, %v42
  %v47 = vsub.f32 %v25, %v43
  %v48 = vsub.f32 %v26, %v44
  %v49 = vmul.f32 %v45, %v45
  %v50 = vmul.f32 %v46, %v46
  %v51 = vmul.f32 %v47, %v47
  %v52 = vmul.f32 %v48, %v48
  %v53 = vsel %vm27, %v49, 0.0
  %54 = vadd.xlane.f32.xlu0 %v53
  %v55 = vpop.xlane.xlu0 %54
  %v56 = vsel %vm27, %v50, 0.0
  %57 = vadd.xlane.f32.xlu0 %v56
  %v58 = vpop.xlane.xlu0 %57
  %v59 = vsel %vm27, %v51, 0.0
  %60 = vadd.xlane.f32.xlu0 %v59
  %v61 = vpop.xlane.xlu0 %60
  %v62 = vsel %vm27, %v52, 0.0
  %63 = vadd.xlane.f32.xlu0 %v62
  %v64 = vpop.xlane.xlu0 %63
  %v65 = vmul.f32 %v55, %v40
  %v66 = vmul.f32 %v58, %v40
  %v67 = vmul.f32 %v61, %v40
  %v68 = vmul.f32 %v64, %v40
  %v69 = vadd.f32 %v65, 1e-05
  %v70 = vadd.f32 %v66, 1e-05
  %v71 = vadd.f32 %v67, 1e-05
  %v72 = vadd.f32 %v68, 1e-05
  %v73 = vrsqrt.pop %v69
  %v74 = vrsqrt.pop %v70
  %v75 = vrsqrt.pop %v71
  %v76 = vrsqrt.pop %v72
  %v77 = vmul.f32 %v45, %v73
  %v78 = vmul.f32 %v46, %v74
  %v79 = vmul.f32 %v47, %v75
  %v80 = vmul.f32 %v48, %v76
  %v81 = vld [vmem:[%s1] sm:$0x1]
  %v83 = vlaneseq
  %v84 = vshrl.u32 %v83, 7
  %v85 = vsub.s32 0, %v84
  %v86 = vrot.slane %v81, %v85
  %v88 = vmul.f32 %v77, %v86
  %v89 = vmul.f32 %v78, %v86
  %v90 = vmul.f32 %v79, %v86
  %v91 = vmul.f32 %v80, %v86
  %v92 = vld [vmem:[%s2] sm:$0x1]
  %v94 = vlaneseq
  %v95 = vshrl.u32 %v94, 7
  %v96 = vsub.s32 0, %v95
  %v97 = vrot.slane %v92, %v96
  %v99 = vadd.f32 %v88, %v97
  %v100 = vadd.f32 %v89, %v97
  %v101 = vadd.f32 %v90, %v97
  %v102 = vadd.f32 %v91, %v97
  %v103 = vpack.c.bf16 %v100, %v99
  %v104 = vpack.c.bf16 %v102, %v101
  %v105 = vld [vmem:[%s3] sm:$0xf]
  %v106 = vld [vmem:[%s3 + $0x4] sm:$0xf]
  %v107 = vld [vmem:[%s3 + $0x8] sm:$0xf]
  %v108 = vld [vmem:[%s3 + $0xc] sm:$0xf]
  %v113 = vunpack.c.l.b16 %v105
  %v114 = vunpack.c.l.b16 %v106
  %v115 = vunpack.c.l.b16 %v107
  %v116 = vunpack.c.l.b16 %v108
  %v117 = vpack.c.b16 %v114, %v113
  %v118 = vpack.c.b16 %v116, %v115
  %v122 = vsel %vm27, %v103, 0
  %v125 = vsel %vm27, %v104, 0
  %127 = vmatprep.subr.bf16.mxu0 0
  %128 = vmatpush1.bf16.msra.mxu0 0
  %129 = vmatprep.subr.bf16.mxu0 0
  %130 = vmatpush1.bf16.msra.mxu0 0
  %131 = vmatprep.subr.bf16.mxu0 0
  %132 = vmatpush1.bf16.msra.mxu0 0
  %133 = vmatprep.subr.bf16.mxu0 0
  %134 = vmatpush1.bf16.msra.mxu0 0
  %135 = vmatprep.subr.bf16.mxu0 0
  %136 = vmatpush1.bf16.msra.mxu0 0
  %137 = vmatprep.subr.bf16.mxu0 0
  %138 = vmatpush1.bf16.msra.mxu0 0
  %139 = vmatprep.subr.bf16.mxu0 0
  %140 = vmatpush1.bf16.msra.mxu0 %v118
  %141 = vmatprep.subr.bf16.mxu0 0
  %142 = vmatpush1.bf16.msra.mxu0 %v117
  %143 = vmatprep.subr.bf16.mxu0 0
  %144 = vmatpush2.bf16.msra.mxu0 0
  %145 = vmatprep.subr.bf16.mxu0 0
  %146 = vmatpush2.bf16.msra.mxu0 0
  %147 = vmatprep.subr.bf16.mxu0 0
  %148 = vmatpush2.bf16.msra.mxu0 0
  %149 = vmatprep.subr.bf16.mxu0 0
  %150 = vmatpush2.bf16.msra.mxu0 0
  %151 = vmatprep.subr.bf16.mxu0 0
  %152 = vmatpush2.bf16.msra.mxu0 0
  %153 = vmatprep.subr.bf16.mxu0 0
  %154 = vmatpush2.bf16.msra.mxu0 0
  %155 = vmatprep.subr.bf16.mxu0 0
  %156 = vmatpush2.bf16.msra.mxu0 0
  %157 = vmatprep.subr.bf16.mxu0 0
  %158 = vmatpush2.bf16.msra.mxu0 0
  %159 = vmatprep.mubr.bf16.mxu0 0
  %160 = vmatmul.mubr.bf16.gmra.mxu0 %v122
  %v161 = vpop.f32.mrf.mxu0
  %v162 = vadd.f32 0.0, %v161
  %v163 = vpop.f32.mrf.mxu0
  %v164 = vpop.f32.mrf.mxu0
  %v165 = vadd.f32 0.0, %v164
  %v166 = vpop.f32.mrf.mxu0
  %167 = vmatprep.mubr.bf16.mxu0 0
  %168 = vmatmul.mubr.bf16.gmra.mxu0 %v125
  %v169 = vpop.f32.mrf.mxu0
  %v170 = vadd.f32 0.0, %v169
  %v171 = vpop.f32.mrf.mxu0
  %v172 = vpop.f32.mrf.mxu0
  %v173 = vadd.f32 0.0, %v172
  %v174 = vpop.f32.mrf.mxu0
  %175 = vdwg.mxu0
  %v176 = vpack.c.bf16 %v165, %v162
  %v177 = vpack.c.bf16 %v173, %v170
  %v180 = vunpack.c.l.b16 %v176
  %v181 = vunpack.c.h.b16 %v176
  %v182 = vunpack.c.l.b16 %v177
  %v183 = vunpack.c.h.b16 %v177
  %v184 = vpack.c.b16 %v180, %v180
  %v185 = vpack.c.b16 %v181, %v181
  %v186 = vpack.c.b16 %v182, %v182
  %v187 = vpack.c.b16 %v183, %v183
  %vm192 = vcmask 519168
  %193 = vst.msk [vmem:[%s5] sm:$0xf] %vm192, %v184
  %194 = vst.msk [vmem:[%s5 + $0x4] sm:$0xf] %vm192, %v185
  %195 = vst.msk [vmem:[%s5 + $0x8] sm:$0xf] %vm192, %v186
  %196 = vst.msk [vmem:[%s5 + $0xc] sm:$0xf] %vm192, %v187
  %v197 = vld [vmem:[%s4] sm:$0xf]
  %v198 = vld [vmem:[%s4 + $0x4] sm:$0xf]
  %v199 = vld [vmem:[%s4 + $0x8] sm:$0xf]
  %v200 = vld [vmem:[%s4 + $0xc] sm:$0xf]
  %v205 = vunpack.c.l.b16 %v197
  %v206 = vunpack.c.l.b16 %v198
  %v207 = vunpack.c.l.b16 %v199
  %v208 = vunpack.c.l.b16 %v200
  %v209 = vpack.c.b16 %v206, %v205
  %v210 = vpack.c.b16 %v208, %v207
  %213 = vmatprep.subr.bf16.mxu0 0
  %214 = vmatpush1.bf16.msra.mxu0 0
  %215 = vmatprep.subr.bf16.mxu0 0
  %216 = vmatpush1.bf16.msra.mxu0 0
  %217 = vmatprep.subr.bf16.mxu0 0
  %218 = vmatpush1.bf16.msra.mxu0 0
  %219 = vmatprep.subr.bf16.mxu0 0
  %220 = vmatpush1.bf16.msra.mxu0 0
  %221 = vmatprep.subr.bf16.mxu0 0
  %222 = vmatpush1.bf16.msra.mxu0 0
  %223 = vmatprep.subr.bf16.mxu0 0
  %224 = vmatpush1.bf16.msra.mxu0 0
  %225 = vmatprep.subr.bf16.mxu0 0
  %226 = vmatpush1.bf16.msra.mxu0 %v210
  %227 = vmatprep.subr.bf16.mxu0 0
  %228 = vmatpush1.bf16.msra.mxu0 %v209
  %229 = vmatprep.subr.bf16.mxu0 0
  %230 = vmatpush2.bf16.msra.mxu0 0
  %231 = vmatprep.subr.bf16.mxu0 0
  %232 = vmatpush2.bf16.msra.mxu0 0
  %233 = vmatprep.subr.bf16.mxu0 0
  %234 = vmatpush2.bf16.msra.mxu0 0
  %235 = vmatprep.subr.bf16.mxu0 0
  %236 = vmatpush2.bf16.msra.mxu0 0
  %237 = vmatprep.subr.bf16.mxu0 0
  %238 = vmatpush2.bf16.msra.mxu0 0
  %239 = vmatprep.subr.bf16.mxu0 0
  %240 = vmatpush2.bf16.msra.mxu0 0
  %241 = vmatprep.subr.bf16.mxu0 0
  %242 = vmatpush2.bf16.msra.mxu0 0
  %243 = vmatprep.subr.bf16.mxu0 0
  %244 = vmatpush2.bf16.msra.mxu0 0
  %245 = vmatprep.mubr.bf16.mxu0 0
  %246 = vmatmul.mubr.bf16.gmra.mxu0 %v122
  %v247 = vpop.f32.mrf.mxu0
  %v248 = vadd.f32 0.0, %v247
  %v249 = vpop.f32.mrf.mxu0
  %v250 = vpop.f32.mrf.mxu0
  %v251 = vadd.f32 0.0, %v250
  %v252 = vpop.f32.mrf.mxu0
  %253 = vmatprep.mubr.bf16.mxu0 0
  %254 = vmatmul.mubr.bf16.gmra.mxu0 %v125
  %v255 = vpop.f32.mrf.mxu0
  %v256 = vadd.f32 0.0, %v255
  %v257 = vpop.f32.mrf.mxu0
  %v258 = vpop.f32.mrf.mxu0
  %v259 = vadd.f32 0.0, %v258
  %v260 = vpop.f32.mrf.mxu0
  %261 = vdwg.mxu0
  %v262 = vpack.c.bf16 %v251, %v248
  %v263 = vpack.c.bf16 %v259, %v256
  %v266 = vunpack.c.l.b16 %v262
  %v267 = vunpack.c.h.b16 %v262
  %v268 = vunpack.c.l.b16 %v263
  %v269 = vunpack.c.h.b16 %v263
  %v270 = vpack.c.b16 %v266, %v266
  %v271 = vpack.c.b16 %v267, %v267
  %v272 = vpack.c.b16 %v268, %v268
  %v273 = vpack.c.b16 %v269, %v269
  %vm278 = vcmask 257024
  %279 = vst.msk [vmem:[%s6] sm:$0xf] %vm278, %v270
  %280 = vst.msk [vmem:[%s6 + $0x4] sm:$0xf] %vm278, %v271
  %281 = vst.msk [vmem:[%s6 + $0x8] sm:$0xf] %vm278, %v272
  %282 = vst.msk [vmem:[%s6 + $0xc] sm:$0xf] %vm278, %v273
  // Predicated region
  $region22: #{block_forward.7} parent=0 // pred_check
    _
  $region23: #{block_forward.7} parent=0 // pred_check_branch
    %284 = sbr.rel (0) target = $region25
  $region24: #{block_forward.7} parent=0 // pred_region
    _
  $region25: #{block_forward.7} parent=0 // pred_fallthru
    _
  // Predicated region
  $region26: #{block_forward.7} parent=0 // pred_check
    _
  $region27: #{block_forward.7} parent=0 // pred_check_branch
    %286 = sbr.rel (0) target = $region29
  $region28: #{block_forward.7} parent=0 // pred_region
    _
  $region29: #{block_forward.7} parent=0 // pred_fallthru
    _
  // Predicated region
  $region30: #{block_forward.7} parent=0 // pred_check
    _
  $region31: #{block_forward.7} parent=0 // pred_check_branch
    %288 = sbr.rel (0) target = $region33
  $region32: #{block_forward.7} parent=0 // pred_region
    _
  $region33: #{block_forward.7} parent=0 // pred_fallthru
    _
  // Predicated region
  $region34: #{block_forward.7} parent=0 // pred_check
    _
  $region35: #{block_forward.7} parent=0 // pred_check_branch
    %290 = sbr.rel (0) target = $region37
  $region36: #{block_forward.7} parent=0 // pred_region
    _
  $region37: #{block_forward.7} parent=0 // pred_fallthru
    _

// kernel: block_forward.6
$region0: #{block_forward.6}
  #allocation0 [shape = 'u32[]', space=smem, size = 0x4, offset = 0x4, fixed_abs, tag = 'smem constant byte address 0x4 - core index']
  #allocation1 [shape = 'u32[144,128]{1,0:T(1,128)}', space=vmem, size = 0x12000, scoped, tag = 'internal scratch']
  #allocation2 [shape = 'f32[6,6,32]{2,1,0:T(8,128)}', space=vmem, size = 0x6000, scoped, tag = 'scratch operand']
  %s0 = inlined_call_operand.hbm [shape: f32[2,4,4,32], index: 0, kind: input, shape index: {}]
  %s1 = inlined_call_operand.vmem [shape: f32[3,3,32], index: 1, kind: input, shape index: {}]
  %s2 = inlined_call_operand.vmem [shape: f32[1,32], index: 2, kind: input, shape index: {}]
  %s3 = inlined_call_operand.vmem [shape: f32[2,4,4,32], index: 3, kind: output, shape index: {}]
  %s4 = sld [smem:[#allocation0]]
  $region49: #{block_forward.6} parent=0
    _
  %s6 = ssub.s32 1, %s4
  %s7 = scalar_select 0, %s6, %s4
  $region1: #{block_forward.6} parent=0
    #allocation3 [shape = 'u8[16384]{0}', space=vmem, size = 0x4000, scoped, tag = 'input window, operand 0']
    #allocation4 [shape = 's32[2]{0}', space=sflag, size = 0x8, scoped, tag = 'scoped memory for block_forward.6']
    %8 = vsyncpa [#allocation4], 0
    %s9 = scalar_lea.sflag [#allocation4], 1
    %10 = vsyncpa %s9, 0
    loop: start=0, step=1, limit=4
    $region2: #{block_forward.6} parent=1 // loop_pre_header
      _
    $region3: #{block_forward.6} parent=1 // loop_header
      %s12 = sphi 0, %s16
      %p13 = scmp.ge.s32.totalorder %s12, 4
      %s22 = sphi 0, %s24
      %s25 = sphi 0, %s22
      %s26 = sphi 0, %s25
      %s42 = sphi 0, %s26
      %s46 = sphi 0, %s46
      %s48 = sphi 0, %s46
      %s49 = sphi 0, %s48
      %s63 = sphi 0, %s49
      %s67 = sphi 0, %s67
      %s69 = sphi 0, %s67
      %s70 = sphi 0, %s69
      %s84 = sphi 0, %s70
      %s90 = sphi 0, %s92
      %s93 = sphi 0, %s90
      %s94 = sphi 0, %s93
      %s110 = sphi 0, %s94
    $region4: #{block_forward.6} parent=1 // loop_header_branch
      %15 = sbr.rel (%p13) target = $region8
    $region5: #{block_forward.6} parent=1 // loop_body
      %s17 = ssub.s32 %s12, 1
      %s18 = ssub.s32 %s12, 2
      %s19 = sadd.s32 %s12, 1
      %s20 = ssub.s32 %s12, %s19
      %p21 = scmp.eq.s32.totalorder %s20, 0
      %s23 = sadd.s32 %s22, 1
      %s24 = scalar_select %p21, %s22, %s23
      %p27 = pneg %p21
      %p28 = scmp.eq.s32.totalorder %s12, 1
      %p29 = por %p27, %p28
      %p30 = scmp.ne.s32.totalorder %s22, %s25
      %p31 = scmp.eq.s32.totalorder %s12, 0
      %p32 = por %p30, %p31
      %p33 = scmp.ne.s32.totalorder %s22, %s25
      %p34 = scmp.eq.s32.totalorder %s17, 1
      %p35 = por %p33, %p34
      %p36 = scmp.ne.s32.totalorder %s25, %s26
      %p37 = scmp.eq.s32.totalorder %s17, 0
      %p38 = por %p36, %p37
      %p39 = scmp.ne.s32.totalorder %s25, %s26
      %p40 = scmp.eq.s32.totalorder %s18, 1
      %p41 = por %p39, %p40
      %p43 = scmp.ne.s32.totalorder %s26, %s42
      %p44 = scmp.eq.s32.totalorder %s18, 0
      %p45 = por %p43, %p44
      %s47 = sadd.s32 %s46, 1
      %p50 = scmp.eq.s32.totalorder %s12, 1
      %p51 = scmp.ne.s32.totalorder %s46, %s48
      %p52 = scmp.eq.s32.totalorder %s12, 0
      %p53 = por %p51, %p52
      %p54 = scmp.ne.s32.totalorder %s46, %s48
      %p55 = scmp.eq.s32.totalorder %s17, 1
      %p56 = por %p54, %p55
      %p57 = scmp.ne.s32.totalorder %s48, %s49
      %p58 = scmp.eq.s32.totalorder %s17, 0
      %p59 = por %p57, %p58
      %p60 = scmp.ne.s32.totalorder %s48, %s49
      %p61 = scmp.eq.s32.totalorder %s18, 1
      %p62 = por %p60, %p61
      %p64 = scmp.ne.s32.totalorder %s49, %s63
      %p65 = scmp.eq.s32.totalorder %s18, 0
      %p66 = por %p64, %p65
      %s68 = sadd.s32 %s67, 1
      %p71 = scmp.eq.s32.totalorder %s12, 1
      %p72 = scmp.ne.s32.totalorder %s67, %s69
      %p73 = scmp.eq.s32.totalorder %s12, 0
      %p74 = por %p72, %p73
      %p75 = scmp.ne.s32.totalorder %s67, %s69
      %p76 = scmp.eq.s32.totalorder %s17, 1
      %p77 = por %p75, %p76
      %p78 = scmp.ne.s32.totalorder %s69, %s70
      %p79 = scmp.eq.s32.totalorder %s17, 0
      %p80 = por %p78, %p79
      %p81 = scmp.ne.s32.totalorder %s69, %s70
      %p82 = scmp.eq.s32.totalorder %s18, 1
      %p83 = por %p81, %p82
      %p85 = scmp.ne.s32.totalorder %s70, %s84
      %p86 = scmp.eq.s32.totalorder %s18, 0
      %p87 = por %p85, %p86
      %s88 = ssub.s32 %s12, %s19
      %p89 = scmp.eq.s32.totalorder %s88, 0
      %s91 = sadd.s32 %s90, 1
      %s92 = scalar_select %p89, %s90, %s91
      %p95 = pneg %p89
      %p96 = scmp.eq.s32.totalorder %s12, 1
      %p97 = por %p95, %p96
      %p98 = scmp.ne.s32.totalorder %s90, %s93
      %p99 = scmp.eq.s32.totalorder %s12, 0
      %p100 = por %p98, %p99
      %p101 = scmp.ne.s32.totalorder %s90, %s93
      %p102 = scmp.eq.s32.totalorder %s17, 1
      %p103 = por %p101, %p102
      %p104 = scmp.ne.s32.totalorder %s93, %s94
      %p105 = scmp.eq.s32.totalorder %s17, 0
      %p106 = por %p104, %p105
      %p107 = scmp.ne.s32.totalorder %s93, %s94
      %p108 = scmp.eq.s32.totalorder %s18, 1
      %p109 = por %p107, %p108
      %p111 = scmp.ne.s32.totalorder %s94, %s110
      %p112 = scmp.eq.s32.totalorder %s18, 0
      %p113 = por %p111, %p112
      %p114 = scmp.le.s32.totalorder 1, %s12
      %p115 = scmp.lt.s32.totalorder %s12, 3
      %p116 = pnand %p114, %p115
      %p117 = pneg %p116
      // Predicated region
      $region9: #{block_forward.6} parent=5 // pred_check
        _
      $region10: #{block_forward.6} parent=5 // pred_check_branch
        %119 = sbr.rel (%p116) target = $region12
      $region11: #{block_forward.6} parent=5 // pred_region
        %s120 = ssub.s32 %s12, 1
        // Predicated region
        $region13: #{block_forward.6} parent=11 // pred_check
          %p121 = pneg %p59
        $region14: #{block_forward.6} parent=11 // pred_check_branch
          %123 = sbr.rel (%p121) target = $region16
        $region15: #{block_forward.6} parent=11 // pred_region
          _
        $region16: #{block_forward.6} parent=11 // pred_fallthru
          _
        // Predicated region
        $region17: #{block_forward.6} parent=11 // pred_check
          %p124 = pneg %p80
        $region18: #{block_forward.6} parent=11 // pred_check_branch
          %126 = sbr.rel (%p124) target = $region20
        $region19: #{block_forward.6} parent=11 // pred_region
          _
        $region20: #{block_forward.6} parent=11 // pred_fallthru
          _
      $region12: #{block_forward.6} parent=5 // pred_fallthru
        _
      %p127 = scmp.lt.s32.totalorder %s12, 2
      // Predicated region
      $region21: #{block_forward.6} parent=5 // pred_check
        %p128 = pneg %p127
      $region22: #{block_forward.6} parent=5 // pred_check_branch
        %130 = sbr.rel (%p128) target = $region24
      $region23: #{block_forward.6} parent=5 // pred_region
        // Predicated region
        $region25: #{block_forward.6} parent=23 // pred_check
          %p131 = pneg %p32
        $region26: #{block_forward.6} parent=23 // pred_check_branch
          %133 = sbr.rel (%p131) target = $region28
        $region27: #{block_forward.6} parent=23 // pred_region
          %s134 = sand.u32 %s22, 1
          %s135 = scalar_lea.sflag [#allocation4], %s134
          %s136 = sand.u32 %s22, 1
          %s137 = smul.addr %s136, 16
          %s138 = scalar_lea.vmem [#allocation3], %s137
          %s140 = ssub.s32 256, 256
          %141 = vsyncadd %s135, %s140
          %s142 = smul.addr %s12, 4
          %s143 = smul.addr %s142, 64
          %s144 = scalar_lea.hbm %s0, %s143
          %s145 = sshll.u32 %s138, 4
          %s146 = int_to_ptr.vmem [resolvable:$true] %s145
          %151 = dma.hbm_to_vmem [thread:$0]  %s144, 256, %s146, %s135, 64, 64, 4
        $region28: #{block_forward.6} parent=23 // pred_fallthru
          _
      $region24: #{block_forward.6} parent=5 // pred_fallthru
        _
      %p152 = scmp.le.s32.totalorder 1, %s12
      %p153 = scmp.lt.s32.totalorder %s12, 3
      %p154 = pnand %p152, %p153
      %p155 = pneg %p154
      // Predicated region
      $region29: #{block_forward.6} parent=5 // pred_check
        _
      $region30: #{block_forward.6} parent=5 // pred_check_branch
        %157 = sbr.rel (%p154) target = $region32
      $region31: #{block_forward.6} parent=5 // pred_region
        %s158 = ssub.s32 %s12, 1
        %s159 = sand.u32 %s25, 1
        %s160 = scalar_lea.sflag [#allocation4], %s159
        %s161 = sand.u32 %s25, 1
        %s162 = smul.addr %s161, 16
        %s163 = scalar_lea.vmem [#allocation3], %s162
        // Predicated region
        $region33: #{block_forward.6} parent=31 // pred_check
          %p164 = pneg %p38
        $region34: #{block_forward.6} parent=31 // pred_check_branch
          %166 = sbr.rel (%p164) target = $region36
        $region35: #{block_forward.6} parent=31 // pred_region
          %167 = dma.done %s160, 256
        $region36: #{block_forward.6} parent=31 // pred_fallthru
          _
        %s168 = sand.u32 %s25, 1
        %s169 = scalar_lea.sflag [#allocation4], %s168
        %s170 = sand.u32 %s25, 1
        %s171 = smul.addr %s170, 16
        %s172 = scalar_lea.vmem [#allocation3], %s171
        %p173 = pneg %p38
        %p174 = pneg %p35
        %p175 = pneg %p59
        %p176 = pneg %p56
        %p177 = pneg %p80
        %p178 = pneg %p77
        %p179 = pneg %p106
        %p180 = pneg %p103
        %p181 = scmp.lt.s32.totalorder %s17, 1
        %s182 = scalar_select %p181, %s17, 1
        %s183 = smul.addr %s182, 4
        %s184 = smul.addr %s183, 4
        %s185 = scalar_lea.vmem %s3, %s184
        %p186 = scmp.lt.s32.totalorder %s17, 1
        %s187 = scalar_select %p186, %s17, 1
        %s188 = smul.addr %s187, 4
        %s189 = smul.addr %s188, 4
        %s190 = scalar_lea.vmem %s3, %s189
        %v191 = vld [vmem:[%s163] sm:$0xf]
        %v192 = vld [vmem:[%s163 + $0x4] sm:$0xf]
        %v193 = vld [vmem:[%s163 + $0x8] sm:$0xf]
        %v194 = vld [vmem:[%s163 + $0xc] sm:$0xf]
        %vm195 = vcmask 259072
        %196 = vst.msk [vmem:[#allocation2] sm:$0x3f] %vm195, 0.0
        %197 = vst.msk [vmem:[#allocation2 + $0x8] sm:$0x3f] %vm195, 0.0
        %198 = vst.msk [vmem:[#allocation2 + $0x10] sm:$0x3f] %vm195, 0.0
        %199 = vst.msk [vmem:[#allocation2 + $0x18] sm:$0x3f] %vm195, 0.0
        %200 = vst.msk [vmem:[#allocation2 + $0x20] sm:$0x3f] %vm195, 0.0
        %201 = vst.msk [vmem:[#allocation2 + $0x28] sm:$0x3f] %vm195, 0.0
        %s202 = scalar_lea.vmem [#allocation2], 8
        %vm203 = vcmask 257024
        %204 = vst.msk [vmem:[%s202 + $0x1] sm:$0xf] %vm203, %v191
        %205 = vst.msk [vmem:[%s202 + $0x9] sm:$0xf] %vm203, %v192
        %206 = vst.msk [vmem:[%s202 + $0x11] sm:$0xf] %vm203, %v193
        %207 = vst.msk [vmem:[%s202 + $0x19] sm:$0xf] %vm203, %v194
        %v208 = vld [vmem:[%s1] sm:$0x7]
        %v209 = vld [vmem:[%s1 + $0x4] sm:$0x7]
        %v210 = vld [vmem:[%s1 + $0x8] sm:$0x7]
        %v211 = vld [vmem:[#allocation2] sm:$0xf]
        %v212 = vld [vmem:[#allocation2 + $0x8] sm:$0xf]
        %v213 = vld [vmem:[#allocation2 + $0x10] sm:$0xf]
        %v214 = vld [vmem:[#allocation2 + $0x18] sm:$0xf]
        %v215 = vlaneseq
        %v216 = vshrl.u32 %v215, 7
        %v217 = vsub.s32 0, %v216
        %v218 = vrot.slane %v208, %v217
        %v219 = vmul.f32 %v211, %v218
        %v220 = vmul.f32 %v212, %v218
        %v221 = vmul.f32 %v213, %v218
        %v222 = vmul.f32 %v214, %v218
        %v223 = vadd.f32 %v219, 0.0
        %v224 = vadd.f32 %v220, 0.0
        %v225 = vadd.f32 %v221, 0.0
        %v226 = vadd.f32 %v222, 0.0
        %v227 = vld [vmem:[#allocation2 + $0x1] sm:$0xf]
        %v228 = vld [vmem:[#allocation2 + $0x9] sm:$0xf]
        %v229 = vld [vmem:[#allocation2 + $0x11] sm:$0xf]
        %v230 = vld [vmem:[#allocation2 + $0x19] sm:$0xf]
        %v231 = vlaneseq
        %v232 = vshrl.u32 %v231, 7
        %v233 = vsub.s32 1, %v232
        %v234 = vrot.slane %v208, %v233
        %v235 = vmul.f32 %v227, %v234
        %v236 = vmul.f32 %v228, %v234
        %v237 = vmul.f32 %v229, %v234
        %v238 = vmul.f32 %v230, %v234
        %v239 = vadd.f32 %v223, %v235
        %v240 = vadd.f32 %v224, %v236
        %v241 = vadd.f32 %v225, %v237
        %v242 = vadd.f32 %v226, %v238
        %v243 = vld [vmem:[#allocation2 + $0x2] sm:$0xf]
        %v244 = vld [vmem:[#allocation2 + $0xa] sm:$0xf]
        %v245 = vld [vmem:[#allocation2 + $0x12] sm:$0xf]
        %v246 = vld [vmem:[#allocation2 + $0x1a] sm:$0xf]
        %v247 = vlaneseq
        %v248 = vshrl.u32 %v247, 7
        %v249 = vsub.s32 2, %v248
        %v250 = vrot.slane %v208, %v249
        %v251 = vmul.f32 %v243, %v250
        %v252 = vmul.f32 %v244, %v250
        %v253 = vmul.f32 %v245, %v250
        %v254 = vmul.f32 %v246, %v250
        %v255 = vadd.f32 %v239, %v251
        %v256 = vadd.f32 %v240, %v252
        %v257 = vadd.f32 %v241, %v253
        %v258 = vadd.f32 %v242, %v254
        %v259 = vld [vmem:[%s202] sm:$0xf]
        %v260 = vld [vmem:[%s202 + $0x8] sm:$0xf]
        %v261 = vld [vmem:[%s202 + $0x10] sm:$0xf]
        %v262 = vld [vmem:[%s202 + $0x18] sm:$0xf]
        %v263 = vlaneseq
        %v264 = vshrl.u32 %v263, 7
        %v265 = vsub.s32 0, %v264
        %v266 = vrot.slane %v209, %v265
        %v267 = vmul.f32 %v259, %v266
        %v268 = vmul.f32 %v260, %v266
        %v269 = vmul.f32 %v261, %v266
        %v270 = vmul.f32 %v262, %v266
        %v271 = vadd.f32 %v255, %v267
        %v272 = vadd.f32 %v256, %v268
        %v273 = vadd.f32 %v257, %v269
        %v274 = vadd.f32 %v258, %v270
        %v275 = vld [vmem:[%s202 + $0x1] sm:$0xf]
        %v276 = vld [vmem:[%s202 + $0x9] sm:$0xf]
        %v277 = vld [vmem:[%s202 + $0x11] sm:$0xf]
        %v278 = vld [vmem:[%s202 + $0x19] sm:$0xf]
        %v279 = vlaneseq
        %v280 = vshrl.u32 %v279, 7
        %v281 = vsub.s32 1, %v280
        %v282 = vrot.slane %v209, %v281
        %v283 = vmul.f32 %v275, %v282
        %v284 = vmul.f32 %v276, %v282
        %v285 = vmul.f32 %v277, %v282
        %v286 = vmul.f32 %v278, %v282
        %v287 = vadd.f32 %v271, %v283
        %v288 = vadd.f32 %v272, %v284
        %v289 = vadd.f32 %v273, %v285
        %v290 = vadd.f32 %v274, %v286
        %v291 = vld [vmem:[%s202 + $0x2] sm:$0xf]
        %v292 = vld [vmem:[%s202 + $0xa] sm:$0xf]
        %v293 = vld [vmem:[%s202 + $0x12] sm:$0xf]
        %v294 = vld [vmem:[%s202 + $0x1a] sm:$0xf]
        %v295 = vlaneseq
        %v296 = vshrl.u32 %v295, 7
        %v297 = vsub.s32 2, %v296
        %v298 = vrot.slane %v209, %v297
        %v299 = vmul.f32 %v291, %v298
        %v300 = vmul.f32 %v292, %v298
        %v301 = vmul.f32 %v293, %v298
        %v302 = vmul.f32 %v294, %v298
        %v303 = vadd.f32 %v287, %v299
        %v304 = vadd.f32 %v288, %v300
        %v305 = vadd.f32 %v289, %v301
        %v306 = vadd.f32 %v290, %v302
        %s307 = scalar_lea.vmem [#allocation2], 16
        %v308 = vld [vmem:[%s307] sm:$0xf]
        %v309 = vld [vmem:[%s307 + $0x8] sm:$0xf]
        %v310 = vld [vmem:[%s307 + $0x10] sm:$0xf]
        %v311 = vld [vmem:[%s307 + $0x18] sm:$0xf]
        %v312 = vlaneseq
        %v313 = vshrl.u32 %v312, 7
        %v314 = vsub.s32 0, %v313
        %v315 = vrot.slane %v210, %v314
        %v316 = vmul.f32 %v308, %v315
        %v317 = vmul.f32 %v309, %v315
        %v318 = vmul.f32 %v310, %v315
        %v319 = vmul.f32 %v311, %v315
        %v320 = vadd.f32 %v303, %v316
        %v321 = vadd.f32 %v304, %v317
        %v322 = vadd.f32 %v305, %v318
        %v323 = vadd.f32 %v306, %v319
        %v324 = vld [vmem:[%s307 + $0x1] sm:$0xf]
        %v325 = vld [vmem:[%s307 + $0x9] sm:$0xf]
        %v326 = vld [vmem:[%s307 + $0x11] sm:$0xf]
        %v327 = vld [vmem:[%s307 + $0x19] sm:$0xf]
        %v328 = vlaneseq
        %v329 = vshrl.u32 %v328, 7
        %v330 = vsub.s32 1, %v329
        %v331 = vrot.slane %v210, %v330
        %v332 = vmul.f32 %v324, %v331
        %v333 = vmul.f32 %v325, %v331
        %v334 = vmul.f32 %v326, %v331
        %v335 = vmul.f32 %v327, %v331
        %v336 = vadd.f32 %v320, %v332
        %v337 = vadd.f32 %v321, %v333
        %v338 = vadd.f32 %v322, %v334
        %v339 = vadd.f32 %v323, %v335
        %v340 = vld [vmem:[%s307 + $0x2] sm:$0xf]
        %v341 = vld [vmem:[%s307 + $0xa] sm:$0xf]
        %v342 = vld [vmem:[%s307 + $0x12] sm:$0xf]
        %v343 = vld [vmem:[%s307 + $0x1a] sm:$0xf]
        %v344 = vlaneseq
        %v345 = vshrl.u32 %v344, 7
        %v346 = vsub.s32 2, %v345
        %v347 = vrot.slane %v210, %v346
        %v348 = vmul.f32 %v340, %v347
        %v349 = vmul.f32 %v341, %v347
        %v350 = vmul.f32 %v342, %v347
        %v351 = vmul.f32 %v343, %v347
        %v352 = vadd.f32 %v336, %v348
        %v353 = vadd.f32 %v337, %v349
        %v354 = vadd.f32 %v338, %v350
        %v355 = vadd.f32 %v339, %v351
        %v356 = vld [vmem:[%s2] sm:$0x1]
        %v358 = vlaneseq
        %v359 = vshrl.u32 %v358, 7
        %v360 = vsub.s32 0, %v359
        %v361 = vrot.slane %v356, %v360
        %v363 = vadd.f32 %v352, %v361
        %v364 = vadd.f32 %v353, %v361
        %v365 = vadd.f32 %v354, %v361
        %v366 = vadd.f32 %v355, %v361
        %v367 = vadd.f32 %v363, %v191
        %v368 = vadd.f32 %v364, %v192
        %v369 = vadd.f32 %v365, %v193
        %v370 = vadd.f32 %v366, %v194
        %371 = vst.msk [vmem:[%s190] sm:$0xf] %vm203, %v367
        %372 = vst.msk [vmem:[%s190 + $0x4] sm:$0xf] %vm203, %v368
        %373 = vst.msk [vmem:[%s190 + $0x8] sm:$0xf] %vm203, %v369
        %374 = vst.msk [vmem:[%s190 + $0xc] sm:$0xf] %vm203, %v370
        %p375 = scmp.lt.s32.totalorder %s17, 1
        %s376 = scalar_select %p375, %s17, 1
        %s377 = smul.addr %s376, 4
        %s378 = smul.addr %s377, 4
        %s379 = scalar_lea.vmem %s3, %s378
        // Predicated region
        $region37: #{block_forward.6} parent=31 // pred_check
          %p380 = pneg %p103
        $region38: #{block_forward.6} parent=31 // pred_check_branch
          %382 = sbr.rel (%p380) target = $region40
        $region39: #{block_forward.6} parent=31 // pred_region
          _
        $region40: #{block_forward.6} parent=31 // pred_fallthru
          _
      $region32: #{block_forward.6} parent=5 // pred_fallthru
        _
      %p383 = scmp.le.s32.totalorder 2, %s12
      // Predicated region
      $region41: #{block_forward.6} parent=5 // pred_check
        %p384 = pneg %p383
      $region42: #{block_forward.6} parent=5 // pred_check_branch
        %386 = sbr.rel (%p384) target = $region44
      $region43: #{block_forward.6} parent=5 // pred_region
        %s387 = ssub.s32 %s12, 2
        // Predicated region
        $region45: #{block_forward.6} parent=43 // pred_check
          %p388 = pneg %p109
        $region46: #{block_forward.6} parent=43 // pred_check_branch
          %390 = sbr.rel (%p388) target = $region48
        $region47: #{block_forward.6} parent=43 // pred_region
          %p391 = scmp.lt.s32.totalorder %s18, 1
          %s392 = scalar_select %p391, %s18, 1
          %s393 = smul.addr %s392, 4
          %s394 = smul.addr %s393, 4
          %s395 = scalar_lea.vmem %s3, %s394
        $region48: #{block_forward.6} parent=43 // pred_fallthru
          _
      $region44: #{block_forward.6} parent=5 // pred_fallthru
        _
    $region6: #{block_forward.6} parent=1 // loop_footer
      %s16 = sadd.s32 1, %s12
    $region7: #{block_forward.6} parent=1 // loop_footer_branch
      %11 = sbr.rel target = $region3
    $region8: #{block_forward.6} parent=1 // loop_exit
      _
    %396 = vsyncpa [#allocation4], 1
    %s397 = scalar_lea.sflag [#allocation4], 1
    %398 = vsyncpa %s397, 1

// kernel: block_forward.9
$region0: #{block_forward.9}
  #allocation0 [shape = 'u32[]', space=smem, size = 0x4, offset = 0x4, fixed_abs, tag = 'smem constant byte address 0x4 - core index']
  #allocation1 [shape = 'u32[144,128]{1,0:T(1,128)}', space=vmem, size = 0x12000, scoped, tag = 'internal scratch']
  %s0 = inlined_call_operand.vmem [shape: bf16[2,16,64], index: 0, kind: input, shape index: {}]
  %s1 = inlined_call_operand.vmem [shape: bf16[2,16,32], index: 1, kind: input, shape index: {}]
  %s2 = inlined_call_operand.vmem [shape: bf16[2,16,64], index: 2, kind: input, shape index: {}]
  %s3 = inlined_call_operand.vmem [shape: f32[2,16,32], index: 3, kind: input, shape index: {}]
  %s4 = inlined_call_operand.vmem [shape: bf16[64,64], index: 4, kind: input, shape index: {}]
  %s5 = inlined_call_operand.vmem [shape: bf16[64,32], index: 5, kind: input, shape index: {}]
  %s6 = inlined_call_operand.vmem [shape: f32[1,32], index: 6, kind: input, shape index: {}]
  %s7 = inlined_call_operand.hbm [shape: f32[2,16,32], index: 7, kind: output, shape index: {0}]
  %s8 = inlined_call_operand.vmem [shape: f32[2,16,32], index: 8, kind: output, shape index: {1}]
  %9 = xla_tuple %s7, %s8
  %s10 = sld [smem:[#allocation0]]
  $region69: #{block_forward.9} parent=0
    _
  %s12 = ssub.s32 1, %s10
  %s13 = scalar_select 0, %s12, %s10
  $region1: #{block_forward.9} parent=0
    #allocation2 [shape = 'u8[16384]{0}', space=vmem, size = 0x4000, scoped, tag = 'output window, operand 0']
    #allocation3 [shape = 's32[2]{0}', space=sflag, size = 0x8, scoped, tag = 'scoped memory for block_forward.9']
    %14 = vsyncpa [#allocation3], 0
    %s15 = scalar_lea.sflag [#allocation3], 1
    %16 = vsyncpa %s15, 0
    loop: start=0, step=1, limit=4
    $region2: #{block_forward.9} parent=1 // loop_pre_header
      _
    $region3: #{block_forward.9} parent=1 // loop_header
      %s18 = sphi 0, %s22
      %p19 = scmp.ge.s32.totalorder %s18, 4
      %s28 = sphi 0, %s30
      %s31 = sphi 0, %s28
      %s32 = sphi 0, %s31
      %s48 = sphi 0, %s32
      %s54 = sphi 0, %s56
      %s57 = sphi 0, %s54
      %s58 = sphi 0, %s57
      %s74 = sphi 0, %s58
      %s80 = sphi 0, %s82
      %s83 = sphi 0, %s80
      %s84 = sphi 0, %s83
      %s100 = sphi 0, %s84
      %s106 = sphi 0, %s108
      %s109 = sphi 0, %s106
      %s110 = sphi 0, %s109
      %s126 = sphi 0, %s110
      %s130 = sphi 0, %s130
      %s132 = sphi 0, %s130
      %s133 = sphi 0, %s132
      %s147 = sphi 0, %s133
      %s151 = sphi 0, %s151
      %s153 = sphi 0, %s151
      %s154 = sphi 0, %s153
      %s168 = sphi 0, %s154
      %s172 = sphi 0, %s172
      %s174 = sphi 0, %s172
      %s175 = sphi 0, %s174
      %s189 = sphi 0, %s175
      %s195 = sphi 0, %s197
      %s198 = sphi 0, %s195
      %s199 = sphi 0, %s198
      %s215 = sphi 0, %s199
      %s221 = sphi 0, %s223
      %s224 = sphi 0, %s221
      %s225 = sphi 0, %s224
      %s241 = sphi 0, %s225
    $region4: #{block_forward.9} parent=1 // loop_header_branch
      %21 = sbr.rel (%p19) target = $region8
    $region5: #{block_forward.9} parent=1 // loop_body
      %s23 = ssub.s32 %s18, 1
      %s24 = ssub.s32 %s18, 2
      %s25 = sadd.s32 %s18, 1
      %s26 = ssub.s32 %s18, %s25
      %p27 = scmp.eq.s32.totalorder %s26, 0
      %s29 = sadd.s32 %s28, 1
      %s30 = scalar_select %p27, %s28, %s29
      %p33 = pneg %p27
      %p34 = scmp.eq.s32.totalorder %s18, 1
      %p35 = por %p33, %p34
      %p36 = scmp.ne.s32.totalorder %s28, %s31
      %p37 = scmp.eq.s32.totalorder %s18, 0
      %p38 = por %p36, %p37
      %p39 = scmp.ne.s32.totalorder %s28, %s31
      %p40 = scmp.eq.s32.totalorder %s23, 1
      %p41 = por %p39, %p40
      %p42 = scmp.ne.s32.totalorder %s31, %s32
      %p43 = scmp.eq.s32.totalorder %s23, 0
      %p44 = por %p42, %p43
      %p45 = scmp.ne.s32.totalorder %s31, %s32
      %p46 = scmp.eq.s32.totalorder %s24, 1
      %p47 = por %p45, %p46
      %p49 = scmp.ne.s32.totalorder %s32, %s48
      %p50 = scmp.eq.s32.totalorder %s24, 0
      %p51 = por %p49, %p50
      %s52 = ssub.s32 %s18, %s25
      %p53 = scmp.eq.s32.totalorder %s52, 0
      %s55 = sadd.s32 %s54, 1
      %s56 = scalar_select %p53, %s54, %s55
      %p59 = pneg %p53
      %p60 = scmp.eq.s32.totalorder %s18, 1
      %p61 = por %p59, %p60
      %p62 = scmp.ne.s32.totalorder %s54, %s57
      %p63 = scmp.eq.s32.totalorder %s18, 0
      %p64 = por %p62, %p63
      %p65 = scmp.ne.s32.totalorder %s54, %s57
      %p66 = scmp.eq.s32.totalorder %s23, 1
      %p67 = por %p65, %p66
      %p68 = scmp.ne.s32.totalorder %s57, %s58
      %p69 = scmp.eq.s32.totalorder %s23, 0
      %p70 = por %p68, %p69
      %p71 = scmp.ne.s32.totalorder %s57, %s58
      %p72 = scmp.eq.s32.totalorder %s24, 1
      %p73 = por %p71, %p72
      %p75 = scmp.ne.s32.totalorder %s58, %s74
      %p76 = scmp.eq.s32.totalorder %s24, 0
      %p77 = por %p75, %p76
      %s78 = ssub.s32 %s18, %s25
      %p79 = scmp.eq.s32.totalorder %s78, 0
      %s81 = sadd.s32 %s80, 1
      %s82 = scalar_select %p79, %s80, %s81
      %p85 = pneg %p79
      %p86 = scmp.eq.s32.totalorder %s18, 1
      %p87 = por %p85, %p86
      %p88 = scmp.ne.s32.totalorder %s80, %s83
      %p89 = scmp.eq.s32.totalorder %s18, 0
      %p90 = por %p88, %p89
      %p91 = scmp.ne.s32.totalorder %s80, %s83
      %p92 = scmp.eq.s32.totalorder %s23, 1
      %p93 = por %p91, %p92
      %p94 = scmp.ne.s32.totalorder %s83, %s84
      %p95 = scmp.eq.s32.totalorder %s23, 0
      %p96 = por %p94, %p95
      %p97 = scmp.ne.s32.totalorder %s83, %s84
      %p98 = scmp.eq.s32.totalorder %s24, 1
      %p99 = por %p97, %p98
      %p101 = scmp.ne.s32.totalorder %s84, %s100
      %p102 = scmp.eq.s32.totalorder %s24, 0
      %p103 = por %p101, %p102
      %s104 = ssub.s32 %s18, %s25
      %p105 = scmp.eq.s32.totalorder %s104, 0
      %s107 = sadd.s32 %s106, 1
      %s108 = scalar_select %p105, %s106, %s107
      %p111 = pneg %p105
      %p112 = scmp.eq.s32.totalorder %s18, 1
      %p113 = por %p111, %p112
      %p114 = scmp.ne.s32.totalorder %s106, %s109
      %p115 = scmp.eq.s32.totalorder %s18, 0
      %p116 = por %p114, %p115
      %p117 = scmp.ne.s32.totalorder %s106, %s109
      %p118 = scmp.eq.s32.totalorder %s23, 1
      %p119 = por %p117, %p118
      %p120 = scmp.ne.s32.totalorder %s109, %s110
      %p121 = scmp.eq.s32.totalorder %s23, 0
      %p122 = por %p120, %p121
      %p123 = scmp.ne.s32.totalorder %s109, %s110
      %p124 = scmp.eq.s32.totalorder %s24, 1
      %p125 = por %p123, %p124
      %p127 = scmp.ne.s32.totalorder %s110, %s126
      %p128 = scmp.eq.s32.totalorder %s24, 0
      %p129 = por %p127, %p128
      %s131 = sadd.s32 %s130, 1
      %p134 = scmp.eq.s32.totalorder %s18, 1
      %p135 = scmp.ne.s32.totalorder %s130, %s132
      %p136 = scmp.eq.s32.totalorder %s18, 0
      %p137 = por %p135, %p136
      %p138 = scmp.ne.s32.totalorder %s130, %s132
      %p139 = scmp.eq.s32.totalorder %s23, 1
      %p140 = por %p138, %p139
      %p141 = scmp.ne.s32.totalorder %s132, %s133
      %p142 = scmp.eq.s32.totalorder %s23, 0
      %p143 = por %p141, %p142
      %p144 = scmp.ne.s32.totalorder %s132, %s133
      %p145 = scmp.eq.s32.totalorder %s24, 1
      %p146 = por %p144, %p145
      %p148 = scmp.ne.s32.totalorder %s133, %s147
      %p149 = scmp.eq.s32.totalorder %s24, 0
      %p150 = por %p148, %p149
      %s152 = sadd.s32 %s151, 1
      %p155 = scmp.eq.s32.totalorder %s18, 1
      %p156 = scmp.ne.s32.totalorder %s151, %s153
      %p157 = scmp.eq.s32.totalorder %s18, 0
      %p158 = por %p156, %p157
      %p159 = scmp.ne.s32.totalorder %s151, %s153
      %p160 = scmp.eq.s32.totalorder %s23, 1
      %p161 = por %p159, %p160
      %p162 = scmp.ne.s32.totalorder %s153, %s154
      %p163 = scmp.eq.s32.totalorder %s23, 0
      %p164 = por %p162, %p163
      %p165 = scmp.ne.s32.totalorder %s153, %s154
      %p166 = scmp.eq.s32.totalorder %s24, 1
      %p167 = por %p165, %p166
      %p169 = scmp.ne.s32.totalorder %s154, %s168
      %p170 = scmp.eq.s32.totalorder %s24, 0
      %p171 = por %p169, %p170
      %s173 = sadd.s32 %s172, 1
      %p176 = scmp.eq.s32.totalorder %s18, 1
      %p177 = scmp.ne.s32.totalorder %s172, %s174
      %p178 = scmp.eq.s32.totalorder %s18, 0
      %p179 = por %p177, %p178
      %p180 = scmp.ne.s32.totalorder %s172, %s174
      %p181 = scmp.eq.s32.totalorder %s23, 1
      %p182 = por %p180, %p181
      %p183 = scmp.ne.s32.totalorder %s174, %s175
      %p184 = scmp.eq.s32.totalorder %s23, 0
      %p185 = por %p183, %p184
      %p186 = scmp.ne.s32.totalorder %s174, %s175
      %p187 = scmp.eq.s32.totalorder %s24, 1
      %p188 = por %p186, %p187
      %p190 = scmp.ne.s32.totalorder %s175, %s189
      %p191 = scmp.eq.s32.totalorder %s24, 0
      %p192 = por %p190, %p191
      %s193 = ssub.s32 %s18, %s25
      %p194 = scmp.eq.s32.totalorder %s193, 0
      %s196 = sadd.s32 %s195, 1
      %s197 = scalar_select %p194, %s195, %s196
      %p200 = pneg %p194
      %p201 = scmp.eq.s32.totalorder %s18, 1
      %p202 = por %p200, %p201
      %p203 = scmp.ne.s32.totalorder %s195, %s198
      %p204 = scmp.eq.s32.totalorder %s18, 0
      %p205 = por %p203, %p204
      %p206 = scmp.ne.s32.totalorder %s195, %s198
      %p207 = scmp.eq.s32.totalorder %s23, 1
      %p208 = por %p206, %p207
      %p209 = scmp.ne.s32.totalorder %s198, %s199
      %p210 = scmp.eq.s32.totalorder %s23, 0
      %p211 = por %p209, %p210
      %p212 = scmp.ne.s32.totalorder %s198, %s199
      %p213 = scmp.eq.s32.totalorder %s24, 1
      %p214 = por %p212, %p213
      %p216 = scmp.ne.s32.totalorder %s199, %s215
      %p217 = scmp.eq.s32.totalorder %s24, 0
      %p218 = por %p216, %p217
      %s219 = ssub.s32 %s18, %s25
      %p220 = scmp.eq.s32.totalorder %s219, 0
      %s222 = sadd.s32 %s221, 1
      %s223 = scalar_select %p220, %s221, %s222
      %p226 = pneg %p220
      %p227 = scmp.eq.s32.totalorder %s18, 1
      %p228 = por %p226, %p227
      %p229 = scmp.ne.s32.totalorder %s221, %s224
      %p230 = scmp.eq.s32.totalorder %s18, 0
      %p231 = por %p229, %p230
      %p232 = scmp.ne.s32.totalorder %s221, %s224
      %p233 = scmp.eq.s32.totalorder %s23, 1
      %p234 = por %p232, %p233
      %p235 = scmp.ne.s32.totalorder %s224, %s225
      %p236 = scmp.eq.s32.totalorder %s23, 0
      %p237 = por %p235, %p236
      %p238 = scmp.ne.s32.totalorder %s224, %s225
      %p239 = scmp.eq.s32.totalorder %s24, 1
      %p240 = por %p238, %p239
      %p242 = scmp.ne.s32.totalorder %s225, %s241
      %p243 = scmp.eq.s32.totalorder %s24, 0
      %p244 = por %p242, %p243
      %p245 = scmp.le.s32.totalorder 1, %s18
      %p246 = scmp.lt.s32.totalorder %s18, 3
      %p247 = pnand %p245, %p246
      %p248 = pneg %p247
      // Predicated region
      $region9: #{block_forward.9} parent=5 // pred_check
        _
      $region10: #{block_forward.9} parent=5 // pred_check_branch
        %250 = sbr.rel (%p247) target = $region12
      $region11: #{block_forward.9} parent=5 // pred_region
        %s251 = ssub.s32 %s18, 1
        // Predicated region
        $region13: #{block_forward.9} parent=11 // pred_check
          %p252 = pneg %p143
        $region14: #{block_forward.9} parent=11 // pred_check_branch
          %254 = sbr.rel (%p252) target = $region16
        $region15: #{block_forward.9} parent=11 // pred_region
          _
        $region16: #{block_forward.9} parent=11 // pred_fallthru
          _
        // Predicated region
        $region17: #{block_forward.9} parent=11 // pred_check
          %p255 = pneg %p164
        $region18: #{block_forward.9} parent=11 // pred_check_branch
          %257 = sbr.rel (%p255) target = $region20
        $region19: #{block_forward.9} parent=11 // pred_region
          _
        $region20: #{block_forward.9} parent=11 // pred_fallthru
          _
        // Predicated region
        $region21: #{block_forward.9} parent=11 // pred_check
          %p258 = pneg %p185
        $region22: #{block_forward.9} parent=11 // pred_check_branch
          %260 = sbr.rel (%p258) target = $region24
        $region23: #{block_forward.9} parent=11 // pred_region
          _
        $region24: #{block_forward.9} parent=11 // pred_fallthru
          _
      $region12: #{block_forward.9} parent=5 // pred_fallthru
        _
      %p261 = scmp.lt.s32.totalorder %s18, 2
      // Predicated region
      $region25: #{block_forward.9} parent=5 // pred_check
        %p262 = pneg %p261
      $region26: #{block_forward.9} parent=5 // pred_check_branch
        %264 = sbr.rel (%p262) target = $region28
      $region27: #{block_forward.9} parent=5 // pred_region
        // Predicated region
        $region29: #{block_forward.9} parent=27 // pred_check
          %p265 = pneg %p38
        $region30: #{block_forward.9} parent=27 // pred_check_branch
          %267 = sbr.rel (%p265) target = $region32
        $region31: #{block_forward.9} parent=27 // pred_region
          %p268 = scmp.lt.s32.totalorder %s18, 1
          %s269 = scalar_select %p268, %s18, 1
          %s270 = smul.addr %s269, 2
          %s271 = smul.addr %s270, 4
          %s272 = scalar_lea.vmem %s0, %s271
        $region32: #{block_forward.9} parent=27 // pred_fallthru
          _
        // Predicated region
        $region33: #{block_forward.9} parent=27 // pred_check
          %p273 = pneg %p64
        $region34: #{block_forward.9} parent=27 // pred_check_branch
          %275 = sbr.rel (%p273) target = $region36
        $region35: #{block_forward.9} parent=27 // pred_region
          %p276 = scmp.lt.s32.totalorder %s18, 1
          %s277 = scalar_select %p276, %s18, 1
          %s278 = smul.addr %s277, 2
          %s279 = smul.addr %s278, 4
          %s280 = scalar_lea.vmem %s1, %s279
        $region36: #{block_forward.9} parent=27 // pred_fallthru
          _
        // Predicated region
        $region37: #{block_forward.9} parent=27 // pred_check
          %p281 = pneg %p90
        $region38: #{block_forward.9} parent=27 // pred_check_branch
          %283 = sbr.rel (%p281) target = $region40
        $region39: #{block_forward.9} parent=27 // pred_region
          %p284 = scmp.lt.s32.totalorder %s18, 1
          %s285 = scalar_select %p284, %s18, 1
          %s286 = smul.addr %s285, 2
          %s287 = smul.addr %s286, 4
          %s288 = scalar_lea.vmem %s2, %s287
        $region40: #{block_forward.9} parent=27 // pred_fallthru
          _
        // Predicated region
        $region41: #{block_forward.9} parent=27 // pred_check
          %p289 = pneg %p116
        $region42: #{block_forward.9} parent=27 // pred_check_branch
          %291 = sbr.rel (%p289) target = $region44
        $region43: #{block_forward.9} parent=27 // pred_region
          %p292 = scmp.lt.s32.totalorder %s18, 1
          %s293 = scalar_select %p292, %s18, 1
          %s294 = smul.addr %s293, 2
          %s295 = smul.addr %s294, 8
          %s296 = scalar_lea.vmem %s3, %s295
        $region44: #{block_forward.9} parent=27 // pred_fallthru
          _
      $region28: #{block_forward.9} parent=5 // pred_fallthru
        _
      %p297 = scmp.le.s32.totalorder 1, %s18
      %p298 = scmp.lt.s32.totalorder %s18, 3
      %p299 = pnand %p297, %p298
      %p300 = pneg %p299
      // Predicated region
      $region45: #{block_forward.9} parent=5 // pred_check
        _
      $region46: #{block_forward.9} parent=5 // pred_check_branch
        %302 = sbr.rel (%p299) target = $region48
      $region47: #{block_forward.9} parent=5 // pred_region
        %s303 = ssub.s32 %s18, 1
        %p304 = scmp.lt.s32.totalorder %s23, 1
        %s305 = scalar_select %p304, %s23, 1
        %s306 = smul.addr %s305, 2
        %s307 = smul.addr %s306, 4
        %s308 = scalar_lea.vmem %s0, %s307
        %p309 = pneg %p44
        %p310 = pneg %p41
        %p311 = scmp.lt.s32.totalorder %s23, 1
        %s312 = scalar_select %p311, %s23, 1
        %s313 = smul.addr %s312, 2
        %s314 = smul.addr %s313, 4
        %s315 = scalar_lea.vmem %s1, %s314
        %p316 = pneg %p70
        %p317 = pneg %p67
        %p318 = scmp.lt.s32.totalorder %s23, 1
        %s319 = scalar_select %p318, %s23, 1
        %s320 = smul.addr %s319, 2
        %s321 = smul.addr %s320, 4
        %s322 = scalar_lea.vmem %s2, %s321
        %p323 = pneg %p96
        %p324 = pneg %p93
        %p325 = scmp.lt.s32.totalorder %s23, 1
        %s326 = scalar_select %p325, %s23, 1
        %s327 = smul.addr %s326, 2
        %s328 = smul.addr %s327, 8
        %s329 = scalar_lea.vmem %s3, %s328
        %p330 = pneg %p122
        %p331 = pneg %p119
        %p332 = pneg %p143
        %p333 = pneg %p140
        %p334 = pneg %p164
        %p335 = pneg %p161
        %p336 = pneg %p185
        %p337 = pneg %p182
        %p338 = pneg %p211
        %p339 = pneg %p208
        %s340 = sand.u32 %s198, 1
        %s341 = scalar_lea.sflag [#allocation3], %s340
        %s342 = sand.u32 %s198, 1
        %s343 = smul.addr %s342, 16
        %s344 = scalar_lea.vmem [#allocation2], %s343
        %p345 = pneg %p237
        %p346 = pneg %p234
        %p347 = scmp.lt.s32.totalorder %s23, 1
        %s348 = scalar_select %p347, %s23, 1
        %s349 = smul.addr %s348, 2
        %s350 = smul.addr %s349, 8
        %s351 = scalar_lea.vmem %s8, %s350
        %p352 = scmp.lt.s32.totalorder %s23, 1
        %s353 = scalar_select %p352, %s23, 1
        %s354 = smul.addr %s353, 2
        %s355 = smul.addr %s354, 4
        %s356 = scalar_lea.vmem %s0, %s355
        %p357 = scmp.lt.s32.totalorder %s23, 1
        %s358 = scalar_select %p357, %s23, 1
        %s359 = smul.addr %s358, 2
        %s360 = smul.addr %s359, 4
        %s361 = scalar_lea.vmem %s1, %s360
        %p362 = scmp.lt.s32.totalorder %s23, 1
        %s363 = scalar_select %p362, %s23, 1
        %s364 = smul.addr %s363, 2
        %s365 = smul.addr %s364, 4
        %s366 = scalar_lea.vmem %s2, %s365
        %p367 = scmp.lt.s32.totalorder %s23, 1
        %s368 = scalar_select %p367, %s23, 1
        %s369 = smul.addr %s368, 2
        %s370 = smul.addr %s369, 8
        %s371 = scalar_lea.vmem %s3, %s370
        %p372 = scmp.lt.s32.totalorder %s23, 1
        %s373 = scalar_select %p372, %s23, 1
        %s374 = smul.addr %s373, 2
        %s375 = smul.addr %s374, 8
        %s376 = scalar_lea.vmem %s8, %s375
        %v378 = vld [vmem:[%s356] sm:$0xf]
        %v379 = vld [vmem:[%s356 + $0x4] sm:$0xf]
        %v380 = vunpack.c.l.bf16 %v378
        %v381 = vunpack.c.l.bf16 %v379
        %v382 = vpack.c.bf16 %v381, %v380
        %vm383 = vcmask 64512
        %v384 = vsel %vm383, %v380, -inf
        %385 = vmax.xlane.f32.xlu0 %v384
        %v386 = vpop.xlane.xlu0 %385
        %v387 = vsel %vm383, %v381, -inf
        %388 = vmax.xlane.f32.xlu0 %v387
        %v389 = vpop.xlane.xlu0 %388
        %v390 = vsub.f32 %v380, %v386
        %v391 = vsub.f32 %v381, %v389
        %v392 = vmul.f32 %v390, 1.442695
        %v393 = vpow.pop %v392
        %v394 = vmul.f32 %v391, 1.442695
        %v395 = vpow.pop %v394
        %v396 = vsel %vm383, %v393, 0.0
        %397 = vadd.xlane.f32.xlu0 %v396
        %v398 = vpop.xlane.xlu0 %397
        %v399 = vsel %vm383, %v395, 0.0
        %400 = vadd.xlane.f32.xlu0 %v399
        %v401 = vpop.xlane.xlu0 %400
        %v402 = vrcp.pop %v398
        %v403 = vrcp.pop %v401
        %v404 = vmul.f32 %v393, %v402
        %v405 = vmul.f32 %v395, %v403
        %vm406 = vcmask 130112
        %v407 = vsel %vm406, %v380, -inf
        %408 = vmax.xlane.f32.xlu0 %v407
        %v409 = vpop.xlane.xlu0 %408
        %v410 = vsel %vm406, %v381, -inf
        %411 = vmax.xlane.f32.xlu0 %v410
        %v412 = vpop.xlane.xlu0 %411
        %v413 = vsub.f32 %v380, %v409
        %v414 = vsub.f32 %v381, %v412
        %v415 = vmul.f32 %v413, 1.442695
        %v416 = vpow.pop %v415
        %v417 = vmul.f32 %v414, 1.442695
        %v418 = vpow.pop %v417
        %421 = vrot.lane.b32.xlu0 %v416, 120
        %v422 = vpop.permute.xlu0 %421
        %423 = vrot.lane.b32.xlu0 %v418, 120
        %v424 = vpop.permute.xlu0 %423
        %v427 = vsel %vm383, %v422, 0.0
        %428 = vadd.xlane.f32.xlu0 %v427
        %v429 = vpop.xlane.xlu0 %428
        %v430 = vsel %vm383, %v424, 0.0
        %431 = vadd.xlane.f32.xlu0 %v430
        %v432 = vpop.xlane.xlu0 %431
        %v433 = vrcp.pop %v429
        %v434 = vrcp.pop %v432
        %v435 = vmul.f32 %v416, %v433
        %v436 = vmul.f32 %v418, %v434
        %vm437 = vcmask 195712
        %v438 = vsel %vm437, %v380, -inf
        %439 = vmax.xlane.f32.xlu0 %v438
        %v440 = vpop.xlane.xlu0 %439
        %v441 = vsel %vm437, %v381, -inf
        %442 = vmax.xlane.f32.xlu0 %v441
        %v443 = vpop.xlane.xlu0 %442
        %v444 = vsub.f32 %v380, %v440
        %v445 = vsub.f32 %v381, %v443
        %v446 = vmul.f32 %v444, 1.442695
        %v447 = vpow.pop %v446
        %v448 = vmul.f32 %v445, 1.442695
        %v449 = vpow.pop %v448
        %452 = vrot.lane.b32.xlu0 %v447, 112
        %v453 = vpop.permute.xlu0 %452
        %454 = vrot.lane.b32.xlu0 %v449, 112
        %v455 = vpop.permute.xlu0 %454
        %v458 = vsel %vm383, %v453, 0.0
        %459 = vadd.xlane.f32.xlu0 %v458
        %v460 = vpop.xlane.xlu0 %459
        %v461 = vsel %vm383, %v455, 0.0
        %462 = vadd.xlane.f32.xlu0 %v461
        %v463 = vpop.xlane.xlu0 %462
        %v464 = vrcp.pop %v460
        %v465 = vrcp.pop %v463
        %v466 = vmul.f32 %v447, %v464
        %v467 = vmul.f32 %v449, %v465
        %vm468 = vcmask 261312
        %v469 = vsel %vm468, %v380, -inf
        %470 = vmax.xlane.f32.xlu0 %v469
        %v471 = vpop.xlane.xlu0 %470
        %v472 = vsel %vm468, %v381, -inf
        %473 = vmax.xlane.f32.xlu0 %v472
        %v474 = vpop.xlane.xlu0 %473
        %v475 = vsub.f32 %v380, %v471
        %v476 = vsub.f32 %v381, %v474
        %v477 = vmul.f32 %v475, 1.442695
        %v478 = vpow.pop %v477
        %v479 = vmul.f32 %v476, 1.442695
        %v480 = vpow.pop %v479
        %483 = vrot.lane.b32.xlu0 %v478, 104
        %v484 = vpop.permute.xlu0 %483
        %485 = vrot.lane.b32.xlu0 %v480, 104
        %v486 = vpop.permute.xlu0 %485
        %v489 = vsel %vm383, %v484, 0.0
        %490 = vadd.xlane.f32.xlu0 %v489
        %v491 = vpop.xlane.xlu0 %490
        %v492 = vsel %vm383, %v486, 0.0
        %493 = vadd.xlane.f32.xlu0 %v492
        %v494 = vpop.xlane.xlu0 %493
        %v495 = vrcp.pop %v491
        %v496 = vrcp.pop %v494
        %v497 = vmul.f32 %v478, %v495
        %v498 = vmul.f32 %v480, %v496
        %v499 = vsel %vm383, %v404, %v435
        %v500 = vsel %vm383, %v405, %v436
        %vm501 = vcmask 130048
        %v502 = vsel %vm501, %v499, %v466
        %v503 = vsel %vm501, %v500, %v467
        %vm504 = vcmask 195584
        %v505 = vsel %vm504, %v502, %v497
        %v506 = vsel %vm504, %v503, %v498
        %v507 = vpack.c.bf16 %v506, %v505
        %508 = vxpose.xlu0.c.b16.start [1/8] %v507, 128
        %509 = vxpose.xlu0.c.b16.cont [2/8] 0, 128
        %510 = vxpose.xlu0.c.b16.cont [3/8] 0, 128
        %511 = vxpose.xlu0.c.b16.cont [4/8] 0, 128
        %512 = vxpose.xlu0.c.b16.cont [5/8] 0, 128
        %513 = vxpose.xlu0.c.b16.cont [6/8] 0, 128
        %514 = vxpose.xlu0.c.b16.cont [7/8] 0, 128
        %515 = vxpose.xlu0.c.b16.end [8/8] 0, 128
        %v516 = vpop.trf.xlu0
        %v517 = vpop.trf.xlu0
        %v518 = vpop.trf.xlu0
        %v519 = vpop.trf.xlu0
        %v520 = vpop.trf.xlu0
        %v521 = vpop.trf.xlu0
        %v522 = vpop.trf.xlu0
        %v523 = vpop.trf.xlu0
        %525 = vrot.lane.b32.xlu0 %v382, 96
        %v526 = vpop.permute.xlu0 %525
        %v529 = vsel %vm501, %v516, 0
        %v532 = vsel %vm501, %v517, 0
        %534 = vmatprep.subr.bf16.mxu0 0
        %535 = vmatpush1.bf16.msra.mxu0 0
        %536 = vmatprep.subr.bf16.mxu0 0
        %537 = vmatpush1.bf16.msra.mxu0 0
        %538 = vmatprep.subr.bf16.mxu0 0
        %539 = vmatpush1.bf16.msra.mxu0 0
        %540 = vmatprep.subr.bf16.mxu0 0
        %541 = vmatpush1.bf16.msra.mxu0 0
        %542 = vmatprep.subr.bf16.mxu0 0
        %543 = vmatpush1.bf16.msra.mxu0 0
        %544 = vmatprep.subr.bf16.mxu0 0
        %545 = vmatpush1.bf16.msra.mxu0 0
        %546 = vmatprep.subr.bf16.mxu0 0
        %547 = vmatpush1.bf16.msra.mxu0 0
        %548 = vmatprep.subr.bf16.mxu0 0
        %549 = vmatpush1.bf16.msra.mxu0 %v526
        %550 = vmatprep.subr.bf16.mxu0 0
        %551 = vmatpush2.bf16.msra.mxu0 0
        %552 = vmatprep.subr.bf16.mxu0 0
        %553 = vmatpush2.bf16.msra.mxu0 0
        %554 = vmatprep.subr.bf16.mxu0 0
        %555 = vmatpush2.bf16.msra.mxu0 0
        %556 = vmatprep.subr.bf16.mxu0 0
        %557 = vmatpush2.bf16.msra.mxu0 0
        %558 = vmatprep.subr.bf16.mxu0 0
        %559 = vmatpush2.bf16.msra.mxu0 0
        %560 = vmatprep.subr.bf16.mxu0 0
        %561 = vmatpush2.bf16.msra.mxu0 0
        %562 = vmatprep.subr.bf16.mxu0 0
        %563 = vmatpush2.bf16.msra.mxu0 0
        %564 = vmatprep.subr.bf16.mxu0 0
        %565 = vmatpush2.bf16.msra.mxu0 0
        %566 = vmatprep.mubr.bf16.mxu0 0
        %567 = vmatmul.mubr.bf16.gmra.mxu0 %v529
        %v568 = vpop.f32.mrf.mxu0
        %v569 = vadd.f32 0.0, %v568
        %v570 = vpop.f32.mrf.mxu0
        %v571 = vpop.f32.mrf.mxu0
        %v572 = vadd.f32 0.0, %v571
        %v573 = vpop.f32.mrf.mxu0
        %574 = vmatprep.mubr.bf16.mxu0 0
        %575 = vmatmul.mubr.bf16.gmra.mxu0 %v532
        %v576 = vpop.f32.mrf.mxu0
        %v577 = vadd.f32 0.0, %v576
        %v578 = vpop.f32.mrf.mxu0
        %v579 = vpop.f32.mrf.mxu0
        %v580 = vadd.f32 0.0, %v579
        %v581 = vpop.f32.mrf.mxu0
        %582 = vdwg.mxu0
        %v583 = vsel %vm383, %v569, %v572
        %v584 = vsel %vm501, %v583, %v577
        %v585 = vsel %vm504, %v584, %v580
        %587 = vrot.lane.b32.xlu0 %v585, 28
        %v588 = vpop.permute.xlu0 %587
        %590 = vrot.lane.b32.xlu0 %v585, 60
        %v591 = vpop.permute.xlu0 %590
        %vm593 = vcmask 261120
        %v594 = vsel %vm593, %v585, %v588
        %vm595 = vcmask 490496
        %v596 = vsel %vm595, %v594, %v591
        %v597 = vpack.c.bf16 %v596, %v596
        %v598 = vld [vmem:[%s4] sm:$0xf]
        %v599 = vld [vmem:[%s4 + $0x4] sm:$0xf]
        %v600 = vld [vmem:[%s4 + $0x8] sm:$0xf]
        %v601 = vld [vmem:[%s4 + $0xc] sm:$0xf]
        %v602 = vld [vmem:[%s4 + $0x10] sm:$0xf]
        %v603 = vld [vmem:[%s4 + $0x14] sm:$0xf]
        %v604 = vld [vmem:[%s4 + $0x18] sm:$0xf]
        %v605 = vld [vmem:[%s4 + $0x1c] sm:$0xf]
        %v614 = vunpack.c.l.b16 %v598
        %v615 = vunpack.c.l.b16 %v599
        %v616 = vunpack.c.l.b16 %v600
        %v617 = vunpack.c.l.b16 %v601
        %v618 = vunpack.c.l.b16 %v602
        %v619 = vunpack.c.l.b16 %v603
        %v620 = vunpack.c.l.b16 %v604
        %v621 = vunpack.c.l.b16 %v605
        %v622 = vpack.c.b16 %v615, %v614
        %v623 = vpack.c.b16 %v617, %v616
        %v624 = vpack.c.b16 %v619, %v618
        %v625 = vpack.c.b16 %v621, %v620
        %v630 = vmul.bf16 %v597, %v622
        %v631 = vmul.bf16 %v597, %v623
        %v632 = vmul.bf16 %v597, %v624
        %v633 = vmul.bf16 %v597, %v625
        %v634 = vld [vmem:[%s361] sm:$0xf]
        %v635 = vld [vmem:[%s361 + $0x4] sm:$0xf]
        %v636 = vunpack.c.l.bf16 %v634
        %v637 = vunpack.c.l.bf16 %v635
        %640 = vrot.lane.b32.xlu0 %v636, 28
        %v641 = vpop.permute.xlu0 %640
        %642 = vrot.lane.b32.xlu0 %v637, 28
        %v643 = vpop.permute.xlu0 %642
        %646 = vrot.lane.b32.xlu0 %v636, 60
        %v647 = vpop.permute.xlu0 %646
        %648 = vrot.lane.b32.xlu0 %v637, 60
        %v649 = vpop.permute.xlu0 %648
        %v652 = vsel %vm593, %v636, %v641
        %v653 = vsel %vm593, %v637, %v643
        %v654 = vsel %vm595, %v652, %v647
        %v655 = vsel %vm595, %v653, %v649
        %v656 = vpack.c.bf16 %v655, %v654
        %v657 = vld [vmem:[%s366] sm:$0xf]
        %v658 = vld [vmem:[%s366 + $0x4] sm:$0xf]
        %v659 = vunpack.c.l.bf16 %v657
        %v660 = vunpack.c.l.bf16 %v658
        %vm661 = vcmask 523264
        %v663 = vsel %vm661, %v656, 0
        %665 = vmatprep.subr.bf16.mxu0 0
        %666 = vmatpush1.bf16.msra.mxu0 0
        %667 = vmatprep.subr.bf16.mxu0 0
        %668 = vmatpush1.bf16.msra.mxu0 0
        %669 = vmatprep.subr.bf16.mxu0 0
        %670 = vmatpush1.bf16.msra.mxu0 0
        %671 = vmatprep.subr.bf16.mxu0 0
        %672 = vmatpush1.bf16.msra.mxu0 0
        %673 = vmatprep.subr.bf16.mxu0 0
        %674 = vmatpush1.bf16.msra.mxu0 %v633
        %675 = vmatprep.subr.bf16.mxu0 0
        %676 = vmatpush1.bf16.msra.mxu0 %v632
        %677 = vmatprep.subr.bf16.mxu0 0
        %678 = vmatpush1.bf16.msra.mxu0 %v631
        %679 = vmatprep.subr.bf16.mxu0 0
        %680 = vmatpush1.bf16.msra.mxu0 %v630
        %681 = vmatprep.subr.bf16.mxu0 0
        %682 = vmatpush2.bf16.msra.mxu0 0
        %683 = vmatprep.subr.bf16.mxu0 0
        %684 = vmatpush2.bf16.msra.mxu0 0
        %685 = vmatprep.subr.bf16.mxu0 0
        %686 = vmatpush2.bf16.msra.mxu0 0
        %687 = vmatprep.subr.bf16.mxu0 0
        %688 = vmatpush2.bf16.msra.mxu0 0
        %689 = vmatprep.subr.bf16.mxu0 0
        %690 = vmatpush2.bf16.msra.mxu0 0
        %691 = vmatprep.subr.bf16.mxu0 0
        %692 = vmatpush2.bf16.msra.mxu0 0
        %693 = vmatprep.subr.bf16.mxu0 0
        %694 = vmatpush2.bf16.msra.mxu0 0
        %695 = vmatprep.subr.bf16.mxu0 0
        %696 = vmatpush2.bf16.msra.mxu0 0
        %697 = vmatprep.mubr.bf16.mxu0 0
        %698 = vmatmul.mubr.bf16.gmra.mxu0 %v663
        %v699 = vpop.f32.mrf.mxu0
        %v700 = vadd.f32 %v659, %v699
        %v701 = vpop.f32.mrf.mxu0
        %v702 = vpop.f32.mrf.mxu0
        %v703 = vadd.f32 %v660, %v702
        %v704 = vpop.f32.mrf.mxu0
        %705 = vdwg.mxu0
        %v706 = vpack.c.bf16 %v703, %v700
        %v707 = vld [vmem:[%s5] sm:$0xf]
        %v708 = vld [vmem:[%s5 + $0x4] sm:$0xf]
        %v709 = vld [vmem:[%s5 + $0x8] sm:$0xf]
        %v710 = vld [vmem:[%s5 + $0xc] sm:$0xf]
        %v711 = vld [vmem:[%s5 + $0x10] sm:$0xf]
        %v712 = vld [vmem:[%s5 + $0x14] sm:$0xf]
        %v713 = vld [vmem:[%s5 + $0x18] sm:$0xf]
        %v714 = vld [vmem:[%s5 + $0x1c] sm:$0xf]
        %v715 = vld [vmem:[%s6] sm:$0x1]
        %v717 = vlaneseq
        %v718 = vshrl.u32 %v717, 7
        %v719 = vsub.s32 0, %v718
        %v720 = vrot.slane %v715, %v719
        %v730 = vunpack.c.l.b16 %v707
        %v731 = vunpack.c.l.b16 %v708
        %v732 = vunpack.c.l.b16 %v709
        %v733 = vunpack.c.l.b16 %v710
        %v734 = vunpack.c.l.b16 %v711
        %v735 = vunpack.c.l.b16 %v712
        %v736 = vunpack.c.l.b16 %v713
        %v737 = vunpack.c.l.b16 %v714
        %v738 = vpack.c.b16 %v731, %v730
        %v739 = vpack.c.b16 %v733, %v732
        %v740 = vpack.c.b16 %v735, %v734
        %v741 = vpack.c.b16 %v737, %v736
        %v747 = vsel %vm661, %v706, 0
        %749 = vmatprep.subr.bf16.mxu0 0
        %750 = vmatpush1.bf16.msra.mxu0 0
        %751 = vmatprep.subr.bf16.mxu0 0
        %752 = vmatpush1.bf16.msra.mxu0 0
        %753 = vmatprep.subr.bf16.mxu0 0
        %754 = vmatpush1.bf16.msra.mxu0 0
        %755 = vmatprep.subr.bf16.mxu0 0
        %756 = vmatpush1.bf16.msra.mxu0 0
        %757 = vmatprep.subr.bf16.mxu0 0
        %758 = vmatpush1.bf16.msra.mxu0 %v741
        %759 = vmatprep.subr.bf16.mxu0 0
        %760 = vmatpush1.bf16.msra.mxu0 %v740
        %761 = vmatprep.subr.bf16.mxu0 0
        %762 = vmatpush1.bf16.msra.mxu0 %v739
        %763 = vmatprep.subr.bf16.mxu0 0
        %764 = vmatpush1.bf16.msra.mxu0 %v738
        %765 = vmatprep.subr.bf16.mxu0 0
        %766 = vmatpush2.bf16.msra.mxu0 0
        %767 = vmatprep.subr.bf16.mxu0 0
        %768 = vmatpush2.bf16.msra.mxu0 0
        %769 = vmatprep.subr.bf16.mxu0 0
        %770 = vmatpush2.bf16.msra.mxu0 0
        %771 = vmatprep.subr.bf16.mxu0 0
        %772 = vmatpush2.bf16.msra.mxu0 0
        %773 = vmatprep.subr.bf16.mxu0 0
        %774 = vmatpush2.bf16.msra.mxu0 0
        %775 = vmatprep.subr.bf16.mxu0 0
        %776 = vmatpush2.bf16.msra.mxu0 0
        %777 = vmatprep.subr.bf16.mxu0 0
        %778 = vmatpush2.bf16.msra.mxu0 0
        %779 = vmatprep.subr.bf16.mxu0 0
        %780 = vmatpush2.bf16.msra.mxu0 0
        %781 = vmatprep.mubr.bf16.mxu0 0
        %782 = vmatmul.mubr.bf16.gmra.mxu0 %v747
        %v783 = vpop.f32.mrf.mxu0
        %v784 = vadd.f32 %v720, %v783
        %v785 = vpop.f32.mrf.mxu0
        %v786 = vpop.f32.mrf.mxu0
        %v787 = vadd.f32 %v720, %v786
        %v788 = vpop.f32.mrf.mxu0
        %789 = vdwg.mxu0
        %790 = vst.msk [vmem:[%s344] sm:$0xff] %vm593, %v784
        %791 = vst.msk [vmem:[%s344 + $0x8] sm:$0xff] %vm593, %v787
        %v792 = vld [vmem:[%s371] sm:$0xff]
        %v793 = vld [vmem:[%s371 + $0x8] sm:$0xff]
        %v794 = vadd.f32 %v792, %v784
        %v795 = vadd.f32 %v793, %v787
        %796 = vst.msk [vmem:[%s376] sm:$0xff] %vm593, %v794
        %797 = vst.msk [vmem:[%s376 + $0x8] sm:$0xff] %vm593, %v795
        %s798 = sand.u32 %s198, 1
        %s799 = scalar_lea.sflag [#allocation3], %s798
        %s800 = sand.u32 %s198, 1
        %s801 = smul.addr %s800, 16
        %s802 = scalar_lea.vmem [#allocation2], %s801
        %p803 = scmp.lt.s32.totalorder %s23, 1
        %s804 = scalar_select %p803, %s23, 1
        %s805 = smul.addr %s804, 2
        %s806 = smul.addr %s805, 8
        %s807 = scalar_lea.vmem %s8, %s806
        // Predicated region
        $region49: #{block_forward.9} parent=47 // pred_check
          %p808 = pneg %p208
        $region50: #{block_forward.9} parent=47 // pred_check_branch
          %810 = sbr.rel (%p808) target = $region52
        $region51: #{block_forward.9} parent=47 // pred_region
          %s812 = ssub.s32 256, 256
          %813 = vsyncadd %s799, %s812
          %s814 = smul.addr %s23, 2
          %s815 = smul.addr %s814, 128
          %s816 = scalar_lea.hbm %s7, %s815
          %s817 = sshll.u32 %s802, 4
          %s818 = int_to_ptr.vmem [resolvable:$true] %s817
          %823 = dma.vmem_to_hbm [thread:$0]  %s818, 256, %s816, %s799, 128, 128, 8
        $region52: #{block_forward.9} parent=47 // pred_fallthru
          _
        // Predicated region
        $region53: #{block_forward.9} parent=47 // pred_check
          %p824 = pneg %p234
        $region54: #{block_forward.9} parent=47 // pred_check_branch
          %826 = sbr.rel (%p824) target = $region56
        $region55: #{block_forward.9} parent=47 // pred_region
          _
        $region56: #{block_forward.9} parent=47 // pred_fallthru
          _
      $region48: #{block_forward.9} parent=5 // pred_fallthru
        _
      %p827 = scmp.le.s32.totalorder 2, %s18
      // Predicated region
      $region57: #{block_forward.9} parent=5 // pred_check
        %p828 = pneg %p827
      $region58: #{block_forward.9} parent=5 // pred_check_branch
        %830 = sbr.rel (%p828) target = $region60
      $region59: #{block_forward.9} parent=5 // pred_region
        %s831 = ssub.s32 %s18, 2
        // Predicated region
        $region61: #{block_forward.9} parent=59 // pred_check
          %p832 = pneg %p214
        $region62: #{block_forward.9} parent=59 // pred_check_branch
          %834 = sbr.rel (%p832) target = $region64
        $region63: #{block_forward.9} parent=59 // pred_region
          %s835 = sand.u32 %s199, 1
          %s836 = scalar_lea.sflag [#allocation3], %s835
          %s837 = sand.u32 %s199, 1
          %s838 = smul.addr %s837, 16
          %s839 = scalar_lea.vmem [#allocation2], %s838
          %840 = dma.done %s836, 256
        $region64: #{block_forward.9} parent=59 // pred_fallthru
          _
        // Predicated region
        $region65: #{block_forward.9} parent=59 // pred_check
          %p841 = pneg %p240
        $region66: #{block_forward.9} parent=59 // pred_check_branch
          %843 = sbr.rel (%p841) target = $region68
        $region67: #{block_forward.9} parent=59 // pred_region
          %p844 = scmp.lt.s32.totalorder %s24, 1
          %s845 = scalar_select %p844, %s24, 1
          %s846 = smul.addr %s845, 2
          %s847 = smul.addr %s846, 8
          %s848 = scalar_lea.vmem %s8, %s847
        $region68: #{block_forward.9} parent=59 // pred_fallthru
          _
      $region60: #{block_forward.9} parent=5 // pred_fallthru
        _
    $region6: #{block_forward.9} parent=1 // loop_footer
      %s22 = sadd.s32 1, %s18
    $region7: #{block_forward.9} parent=1 // loop_footer_branch
      %17 = sbr.rel target = $region3
    $region8: #{block_forward.9} parent=1 // loop_exit
      _
    %849 = vsyncpa [#allocation3], 1
    %s850 = scalar_lea.sflag [#allocation3], 1
    %851 = vsyncpa %s850, 1

// kernel: block_forward.11
$region0: #{block_forward.11}
  #allocation0 [shape = 'u32[]', space=smem, size = 0x4, offset = 0x4, fixed_abs, tag = 'smem constant byte address 0x4 - core index']
  #allocation1 [shape = 'u32[144,128]{1,0:T(1,128)}', space=vmem, size = 0x12000, scoped, tag = 'internal scratch']
  #allocation2 [shape = 'f32[32,32]{1,0:T(8,128)}', space=vmem, size = 0x4000, scoped, tag = 'scratch operand']
  %s0 = inlined_call_operand.vmem [shape: bf16[32,128], index: 0, kind: input, shape index: {}]
  %s1 = inlined_call_operand.vmem [shape: bf16[128,32], index: 1, kind: input, shape index: {}]
  %s2 = inlined_call_operand.vmem [shape: f32[1,32], index: 2, kind: input, shape index: {}]
  %s3 = inlined_call_operand.vmem [shape: f32[32,32], index: 3, kind: input, shape index: {}]
  %s4 = inlined_call_operand.hbm [shape: f32[32,32], index: 4, kind: output, shape index: {}]
  %s5 = sld [smem:[#allocation0]]
  $region34: #{block_forward.11} parent=0
    _
  %s7 = ssub.s32 1, %s5
  %s8 = scalar_select 0, %s7, %s5
  $region1: #{block_forward.11} parent=0
    #allocation3 [shape = 'u8[16384]{0}', space=vmem, size = 0x4000, scoped, tag = 'output window, operand 0, single buffered']
    #allocation4 [shape = 's32[1]{0}', space=sflag, size = 0x4, scoped, tag = 'scoped memory for block_forward.11']
    %9 = vsyncpa [#allocation4], 0
    // Predicated region
    $region2: #{block_forward.11} parent=1 // pred_check
      _
    $region3: #{block_forward.11} parent=1 // pred_check_branch
      %11 = sbr.rel (0) target = $region5
    $region4: #{block_forward.11} parent=1 // pred_region
      _
    $region5: #{block_forward.11} parent=1 // pred_fallthru
      _
    // Predicated region
    $region6: #{block_forward.11} parent=1 // pred_check
      _
    $region7: #{block_forward.11} parent=1 // pred_check_branch
      %13 = sbr.rel (0) target = $region9
    $region8: #{block_forward.11} parent=1 // pred_region
      _
    $region9: #{block_forward.11} parent=1 // pred_fallthru
      _
    // Predicated region
    $region10: #{block_forward.11} parent=1 // pred_check
      _
    $region11: #{block_forward.11} parent=1 // pred_check_branch
      %15 = sbr.rel (0) target = $region13
    $region12: #{block_forward.11} parent=1 // pred_region
      _
    $region13: #{block_forward.11} parent=1 // pred_fallthru
      _
    // Predicated region
    $region14: #{block_forward.11} parent=1 // pred_check
      _
    $region15: #{block_forward.11} parent=1 // pred_check_branch
      %17 = sbr.rel (0) target = $region17
    $region16: #{block_forward.11} parent=1 // pred_region
      _
    $region17: #{block_forward.11} parent=1 // pred_fallthru
      _
    %p19 = scmp.eq.s32.totalorder 0, 0
    // Predicated region
    $region18: #{block_forward.11} parent=1 // pred_check
      %p20 = pneg %p19
    $region19: #{block_forward.11} parent=1 // pred_check_branch
      %22 = sbr.rel (%p20) target = $region21
    $region20: #{block_forward.11} parent=1 // pred_region
      %vm23 = vcmask 261120
      %24 = vst.msk [vmem:[#allocation2] sm:$0xff] %vm23, 0.0
      %25 = vst.msk [vmem:[#allocation2 + $0x8] sm:$0xff] %vm23, 0.0
      %26 = vst.msk [vmem:[#allocation2 + $0x10] sm:$0xff] %vm23, 0.0
      %27 = vst.msk [vmem:[#allocation2 + $0x18] sm:$0xff] %vm23, 0.0
    $region21: #{block_forward.11} parent=1 // pred_fallthru
      _
    %v28 = vld [vmem:[#allocation2] sm:$0xff]
    %v29 = vld [vmem:[#allocation2 + $0x8] sm:$0xff]
    %v30 = vld [vmem:[#allocation2 + $0x10] sm:$0xff]
    %v31 = vld [vmem:[#allocation2 + $0x18] sm:$0xff]
    %v32 = vld [vmem:[%s0] sm:$0xf]
    %v33 = vld [vmem:[%s0 + $0x4] sm:$0xf]
    %v34 = vld [vmem:[%s0 + $0x8] sm:$0xf]
    %v35 = vld [vmem:[%s0 + $0xc] sm:$0xf]
    %v36 = vld [vmem:[%s1] sm:$0xf]
    %v37 = vld [vmem:[%s1 + $0x4] sm:$0xf]
    %v38 = vld [vmem:[%s1 + $0x8] sm:$0xf]
    %v39 = vld [vmem:[%s1 + $0xc] sm:$0xf]
    %v40 = vld [vmem:[%s1 + $0x10] sm:$0xf]
    %v41 = vld [vmem:[%s1 + $0x14] sm:$0xf]
    %v42 = vld [vmem:[%s1 + $0x18] sm:$0xf]
    %v43 = vld [vmem:[%s1 + $0x1c] sm:$0xf]
    %v44 = vld [vmem:[%s1 + $0x20] sm:$0xf]
    %v45 = vld [vmem:[%s1 + $0x24] sm:$0xf]
    %v46 = vld [vmem:[%s1 + $0x28] sm:$0xf]
    %v47 = vld [vmem:[%s1 + $0x2c] sm:$0xf]
    %v48 = vld [vmem:[%s1 + $0x30] sm:$0xf]
    %v49 = vld [vmem:[%s1 + $0x34] sm:$0xf]
    %v50 = vld [vmem:[%s1 + $0x38] sm:$0xf]
    %v51 = vld [vmem:[%s1 + $0x3c] sm:$0xf]
    %v56 = vunpack.c.l.b16 %v32
    %v57 = vunpack.c.l.b16 %v33
    %v58 = vunpack.c.l.b16 %v34
    %v59 = vunpack.c.l.b16 %v35
    %v60 = vpack.c.b16 %v57, %v56
    %v61 = vpack.c.b16 %v59, %v58
    %v80 = vunpack.c.l.b16 %v36
    %v81 = vunpack.c.l.b16 %v37
    %v82 = vunpack.c.l.b16 %v38
    %v83 = vunpack.c.l.b16 %v39
    %v84 = vunpack.c.l.b16 %v40
    %v85 = vunpack.c.l.b16 %v41
    %v86 = vunpack.c.l.b16 %v42
    %v87 = vunpack.c.l.b16 %v43
    %v88 = vunpack.c.l.b16 %v44
    %v89 = vunpack.c.l.b16 %v45
    %v90 = vunpack.c.l.b16 %v46
    %v91 = vunpack.c.l.b16 %v47
    %v92 = vunpack.c.l.b16 %v48
    %v93 = vunpack.c.l.b16 %v49
    %v94 = vunpack.c.l.b16 %v50
    %v95 = vunpack.c.l.b16 %v51
    %v96 = vpack.c.b16 %v81, %v80
    %v97 = vpack.c.b16 %v83, %v82
    %v98 = vpack.c.b16 %v85, %v84
    %v99 = vpack.c.b16 %v87, %v86
    %v100 = vpack.c.b16 %v89, %v88
    %v101 = vpack.c.b16 %v91, %v90
    %v102 = vpack.c.b16 %v93, %v92
    %v103 = vpack.c.b16 %v95, %v94
    %112 = vmatprep.subr.bf16.mxu0 0
    %113 = vmatpush1.bf16.msra.mxu0 %v103
    %114 = vmatprep.subr.bf16.mxu0 0
    %115 = vmatpush1.bf16.msra.mxu0 %v102
    %116 = vmatprep.subr.bf16.mxu0 0
    %117 = vmatpush1.bf16.msra.mxu0 %v101
    %118 = vmatprep.subr.bf16.mxu0 0
    %119 = vmatpush1.bf16.msra.mxu0 %v100
    %120 = vmatprep.subr.bf16.mxu0 0
    %121 = vmatpush1.bf16.msra.mxu0 %v99
    %122 = vmatprep.subr.bf16.mxu0 0
    %123 = vmatpush1.bf16.msra.mxu0 %v98
    %124 = vmatprep.subr.bf16.mxu0 0
    %125 = vmatpush1.bf16.msra.mxu0 %v97
    %126 = vmatprep.subr.bf16.mxu0 0
    %127 = vmatpush1.bf16.msra.mxu0 %v96
    %128 = vmatprep.subr.bf16.mxu0 0
    %129 = vmatpush2.bf16.msra.mxu0 0
    %130 = vmatprep.subr.bf16.mxu0 0
    %131 = vmatpush2.bf16.msra.mxu0 0
    %132 = vmatprep.subr.bf16.mxu0 0
    %133 = vmatpush2.bf16.msra.mxu0 0
    %134 = vmatprep.subr.bf16.mxu0 0
    %135 = vmatpush2.bf16.msra.mxu0 0
    %136 = vmatprep.subr.bf16.mxu0 0
    %137 = vmatpush2.bf16.msra.mxu0 0
    %138 = vmatprep.subr.bf16.mxu0 0
    %139 = vmatpush2.bf16.msra.mxu0 0
    %140 = vmatprep.subr.bf16.mxu0 0
    %141 = vmatpush2.bf16.msra.mxu0 0
    %142 = vmatprep.subr.bf16.mxu0 0
    %143 = vmatpush2.bf16.msra.mxu0 0
    %144 = vmatprep.mubr.bf16.mxu0 0
    %145 = vmatmul.mubr.bf16.gmra.mxu0 %v60
    %v146 = vpop.f32.mrf.mxu0
    %v147 = vadd.f32 0.0, %v146
    %v148 = vpop.f32.mrf.mxu0
    %v149 = vpop.f32.mrf.mxu0
    %v150 = vadd.f32 0.0, %v149
    %v151 = vpop.f32.mrf.mxu0
    %152 = vmatprep.mubr.bf16.mxu0 0
    %153 = vmatmul.mubr.bf16.gmra.mxu0 %v61
    %v154 = vpop.f32.mrf.mxu0
    %v155 = vadd.f32 0.0, %v154
    %v156 = vpop.f32.mrf.mxu0
    %v157 = vpop.f32.mrf.mxu0
    %v158 = vadd.f32 0.0, %v157
    %v159 = vpop.f32.mrf.mxu0
    %160 = vdwg.mxu0
    %v161 = vadd.f32 %v28, %v147
    %v162 = vadd.f32 %v29, %v150
    %v163 = vadd.f32 %v30, %v155
    %v164 = vadd.f32 %v31, %v158
    %vm165 = vcmask 261120
    %166 = vst.msk [vmem:[#allocation2] sm:$0xff] %vm165, %v161
    %167 = vst.msk [vmem:[#allocation2 + $0x8] sm:$0xff] %vm165, %v162
    %168 = vst.msk [vmem:[#allocation2 + $0x10] sm:$0xff] %vm165, %v163
    %169 = vst.msk [vmem:[#allocation2 + $0x18] sm:$0xff] %vm165, %v164
    // Predicated region
    $region22: #{block_forward.11} parent=1 // pred_check
      %p170 = pneg %p19
    $region23: #{block_forward.11} parent=1 // pred_check_branch
      %172 = sbr.rel (%p170) target = $region25
    $region24: #{block_forward.11} parent=1 // pred_region
      %v173 = vld [vmem:[#allocation2] sm:$0xff]
      %v174 = vld [vmem:[#allocation2 + $0x8] sm:$0xff]
      %v175 = vld [vmem:[#allocation2 + $0x10] sm:$0xff]
      %v176 = vld [vmem:[#allocation2 + $0x18] sm:$0xff]
      %v177 = vld [vmem:[%s2] sm:$0x1]
      %v179 = vlaneseq
      %v180 = vshrl.u32 %v179, 7
      %v181 = vsub.s32 0, %v180
      %v182 = vrot.slane %v177, %v181
      %v184 = vadd.f32 %v173, %v182
      %v185 = vadd.f32 %v174, %v182
      %v186 = vadd.f32 %v175, %v182
      %v187 = vadd.f32 %v176, %v182
      %v188 = vld [vmem:[%s3] sm:$0xff]
      %v189 = vld [vmem:[%s3 + $0x8] sm:$0xff]
      %v190 = vld [vmem:[%s3 + $0x10] sm:$0xff]
      %v191 = vld [vmem:[%s3 + $0x18] sm:$0xff]
      %v192 = vadd.f32 %v184, %v188
      %v193 = vadd.f32 %v185, %v189
      %v194 = vadd.f32 %v186, %v190
      %v195 = vadd.f32 %v187, %v191
      %196 = vst.msk [vmem:[#allocation3] sm:$0xff] %vm165, %v192
      %197 = vst.msk [vmem:[#allocation3 + $0x8] sm:$0xff] %vm165, %v193
      %198 = vst.msk [vmem:[#allocation3 + $0x10] sm:$0xff] %vm165, %v194
      %199 = vst.msk [vmem:[#allocation3 + $0x18] sm:$0xff] %vm165, %v195
    $region25: #{block_forward.11} parent=1 // pred_fallthru
      _
    // Predicated region
    $region26: #{block_forward.11} parent=1 // pred_check
      _
    $region27: #{block_forward.11} parent=1 // pred_check_branch
      %201 = sbr.rel (0) target = $region29
    $region28: #{block_forward.11} parent=1 // pred_region
      %s203 = ssub.s32 512, 512
      %204 = vsyncadd [#allocation4], %s203
      %s205 = sshll.u32 [#allocation3], 4
      %s206 = int_to_ptr.vmem [resolvable:$true] %s205
      %211 = dma.vmem_to_hbm [thread:$0]  %s206, 512, %s4, [#allocation4], 128, 128, 8
    $region29: #{block_forward.11} parent=1 // pred_fallthru
      _
    // Predicated region
    $region30: #{block_forward.11} parent=1 // pred_check
      _
    $region31: #{block_forward.11} parent=1 // pred_check_branch
      %213 = sbr.rel (0) target = $region33
    $region32: #{block_forward.11} parent=1 // pred_region
      %214 = dma.done [#allocation4], 512
    $region33: #{block_forward.11} parent=1 // pred_fallthru
      _
    %215 = vsyncpa [#allocation4], 1

// kernel: block_forward.10
$region0: #{block_forward.10}
  #allocation0 [shape = 'u32[]', space=smem, size = 0x4, offset = 0x4, fixed_abs, tag = 'smem constant byte address 0x4 - core index']
  #allocation1 [shape = 'u32[144,128]{1,0:T(1,128)}', space=vmem, size = 0x12000, scoped, tag = 'internal scratch']
  #allocation2 [shape = 'bf16[32,32]{1,0:T(8,128)(2,1)}', space=vmem, size = 0x2000, scoped, tag = 'scratch operand']
  %s0 = inlined_call_operand.vmem [shape: f32[32,32], index: 0, kind: input, shape index: {}]
  %s1 = inlined_call_operand.vmem [shape: f32[1,32], index: 1, kind: input, shape index: {}]
  %s2 = inlined_call_operand.vmem [shape: f32[1,32], index: 2, kind: input, shape index: {}]
  %s3 = inlined_call_operand.vmem [shape: bf16[32,128], index: 3, kind: input, shape index: {}]
  %s4 = inlined_call_operand.vmem [shape: f32[1,128], index: 4, kind: input, shape index: {}]
  %s5 = inlined_call_operand.vmem [shape: bf16[32,128], index: 5, kind: output, shape index: {}]
  %s6 = sld [smem:[#allocation0]]
  $region34: #{block_forward.10} parent=0
    _
  %s8 = ssub.s32 1, %s6
  %s9 = scalar_select 0, %s8, %s6
  // Predicated region
  $region2: #{block_forward.10} parent=0 // pred_check
    _
  $region3: #{block_forward.10} parent=0 // pred_check_branch
    %11 = sbr.rel (0) target = $region5
  $region4: #{block_forward.10} parent=0 // pred_region
    _
  $region5: #{block_forward.10} parent=0 // pred_fallthru
    _
  // Predicated region
  $region6: #{block_forward.10} parent=0 // pred_check
    _
  $region7: #{block_forward.10} parent=0 // pred_check_branch
    %13 = sbr.rel (0) target = $region9
  $region8: #{block_forward.10} parent=0 // pred_region
    _
  $region9: #{block_forward.10} parent=0 // pred_fallthru
    _
  // Predicated region
  $region10: #{block_forward.10} parent=0 // pred_check
    _
  $region11: #{block_forward.10} parent=0 // pred_check_branch
    %15 = sbr.rel (0) target = $region13
  $region12: #{block_forward.10} parent=0 // pred_region
    _
  $region13: #{block_forward.10} parent=0 // pred_fallthru
    _
  // Predicated region
  $region14: #{block_forward.10} parent=0 // pred_check
    _
  $region15: #{block_forward.10} parent=0 // pred_check_branch
    %17 = sbr.rel (0) target = $region17
  $region16: #{block_forward.10} parent=0 // pred_region
    _
  $region17: #{block_forward.10} parent=0 // pred_fallthru
    _
  // Predicated region
  $region18: #{block_forward.10} parent=0 // pred_check
    _
  $region19: #{block_forward.10} parent=0 // pred_check_branch
    %19 = sbr.rel (0) target = $region21
  $region20: #{block_forward.10} parent=0 // pred_region
    _
  $region21: #{block_forward.10} parent=0 // pred_fallthru
    _
  %p21 = scmp.eq.s32.totalorder 0, 0
  // Predicated region
  $region22: #{block_forward.10} parent=0 // pred_check
    %p22 = pneg %p21
  $region23: #{block_forward.10} parent=0 // pred_check_branch
    %24 = sbr.rel (%p22) target = $region25
  $region24: #{block_forward.10} parent=0 // pred_region
    %v25 = vld [vmem:[%s0] sm:$0xff]
    %v26 = vld [vmem:[%s0 + $0x8] sm:$0xff]
    %v27 = vld [vmem:[%s0 + $0x10] sm:$0xff]
    %v28 = vld [vmem:[%s0 + $0x18] sm:$0xff]
    %vm29 = vcmask 261120
    %v30 = vsel %vm29, %v25, 0.0
    %31 = vadd.xlane.f32.xlu0 %v30
    %v32 = vpop.xlane.xlu0 %31
    %v33 = vsel %vm29, %v26, 0.0
    %34 = vadd.xlane.f32.xlu0 %v33
    %v35 = vpop.xlane.xlu0 %34
    %v36 = vsel %vm29, %v27, 0.0
    %37 = vadd.xlane.f32.xlu0 %v36
    %v38 = vpop.xlane.xlu0 %37
    %v39 = vsel %vm29, %v28, 0.0
    %40 = vadd.xlane.f32.xlu0 %v39
    %v41 = vpop.xlane.xlu0 %40
    %v42 = vrcp.pop 32.0
    %v43 = vmul.f32 %v32, %v42
    %v44 = vmul.f32 %v35, %v42
    %v45 = vmul.f32 %v38, %v42
    %v46 = vmul.f32 %v41, %v42
    %v47 = vsub.f32 %v25, %v43
    %v48 = vsub.f32 %v26, %v44
    %v49 = vsub.f32 %v27, %v45
    %v50 = vsub.f32 %v28, %v46
    %v51 = vmul.f32 %v47, %v47
    %v52 = vmul.f32 %v48, %v48
    %v53 = vmul.f32 %v49, %v49
    %v54 = vmul.f32 %v50, %v50
    %v55 = vsel %vm29, %v51, 0.0
    %56 = vadd.xlane.f32.xlu0 %v55
    %v57 = vpop.xlane.xlu0 %56
    %v58 = vsel %vm29, %v52, 0.0
    %59 = vadd.xlane.f32.xlu0 %v58
    %v60 = vpop.xlane.xlu0 %59
    %v61 = vsel %vm29, %v53, 0.0
    %62 = vadd.xlane.f32.xlu0 %v61
    %v63 = vpop.xlane.xlu0 %62
    %v64 = vsel %vm29, %v54, 0.0
    %65 = vadd.xlane.f32.xlu0 %v64
    %v66 = vpop.xlane.xlu0 %65
    %v67 = vmul.f32 %v57, %v42
    %v68 = vmul.f32 %v60, %v42
    %v69 = vmul.f32 %v63, %v42
    %v70 = vmul.f32 %v66, %v42
    %v71 = vadd.f32 %v67, 1e-05
    %v72 = vadd.f32 %v68, 1e-05
    %v73 = vadd.f32 %v69, 1e-05
    %v74 = vadd.f32 %v70, 1e-05
    %v75 = vrsqrt.pop %v71
    %v76 = vrsqrt.pop %v72
    %v77 = vrsqrt.pop %v73
    %v78 = vrsqrt.pop %v74
    %v79 = vmul.f32 %v47, %v75
    %v80 = vmul.f32 %v48, %v76
    %v81 = vmul.f32 %v49, %v77
    %v82 = vmul.f32 %v50, %v78
    %v83 = vld [vmem:[%s1] sm:$0x1]
    %v85 = vlaneseq
    %v86 = vshrl.u32 %v85, 7
    %v87 = vsub.s32 0, %v86
    %v88 = vrot.slane %v83, %v87
    %v90 = vmul.f32 %v79, %v88
    %v91 = vmul.f32 %v80, %v88
    %v92 = vmul.f32 %v81, %v88
    %v93 = vmul.f32 %v82, %v88
    %v94 = vld [vmem:[%s2] sm:$0x1]
    %v96 = vlaneseq
    %v97 = vshrl.u32 %v96, 7
    %v98 = vsub.s32 0, %v97
    %v99 = vrot.slane %v94, %v98
    %v101 = vadd.f32 %v90, %v99
    %v102 = vadd.f32 %v91, %v99
    %v103 = vadd.f32 %v92, %v99
    %v104 = vadd.f32 %v93, %v99
    %v105 = vpack.c.bf16 %v102, %v101
    %v106 = vpack.c.bf16 %v104, %v103
    %v109 = vunpack.c.l.b16 %v105
    %v110 = vunpack.c.h.b16 %v105
    %v111 = vunpack.c.l.b16 %v106
    %v112 = vunpack.c.h.b16 %v106
    %v113 = vpack.c.b16 %v109, %v109
    %v114 = vpack.c.b16 %v110, %v110
    %v115 = vpack.c.b16 %v111, %v111
    %v116 = vpack.c.b16 %v112, %v112
    %vm121 = vcmask 257024
    %122 = vst.msk [vmem:[#allocation2] sm:$0xf] %vm121, %v113
    %123 = vst.msk [vmem:[#allocation2 + $0x4] sm:$0xf] %vm121, %v114
    %124 = vst.msk [vmem:[#allocation2 + $0x8] sm:$0xf] %vm121, %v115
    %125 = vst.msk [vmem:[#allocation2 + $0xc] sm:$0xf] %vm121, %v116
  $region25: #{block_forward.10} parent=0 // pred_fallthru
    _
  %v126 = vld [vmem:[#allocation2] sm:$0xf]
  %v127 = vld [vmem:[#allocation2 + $0x4] sm:$0xf]
  %v128 = vld [vmem:[#allocation2 + $0x8] sm:$0xf]
  %v129 = vld [vmem:[#allocation2 + $0xc] sm:$0xf]
  %v130 = vld [vmem:[%s3] sm:$0xf]
  %v131 = vld [vmem:[%s3 + $0x4] sm:$0xf]
  %v132 = vld [vmem:[%s3 + $0x8] sm:$0xf]
  %v133 = vld [vmem:[%s3 + $0xc] sm:$0xf]
  %v134 = vld [vmem:[%s4] sm:$0x1]
  %v136 = vlaneseq
  %v137 = vshrl.u32 %v136, 7
  %v138 = vsub.s32 0, %v137
  %v139 = vrot.slane %v134, %v138
  %v145 = vunpack.c.l.b16 %v126
  %v146 = vunpack.c.l.b16 %v127
  %v147 = vunpack.c.l.b16 %v128
  %v148 = vunpack.c.l.b16 %v129
  %v149 = vpack.c.b16 %v146, %v145
  %v150 = vpack.c.b16 %v148, %v147
  %v155 = vunpack.c.l.b16 %v130
  %v156 = vunpack.c.l.b16 %v131
  %v157 = vunpack.c.l.b16 %v132
  %v158 = vunpack.c.l.b16 %v133
  %v159 = vpack.c.b16 %v156, %v155
  %v160 = vpack.c.b16 %v158, %v157
  %vm163 = vcmask 261120
  %v165 = vsel %vm163, %v149, 0
  %v168 = vsel %vm163, %v150, 0
  %170 = vmatprep.subr.bf16.mxu0 0
  %171 = vmatpush1.bf16.msra.mxu0 0
  %172 = vmatprep.subr.bf16.mxu0 0
  %173 = vmatpush1.bf16.msra.mxu0 0
  %174 = vmatprep.subr.bf16.mxu0 0
  %175 = vmatpush1.bf16.msra.mxu0 0
  %176 = vmatprep.subr.bf16.mxu0 0
  %177 = vmatpush1.bf16.msra.mxu0 0
  %178 = vmatprep.subr.bf16.mxu0 0
  %179 = vmatpush1.bf16.msra.mxu0 0
  %180 = vmatprep.subr.bf16.mxu0 0
  %181 = vmatpush1.bf16.msra.mxu0 0
  %182 = vmatprep.subr.bf16.mxu0 0
  %183 = vmatpush1.bf16.msra.mxu0 %v160
  %184 = vmatprep.subr.bf16.mxu0 0
  %185 = vmatpush1.bf16.msra.mxu0 %v159
  %186 = vmatprep.subr.bf16.mxu0 0
  %187 = vmatpush2.bf16.msra.mxu0 0
  %188 = vmatprep.subr.bf16.mxu0 0
  %189 = vmatpush2.bf16.msra.mxu0 0
  %190 = vmatprep.subr.bf16.mxu0 0
  %191 = vmatpush2.bf16.msra.mxu0 0
  %192 = vmatprep.subr.bf16.mxu0 0
  %193 = vmatpush2.bf16.msra.mxu0 0
  %194 = vmatprep.subr.bf16.mxu0 0
  %195 = vmatpush2.bf16.msra.mxu0 0
  %196 = vmatprep.subr.bf16.mxu0 0
  %197 = vmatpush2.bf16.msra.mxu0 0
  %198 = vmatprep.subr.bf16.mxu0 0
  %199 = vmatpush2.bf16.msra.mxu0 0
  %200 = vmatprep.subr.bf16.mxu0 0
  %201 = vmatpush2.bf16.msra.mxu0 0
  %202 = vmatprep.mubr.bf16.mxu0 0
  %203 = vmatmul.mubr.bf16.gmra.mxu0 %v165
  %v204 = vpop.f32.mrf.mxu0
  %v205 = vadd.f32 %v139, %v204
  %v206 = vpop.f32.mrf.mxu0
  %v207 = vpop.f32.mrf.mxu0
  %v208 = vadd.f32 %v139, %v207
  %v209 = vpop.f32.mrf.mxu0
  %210 = vmatprep.mubr.bf16.mxu0 0
  %211 = vmatmul.mubr.bf16.gmra.mxu0 %v168
  %v212 = vpop.f32.mrf.mxu0
  %v213 = vadd.f32 %v139, %v212
  %v214 = vpop.f32.mrf.mxu0
  %v215 = vpop.f32.mrf.mxu0
  %v216 = vadd.f32 %v139, %v215
  %v217 = vpop.f32.mrf.mxu0
  %218 = vdwg.mxu0
  %v219 = vmul.f32 %v205, 0.70710677
  %v220 = vmul.f32 %v208, 0.70710677
  %v221 = vmul.f32 %v213, 0.70710677
  %v222 = vmul.f32 %v216, 0.70710677
  %vm223 = vcmp.ge.f32.partialorder %v219, 0.0
  %vm224 = vcmp.ge.f32.partialorder %v220, 0.0
  %vm225 = vcmp.ge.f32.partialorder %v221, 0.0
  %vm226 = vcmp.ge.f32.partialorder %v222, 0.0
  %v227 = vsel %vm223, 1.0, -1.0
  %v228 = vsel %vm224, 1.0, -1.0
  %v229 = vsel %vm225, 1.0, -1.0
  %v230 = vsel %vm226, 1.0, -1.0
  %v231 = vand.u32 2147483647, %v219
  %v232 = vand.u32 2147483647, %v220
  %v233 = vand.u32 2147483647, %v221
  %v234 = vand.u32 2147483647, %v222
  %v235 = vmul.f32 %v231, 0.3275911
  %v236 = vmul.f32 %v232, 0.3275911
  %v237 = vmul.f32 %v233, 0.3275911
  %v238 = vmul.f32 %v234, 0.3275911
  %v239 = vadd.f32 %v235, 1.0
  %v240 = vadd.f32 %v236, 1.0
  %v241 = vadd.f32 %v237, 1.0
  %v242 = vadd.f32 %v238, 1.0
  %v243 = vrcp.pop %v239
  %v244 = vrcp.pop %v240
  %v245 = vrcp.pop %v241
  %v246 = vrcp.pop %v242
  %v247 = vmul.f32 %v243, 1.0614054
  %v248 = vmul.f32 %v244, 1.0614054
  %v249 = vmul.f32 %v245, 1.0614054
  %v250 = vmul.f32 %v246, 1.0614054
  %v251 = vadd.f32 %v247, -1.4531521
  %v252 = vadd.f32 %v248, -1.4531521
  %v253 = vadd.f32 %v249, -1.4531521
  %v254 = vadd.f32 %v250, -1.4531521
  %v255 = vmul.f32 %v251, %v243
  %v256 = vmul.f32 %v252, %v244
  %v257 = vmul.f32 %v253, %v245
  %v258 = vmul.f32 %v254, %v246
  %v259 = vadd.f32 %v255, 1.4214138
  %v260 = vadd.f32 %v256, 1.4214138
  %v261 = vadd.f32 %v257, 1.4214138
  %v262 = vadd.f32 %v258, 1.4214138
  %v263 = vmul.f32 %v259, %v243
  %v264 = vmul.f32 %v260, %v244
  %v265 = vmul.f32 %v261, %v245
  %v266 = vmul.f32 %v262, %v246
  %v267 = vadd.f32 %v263, -0.28449672
  %v268 = vadd.f32 %v264, -0.28449672
  %v269 = vadd.f32 %v265, -0.28449672
  %v270 = vadd.f32 %v266, -0.28449672
  %v271 = vmul.f32 %v267, %v243
  %v272 = vmul.f32 %v268, %v244
  %v273 = vmul.f32 %v269, %v245
  %v274 = vmul.f32 %v270, %v246
  %v275 = vadd.f32 %v271, 0.2548296
  %v276 = vadd.f32 %v272, 0.2548296
  %v277 = vadd.f32 %v273, 0.2548296
  %v278 = vadd.f32 %v274, 0.2548296
  %v279 = vmul.f32 %v275, %v243
  %v280 = vmul.f32 %v276, %v244
  %v281 = vmul.f32 %v277, %v245
  %v282 = vmul.f32 %v278, %v246
  %v283 = vsub.f32 0.0, %v231
  %v284 = vsub.f32 0.0, %v232
  %v285 = vsub.f32 0.0, %v233
  %v286 = vsub.f32 0.0, %v234
  %v287 = vmul.f32 %v283, %v231
  %v288 = vmul.f32 %v284, %v232
  %v289 = vmul.f32 %v285, %v233
  %v290 = vmul.f32 %v286, %v234
  %v291 = vmul.f32 %v287, 1.442695
  %v292 = vpow.pop %v291
  %v293 = vmul.f32 %v288, 1.442695
  %v294 = vpow.pop %v293
  %v295 = vmul.f32 %v289, 1.442695
  %v296 = vpow.pop %v295
  %v297 = vmul.f32 %v290, 1.442695
  %v298 = vpow.pop %v297
  %v299 = vmul.f32 %v279, %v292
  %v300 = vmul.f32 %v280, %v294
  %v301 = vmul.f32 %v281, %v296
  %v302 = vmul.f32 %v282, %v298
  %v303 = vsub.f32 1.0, %v299
  %v304 = vsub.f32 1.0, %v300
  %v305 = vsub.f32 1.0, %v301
  %v306 = vsub.f32 1.0, %v302
  %v307 = vmul.f32 %v227, %v303
  %v308 = vmul.f32 %v228, %v304
  %v309 = vmul.f32 %v229, %v305
  %v310 = vmul.f32 %v230, %v306
  %v311 = vmul.f32 %v205, 0.5
  %v312 = vmul.f32 %v208, 0.5
  %v313 = vmul.f32 %v213, 0.5
  %v314 = vmul.f32 %v216, 0.5
  %v315 = vadd.f32 %v307, 1.0
  %v316 = vadd.f32 %v308, 1.0
  %v317 = vadd.f32 %v309, 1.0
  %v318 = vadd.f32 %v310, 1.0
  %v319 = vmul.f32 %v311, %v315
  %v320 = vmul.f32 %v312, %v316
  %v321 = vmul.f32 %v313, %v317
  %v322 = vmul.f32 %v314, %v318
  %v323 = vpack.c.bf16 %v320, %v319
  %v324 = vpack.c.bf16 %v322, %v321
  %v327 = vunpack.c.l.b16 %v323
  %v328 = vunpack.c.h.b16 %v323
  %v329 = vunpack.c.l.b16 %v324
  %v330 = vunpack.c.h.b16 %v324
  %v331 = vpack.c.b16 %v327, %v327
  %v332 = vpack.c.b16 %v328, %v328
  %v333 = vpack.c.b16 %v329, %v329
  %v334 = vpack.c.b16 %v330, %v330
  %339 = vst [vmem:[%s5] sm:$0xf] %v331
  %340 = vst [vmem:[%s5 + $0x4] sm:$0xf] %v332
  %341 = vst [vmem:[%s5 + $0x8] sm:$0xf] %v333
  %342 = vst [vmem:[%s5 + $0xc] sm:$0xf] %v334
  // Predicated region
  $region26: #{block_forward.10} parent=0 // pred_check
    _
  $region27: #{block_forward.10} parent=0 // pred_check_branch
    %344 = sbr.rel (0) target = $region29
  $region28: #{block_forward.10} parent=0 // pred_region
    _
  $region29: #{block_forward.10} parent=0 // pred_fallthru
    _
  // Predicated region
  $region30: #{block_forward.10} parent=0 // pred_check
    _
  $region31: #{block_forward.10} parent=0 // pred_check_branch
    %346 = sbr.rel (0) target = $region33
  $region32: #{block_forward.10} parent=0 // pred_region
    _
  $region33: #{block_forward.10} parent=0 // pred_fallthru
    _

</llo_original>
